<compile_context>
chip_gen: v5e
topology: v5e:2x2
jax: 0.10.0
libtpu: 0.0.40
codegen_flags: <defaults>
</compile_context>

<pallas_src>
import jax
import jax.numpy as jnp
from jax.experimental import pallas as pl
from jax.experimental.pallas import tpu as pltpu

# ----------------------------- config ---------------------------------------
B = 2                # batch
LATENT_SIZE = 4      # n latent tokens
MID_TOKEN_SIZE = 4   # mid tokens (module default is 16; small value for test)
T = 8                # context length
H = 128              # hidden size
N_HEADS = 4
D_HEAD = H // N_HEADS
FFN = 4 * H
VOCAB = 256
N_LAYERS = 2
IGNORE_INDEX = -100

S_TOTAL = LATENT_SIZE + MID_TOKEN_SIZE + T   # full sequence length fed to the LM
LOGIT_START = LATENT_SIZE + MID_TOKEN_SIZE - 1


# ----------------------------- in-kernel helpers -----------------------------
def _ln_f32(x, g, b, eps=1e-5):
    mean = jnp.mean(x, axis=-1, keepdims=True)
    var = jnp.mean(jnp.square(x - mean), axis=-1, keepdims=True)
    return (x - mean) * jax.lax.rsqrt(var + eps) * g + b


def _bf16_dot(a, b):
    """MXU matmul: bf16 operands, f32 accumulation."""
    return jax.lax.dot_general(
        a.astype(jnp.bfloat16), b.astype(jnp.bfloat16),
        dimension_numbers=(((1,), (0,)), ((), ())),
        preferred_element_type=jnp.float32)


# --------------------- fully fused forward kernel (per batch) ----------------
def _fused_forward_kernel(x_ref, lab_ref,
                          ln1g_ref, ln1b_ref, wqkv_ref, bqkv_ref, wo_ref, bo_ref,
                          ln2g_ref, ln2b_ref, w1_ref, b1_ref, w2_ref, b2_ref,
                          lnfg_ref, lnfb_ref, lmw_ref, lmb_ref,
                          logits_ref, stats_ref,
                          attn_ref):
    S = x_ref.shape[1]
    x = x_ref[0].astype(jnp.float32)                              # [S, H]

    scale = 1.0 / (D_HEAD ** 0.5)
    row = jax.lax.broadcasted_iota(jnp.int32, (S, S), 0)
    col = jax.lax.broadcasted_iota(jnp.int32, (S, S), 1)
    causal = col <= row

    # ---- transformer layers (static unroll, weights VMEM-resident) ----
    for li in range(N_LAYERS):
        # attention
        h = _ln_f32(x, ln1g_ref[li], ln1b_ref[li])
        qkv = _bf16_dot(h, wqkv_ref[li]) + bqkv_ref[li]           # [S, 3H] f32
        for hi in range(N_HEADS):                                 # static, unrolled
            q = qkv[:, hi * D_HEAD:(hi + 1) * D_HEAD] * scale     # scale folded into q
            k = qkv[:, H + hi * D_HEAD:H + (hi + 1) * D_HEAD]
            v = qkv[:, 2 * H + hi * D_HEAD:2 * H + (hi + 1) * D_HEAD]
            s = jax.lax.dot_general(                              # q @ k^T, no transpose op
                q.astype(jnp.bfloat16), k.astype(jnp.bfloat16),
                dimension_numbers=(((1,), (1,)), ((), ())),
                preferred_element_type=jnp.float32)               # [S, S]
            s = jnp.where(causal, s, -1e30)                       # large finite, not -inf
            m = jnp.max(s, axis=-1, keepdims=True)
            p = jnp.exp(s - m)
            p = p * pl.reciprocal(jnp.sum(p, axis=-1, keepdims=True), approx=True)
            # write into scratch slice instead of lane-concat
            attn_ref[:, hi * D_HEAD:(hi + 1) * D_HEAD] = _bf16_dot(p, v)
        x = x + _bf16_dot(attn_ref[...], wo_ref[li]) + bo_ref[li]

        # MLP
        h = _ln_f32(x, ln2g_ref[li], ln2b_ref[li])
        h1 = _bf16_dot(h, w1_ref[li]) + b1_ref[li]
        h1 = jax.nn.gelu(h1, approximate=True)                    # f32 tanh-gelu (gelu_new)
        x = x + _bf16_dot(h1, w2_ref[li]) + b2_ref[li]

    # ---- final LN + LM head on ALL S rows (sublane-aligned; extra rows free on MXU) ----
    h = _ln_f32(x, lnfg_ref[...], lnfb_ref[...])
    logits = _bf16_dot(h, lmw_ref[...]) + lmb_ref[...]            # [S, V] f32
    logits_ref[0] = logits.astype(logits_ref.dtype)

    # ---- CE / accuracy stats (labels padded to S rows with ignore_index) ----
    labels = lab_ref[0]                                           # [S, 1] int32
    V = logits.shape[-1]
    m = jnp.max(logits, axis=-1, keepdims=True)
    lse = jnp.log(jnp.sum(jnp.exp(logits - m), axis=-1, keepdims=True)) + m
    vcol = jax.lax.broadcasted_iota(jnp.int32, logits.shape, 1)
    onehot = (vcol == labels).astype(jnp.float32)
    label_logit = jnp.sum(logits * onehot, axis=-1, keepdims=True)
    valid = (labels != IGNORE_INDEX).astype(jnp.float32)          # [S, 1]
    nll = (lse - label_logit) * valid
    # argmax with first-max tie-break (matches torch/jnp argmax)
    pred = jnp.min(jnp.where(logits == m, vcol, V), axis=-1, keepdims=True)
    correct = (pred == labels).astype(jnp.float32) * valid

    # lane-dense stats row: [sum_nll, n_correct, n_valid, 0, ...]
    lane = jax.lax.broadcasted_iota(jnp.int32, (1, 128), 1)
    stats_ref[0] = (jnp.where(lane == 0, jnp.sum(nll), 0.0)
                    + jnp.where(lane == 1, jnp.sum(correct), 0.0)
                    + jnp.where(lane == 2, jnp.sum(valid), 0.0))


def fused_forward(x, labels_pad, params):
    Bb, S, Hd = x.shape
    L = N_LAYERS
    c3 = lambda b: (0, 0, 0)
    c2 = lambda b: (0, 0)
    return pl.pallas_call(
        _fused_forward_kernel,
        out_shape=(jax.ShapeDtypeStruct((Bb, S, VOCAB), jnp.float32),
                   jax.ShapeDtypeStruct((Bb, 1, 128), jnp.float32)),
        grid=(Bb,),
        in_specs=[
            pl.BlockSpec((1, S, Hd), lambda b: (b, 0, 0)),   # x (embeds + pos already added)
            pl.BlockSpec((1, S, 1), lambda b: (b, 0, 0)),    # labels (padded to S rows)
            pl.BlockSpec((L, 1, Hd), c3),                    # ln1_g
            pl.BlockSpec((L, 1, Hd), c3),                    # ln1_b
            pl.BlockSpec((L, Hd, 3 * Hd), c3),               # wqkv (bf16)
            pl.BlockSpec((L, 1, 3 * Hd), c3),                # bqkv
            pl.BlockSpec((L, Hd, Hd), c3),                   # wo (bf16)
            pl.BlockSpec((L, 1, Hd), c3),                    # bo
            pl.BlockSpec((L, 1, Hd), c3),                    # ln2_g
            pl.BlockSpec((L, 1, Hd), c3),                    # ln2_b
            pl.BlockSpec((L, Hd, FFN), c3),                  # w1 (bf16)
            pl.BlockSpec((L, 1, FFN), c3),                   # b1
            pl.BlockSpec((L, FFN, Hd), c3),                  # w2 (bf16)
            pl.BlockSpec((L, 1, Hd), c3),                    # b2
            pl.BlockSpec((1, Hd), c2),                       # lnf_g
            pl.BlockSpec((1, Hd), c2),                       # lnf_b
            pl.BlockSpec((Hd, VOCAB), c2),                   # lm_head_w (bf16)
            pl.BlockSpec((1, VOCAB), c2),                    # lm_head_b
        ],
        out_specs=(pl.BlockSpec((1, S, VOCAB), lambda b: (b, 0, 0)),
                   pl.BlockSpec((1, 1, 128), lambda b: (b, 0, 0))),
        scratch_shapes=[pltpu.VMEM((S, Hd), jnp.float32)],   # per-layer attention buffer
        compiler_params=pltpu.CompilerParams(dimension_semantics=("parallel",)),
    )(x, labels_pad,
      params["ln1_g"], params["ln1_b"], params["wqkv"], params["bqkv"],
      params["wo"], params["bo"], params["ln2_g"], params["ln2_b"],
      params["w1"], params["b1"], params["w2"], params["b2"],
      params["lnf_g"], params["lnf_b"], params["lm_head_w"], params["lm_head_b"])


# ----------------------------- synthetic causal LM params --------------------
def init_params(key):
    ks = jax.random.split(key, 8)
    scale = 0.02
    bf = lambda a: a.astype(jnp.bfloat16)
    L = N_LAYERS
    return {
        "embed_table": scale * jax.random.normal(ks[0], (VOCAB, H), jnp.float32),
        "pos_emb": scale * jax.random.normal(ks[1], (S_TOTAL, H), jnp.float32),
        "lnf_g": jnp.ones((1, H), jnp.float32),
        "lnf_b": jnp.zeros((1, H), jnp.float32),
        "lm_head_w": bf(scale * jax.random.normal(ks[2], (H, VOCAB), jnp.float32)),
        "lm_head_b": jnp.zeros((1, VOCAB), jnp.float32),
        # the only LatentDecoder-owned parameter: mid_tokens [mid_token_size, H]
        "mid_tokens": jax.random.normal(ks[3], (MID_TOKEN_SIZE, H), jnp.float32),
        # per-layer weights stacked on a leading N_LAYERS axis (VMEM-resident in kernel)
        "ln1_g": jnp.ones((L, 1, H), jnp.float32),
        "ln1_b": jnp.zeros((L, 1, H), jnp.float32),
        "wqkv": bf(scale * jax.random.normal(ks[4], (L, H, 3 * H), jnp.float32)),
        "bqkv": jnp.zeros((L, 1, 3 * H), jnp.float32),
        "wo": bf(scale * jax.random.normal(ks[5], (L, H, H), jnp.float32)),
        "bo": jnp.zeros((L, 1, H), jnp.float32),
        "ln2_g": jnp.ones((L, 1, H), jnp.float32),
        "ln2_b": jnp.zeros((L, 1, H), jnp.float32),
        "w1": bf(scale * jax.random.normal(ks[6], (L, H, FFN), jnp.float32)),
        "b1": jnp.zeros((L, 1, FFN), jnp.float32),
        "w2": bf(scale * jax.random.normal(ks[7], (L, FFN, H), jnp.float32)),
        "b2": jnp.zeros((L, 1, H), jnp.float32),
    }


# ----------------------------- LatentDecoder.forward -------------------------
def latent_decoder_forward(params, input_ids, latent_embeds, labels=None):
    """
    input_ids:     [B, T]  int32
    latent_embeds: [B, latent_size, H]
    labels:        [B, T]  int32 (ignore_index = -100) or None
    Returns (logits [B, T, V], loss, accuracy) — matching the PyTorch module.
    """
    Bb, Tt = input_ids.shape
    # Embedding gather / mid-token broadcast / concat / pos-emb add stay in XLA (tiny).
    context_embeds = jnp.take(params["embed_table"], input_ids, axis=0)     # [B, T, H]
    mid = jnp.broadcast_to(params["mid_tokens"][None], (Bb, MID_TOKEN_SIZE, H))
    x = jnp.concatenate([latent_embeds, mid, context_embeds], axis=1)       # [B, S, H]
    x = x + params["pos_emb"][None]

    # labels padded to the full S rows with ignore_index outside the output window;
    # keeps every in-kernel slice sublane-aligned (no pl.ds(7, 8)).
    if labels is None:
        labels_eff = jnp.zeros((Bb, Tt), jnp.int32)     # dummy; stats discarded
    else:
        labels_eff = labels.astype(jnp.int32)
    labels_pad = jnp.full((Bb, S_TOTAL), IGNORE_INDEX, jnp.int32)
    labels_pad = labels_pad.at[:, LOGIT_START:LOGIT_START + Tt].set(labels_eff)
    labels_pad = labels_pad.reshape(Bb, S_TOTAL, 1)

    logits_full, stats = fused_forward(x, labels_pad, params)
    logits = logits_full[:, LOGIT_START:LOGIT_START + Tt, :]                # [B, T, V]

    if labels is None:
        return logits, None, None

    tot = jnp.sum(stats, axis=(0, 1))   # [128]: lane0=sum_nll, lane1=correct, lane2=valid
    n_valid = tot[2]                    # NOTE: no n_valid==0 guard (matches PyTorch NaN).
    loss = tot[0] / n_valid
    accuracy = tot[1] / n_valid
    return logits, loss, accuracy


# ----------------------------- main -------------------------------------------
if __name__ == "__main__":
    key = jax.random.PRNGKey(0)
    k_params, k_ids, k_latent, k_labels = jax.random.split(key, 4)

    params = init_params(k_params)

    input_ids = jax.random.randint(k_ids, (B, T), 0, VOCAB, dtype=jnp.int32)
    latent_embeds = jax.random.normal(k_latent, (B, LATENT_SIZE, H), jnp.float32)
    labels = jax.random.randint(k_labels, (B, T), 0, VOCAB, dtype=jnp.int32)
    # exercise ignore_index masking
    labels = labels.at[0, 0].set(IGNORE_INDEX)
    labels = labels.at[1, T - 1].set(IGNORE_INDEX)

    logits, loss, accuracy = latent_decoder_forward(params, input_ids, latent_embeds, labels)
    jax.block_until_ready((logits, loss, accuracy))

    assert logits.shape == (B, T, VOCAB)
    assert jnp.isfinite(loss)
    assert (accuracy >= 0.0) and (accuracy <= 1.0)
    print("KERNEL_OK")
</pallas_src>

<mosaic_0001>
module attributes {stable_mosaic.version = 11 : i64} {
  func.func @_fused_forward_kernel(%arg0: i32, %arg1: memref<1x16x128xf32, #tpu.memory_space<vmem>>, %arg2: memref<1x16x1xi32, #tpu.memory_space<vmem>>, %arg3: memref<2x1x128xf32, #tpu.memory_space<vmem>>, %arg4: memref<2x1x128xf32, #tpu.memory_space<vmem>>, %arg5: memref<2x128x384xbf16, #tpu.memory_space<vmem>>, %arg6: memref<2x1x384xf32, #tpu.memory_space<vmem>>, %arg7: memref<2x128x128xbf16, #tpu.memory_space<vmem>>, %arg8: memref<2x1x128xf32, #tpu.memory_space<vmem>>, %arg9: memref<2x1x128xf32, #tpu.memory_space<vmem>>, %arg10: memref<2x1x128xf32, #tpu.memory_space<vmem>>, %arg11: memref<2x128x512xbf16, #tpu.memory_space<vmem>>, %arg12: memref<2x1x512xf32, #tpu.memory_space<vmem>>, %arg13: memref<2x512x128xbf16, #tpu.memory_space<vmem>>, %arg14: memref<2x1x128xf32, #tpu.memory_space<vmem>>, %arg15: memref<1x128xf32, #tpu.memory_space<vmem>>, %arg16: memref<1x128xf32, #tpu.memory_space<vmem>>, %arg17: memref<128x256xbf16, #tpu.memory_space<vmem>>, %arg18: memref<1x256xf32, #tpu.memory_space<vmem>>, %arg19: memref<1x16x256xf32, #tpu.memory_space<vmem>>, %arg20: memref<1x1x128xf32, #tpu.memory_space<vmem>>, %arg21: memref<16x128xf32, #tpu.memory_space<vmem>>) attributes {dimension_semantics = [#tpu.dimension_semantics<parallel>], iteration_bounds = array<i64: 2>, scalar_prefetch = 0 : i64, scratch_operands = 1 : i64, tpu.core_type = #tpu.core_type<tc>, window_params = [{transform_indices = @transform_0, window_bounds = array<i64: 1, 16, 128>}, {transform_indices = @transform_1, window_bounds = array<i64: 1, 16, 1>}, {pipeline_mode = #tpu.pipeline_mode<synchronous>, transform_indices = @transform_2, window_bounds = array<i64: 2, 1, 128>}, {pipeline_mode = #tpu.pipeline_mode<synchronous>, transform_indices = @transform_3, window_bounds = array<i64: 2, 1, 128>}, {pipeline_mode = #tpu.pipeline_mode<synchronous>, transform_indices = @transform_4, window_bounds = array<i64: 2, 128, 384>}, {pipeline_mode = #tpu.pipeline_mode<synchronous>, transform_indices = @transform_5, window_bounds = array<i64: 2, 1, 384>}, {pipeline_mode = #tpu.pipeline_mode<synchronous>, transform_indices = @transform_6, window_bounds = array<i64: 2, 128, 128>}, {pipeline_mode = #tpu.pipeline_mode<synchronous>, transform_indices = @transform_7, window_bounds = array<i64: 2, 1, 128>}, {pipeline_mode = #tpu.pipeline_mode<synchronous>, transform_indices = @transform_8, window_bounds = array<i64: 2, 1, 128>}, {pipeline_mode = #tpu.pipeline_mode<synchronous>, transform_indices = @transform_9, window_bounds = array<i64: 2, 1, 128>}, {pipeline_mode = #tpu.pipeline_mode<synchronous>, transform_indices = @transform_10, window_bounds = array<i64: 2, 128, 512>}, {pipeline_mode = #tpu.pipeline_mode<synchronous>, transform_indices = @transform_11, window_bounds = array<i64: 2, 1, 512>}, {pipeline_mode = #tpu.pipeline_mode<synchronous>, transform_indices = @transform_12, window_bounds = array<i64: 2, 512, 128>}, {pipeline_mode = #tpu.pipeline_mode<synchronous>, transform_indices = @transform_13, window_bounds = array<i64: 2, 1, 128>}, {pipeline_mode = #tpu.pipeline_mode<synchronous>, transform_indices = @transform_14, window_bounds = array<i64: 1, 128>}, {pipeline_mode = #tpu.pipeline_mode<synchronous>, transform_indices = @transform_15, window_bounds = array<i64: 1, 128>}, {pipeline_mode = #tpu.pipeline_mode<synchronous>, transform_indices = @transform_16, window_bounds = array<i64: 128, 256>}, {pipeline_mode = #tpu.pipeline_mode<synchronous>, transform_indices = @transform_17, window_bounds = array<i64: 1, 256>}, {transform_indices = @transform_18, window_bounds = array<i64: 1, 16, 256>}, {transform_indices = @transform_19, window_bounds = array<i64: 1, 1, 128>}]} {
    %c0 = arith.constant 0 : index
    %c0_0 = arith.constant 0 : index
    %c0_1 = arith.constant 0 : index
    %0 = vector.load %arg1[%c0, %c0_0, %c0_1] : memref<1x16x128xf32, #tpu.memory_space<vmem>>, vector<1x16x128xf32>
    %1 = vector.shape_cast %0 : vector<1x16x128xf32> to vector<16x128xf32>
    %2 = tpu.iota {dimensions = array<i32: 0>} : vector<16x16xi32>
    %3 = tpu.iota {dimensions = array<i32: 1>} : vector<16x16xi32>
    %4 = arith.cmpi sle, %3, %2 : vector<16x16xi32>
    %c0_2 = arith.constant 0 : index
    %c0_3 = arith.constant 0 : index
    %c0_4 = arith.constant 0 : index
    %5 = vector.load %arg3[%c0_2, %c0_3, %c0_4] : memref<2x1x128xf32, #tpu.memory_space<vmem>>, vector<1x1x128xf32>
    %6 = vector.shape_cast %5 : vector<1x1x128xf32> to vector<1x128xf32>
    %c0_5 = arith.constant 0 : index
    %c0_6 = arith.constant 0 : index
    %c0_7 = arith.constant 0 : index
    %7 = vector.load %arg4[%c0_5, %c0_6, %c0_7] : memref<2x1x128xf32, #tpu.memory_space<vmem>>, vector<1x1x128xf32>
    %8 = vector.shape_cast %7 : vector<1x1x128xf32> to vector<1x128xf32>
    %cst = arith.constant dense<0.000000e+00> : vector<16xf32>
    %9 = vector.multi_reduction <add>, %1, %cst [1] : vector<16x128xf32> to vector<16xf32>
    %10 = vector.shape_cast %9 : vector<16xf32> to vector<16x1xf32>
    %cst_8 = arith.constant 1.280000e+02 : f32
    %11 = vector.broadcast %cst_8 : f32 to vector<16x1xf32>
    %12 = arith.divf %10, %11 : vector<16x1xf32>
    %13 = vector.broadcast %12 : vector<16x1xf32> to vector<16x128xf32>
    %14 = arith.subf %1, %13 : vector<16x128xf32>
    %15 = arith.mulf %14, %14 : vector<16x128xf32>
    %cst_9 = arith.constant dense<0.000000e+00> : vector<16xf32>
    %16 = vector.multi_reduction <add>, %15, %cst_9 [1] : vector<16x128xf32> to vector<16xf32>
    %17 = vector.shape_cast %16 : vector<16xf32> to vector<16x1xf32>
    %cst_10 = arith.constant 1.280000e+02 : f32
    %18 = vector.broadcast %cst_10 : f32 to vector<16x1xf32>
    %19 = arith.divf %17, %18 : vector<16x1xf32>
    %20 = vector.broadcast %12 : vector<16x1xf32> to vector<16x128xf32>
    %21 = arith.subf %1, %20 : vector<16x128xf32>
    %cst_11 = arith.constant 9.99999974E-6 : f32
    %22 = vector.broadcast %cst_11 : f32 to vector<16x1xf32>
    %23 = arith.addf %19, %22 : vector<16x1xf32>
    %24 = math.rsqrt %23 : vector<16x1xf32>
    %25 = vector.broadcast %24 : vector<16x1xf32> to vector<16x128xf32>
    %26 = arith.mulf %21, %25 : vector<16x128xf32>
    %27 = vector.broadcast %6 : vector<1x128xf32> to vector<16x128xf32>
    %28 = arith.mulf %26, %27 : vector<16x128xf32>
    %29 = vector.broadcast %8 : vector<1x128xf32> to vector<16x128xf32>
    %30 = arith.addf %28, %29 : vector<16x128xf32>
    %c0_12 = arith.constant 0 : index
    %c0_13 = arith.constant 0 : index
    %c0_14 = arith.constant 0 : index
    %31 = vector.load %arg5[%c0_12, %c0_13, %c0_14] : memref<2x128x384xbf16, #tpu.memory_space<vmem>>, vector<1x128x384xbf16>
    %32 = vector.shape_cast %31 : vector<1x128x384xbf16> to vector<128x384xbf16>
    %33 = arith.truncf %30 : vector<16x128xf32> to vector<16x128xbf16>
    %cst_15 = arith.constant dense<0.000000e+00> : vector<16x384xf32>
    %34 = tpu.matmul %33, %32, %cst_15 {dimension_numbers = #tpu.dot_dimension_numbers<[1], [0], [0], [1], [0, 0, 1, 1], [], []>} : vector<16x128xbf16>, vector<128x384xbf16>, vector<16x384xf32> -> vector<16x384xf32>
    %c0_16 = arith.constant 0 : index
    %c0_17 = arith.constant 0 : index
    %c0_18 = arith.constant 0 : index
    %35 = vector.load %arg6[%c0_16, %c0_17, %c0_18] : memref<2x1x384xf32, #tpu.memory_space<vmem>>, vector<1x1x384xf32>
    %36 = vector.shape_cast %35 : vector<1x1x384xf32> to vector<1x384xf32>
    %37 = vector.broadcast %36 : vector<1x384xf32> to vector<16x384xf32>
    %38 = arith.addf %34, %37 : vector<16x384xf32>
    %39 = vector.extract_strided_slice %38 {offsets = [0, 0], sizes = [16, 32], strides = [1, 1]} : vector<16x384xf32> to vector<16x32xf32>
    %cst_19 = arith.constant 0.176776692 : f32
    %40 = vector.broadcast %cst_19 : f32 to vector<16x32xf32>
    %41 = arith.mulf %39, %40 : vector<16x32xf32>
    %42 = vector.extract_strided_slice %38 {offsets = [0, 128], sizes = [16, 32], strides = [1, 1]} : vector<16x384xf32> to vector<16x32xf32>
    %43 = vector.extract_strided_slice %38 {offsets = [0, 256], sizes = [16, 32], strides = [1, 1]} : vector<16x384xf32> to vector<16x32xf32>
    %44 = arith.truncf %41 : vector<16x32xf32> to vector<16x32xbf16>
    %45 = arith.truncf %42 : vector<16x32xf32> to vector<16x32xbf16>
    %cst_20 = arith.constant dense<0.000000e+00> : vector<16x16xf32>
    %46 = tpu.matmul %44, %45, %cst_20 {dimension_numbers = #tpu.dot_dimension_numbers<[1], [1], [0], [0], [0, 0, 1, 0], [], []>} : vector<16x32xbf16>, vector<16x32xbf16>, vector<16x16xf32> -> vector<16x16xf32>
    %cst_21 = arith.constant -1.000000e+30 : f32
    %47 = vector.broadcast %cst_21 : f32 to vector<16x16xf32>
    %48 = arith.select %4, %46, %47 : vector<16x16xi1>, vector<16x16xf32>
    %cst_22 = arith.constant dense<0xFF800000> : vector<16xf32>
    %49 = vector.multi_reduction <maximumf>, %48, %cst_22 [1] : vector<16x16xf32> to vector<16xf32>
    %50 = vector.shape_cast %49 : vector<16xf32> to vector<16x1xf32>
    %51 = vector.broadcast %50 : vector<16x1xf32> to vector<16x16xf32>
    %52 = arith.subf %48, %51 : vector<16x16xf32>
    %53 = math.exp %52 : vector<16x16xf32>
    %cst_23 = arith.constant dense<0.000000e+00> : vector<16xf32>
    %54 = vector.multi_reduction <add>, %53, %cst_23 [1] : vector<16x16xf32> to vector<16xf32>
    %55 = vector.shape_cast %54 : vector<16xf32> to vector<16x1xf32>
    %56 = tpu.reciprocal %55 {approx = true} : vector<16x1xf32> -> vector<16x1xf32>
    %57 = vector.broadcast %56 : vector<16x1xf32> to vector<16x16xf32>
    %58 = arith.mulf %53, %57 : vector<16x16xf32>
    %59 = arith.truncf %58 : vector<16x16xf32> to vector<16x16xbf16>
    %60 = arith.truncf %43 : vector<16x32xf32> to vector<16x32xbf16>
    %cst_24 = arith.constant dense<0.000000e+00> : vector<16x32xf32>
    %61 = tpu.matmul %59, %60, %cst_24 {dimension_numbers = #tpu.dot_dimension_numbers<[1], [0], [0], [1], [0, 0, 1, 1], [], []>} : vector<16x16xbf16>, vector<16x32xbf16>, vector<16x32xf32> -> vector<16x32xf32>
    %c0_25 = arith.constant 0 : index
    %c0_26 = arith.constant 0 : index
    %62 = vector.load %arg21[%c0_25, %c0_26] : memref<16x128xf32, #tpu.memory_space<vmem>>, vector<16x32xf32>
    tpu.vector_store %arg21[%c0_25, %c0_26], %61 {strides = array<i32>} : memref<16x128xf32, #tpu.memory_space<vmem>>, vector<16x32xf32>,
    %63 = vector.extract_strided_slice %38 {offsets = [0, 32], sizes = [16, 32], strides = [1, 1]} : vector<16x384xf32> to vector<16x32xf32>
    %cst_27 = arith.constant 0.176776692 : f32
    %64 = vector.broadcast %cst_27 : f32 to vector<16x32xf32>
    %65 = arith.mulf %63, %64 : vector<16x32xf32>
    %66 = vector.extract_strided_slice %38 {offsets = [0, 160], sizes = [16, 32], strides = [1, 1]} : vector<16x384xf32> to vector<16x32xf32>
    %67 = vector.extract_strided_slice %38 {offsets = [0, 288], sizes = [16, 32], strides = [1, 1]} : vector<16x384xf32> to vector<16x32xf32>
    %68 = arith.truncf %65 : vector<16x32xf32> to vector<16x32xbf16>
    %69 = arith.truncf %66 : vector<16x32xf32> to vector<16x32xbf16>
    %cst_28 = arith.constant dense<0.000000e+00> : vector<16x16xf32>
    %70 = tpu.matmul %68, %69, %cst_28 {dimension_numbers = #tpu.dot_dimension_numbers<[1], [1], [0], [0], [0, 0, 1, 0], [], []>} : vector<16x32xbf16>, vector<16x32xbf16>, vector<16x16xf32> -> vector<16x16xf32>
    %cst_29 = arith.constant -1.000000e+30 : f32
    %71 = vector.broadcast %cst_29 : f32 to vector<16x16xf32>
    %72 = arith.select %4, %70, %71 : vector<16x16xi1>, vector<16x16xf32>
    %cst_30 = arith.constant dense<0xFF800000> : vector<16xf32>
    %73 = vector.multi_reduction <maximumf>, %72, %cst_30 [1] : vector<16x16xf32> to vector<16xf32>
    %74 = vector.shape_cast %73 : vector<16xf32> to vector<16x1xf32>
    %75 = vector.broadcast %74 : vector<16x1xf32> to vector<16x16xf32>
    %76 = arith.subf %72, %75 : vector<16x16xf32>
    %77 = math.exp %76 : vector<16x16xf32>
    %cst_31 = arith.constant dense<0.000000e+00> : vector<16xf32>
    %78 = vector.multi_reduction <add>, %77, %cst_31 [1] : vector<16x16xf32> to vector<16xf32>
    %79 = vector.shape_cast %78 : vector<16xf32> to vector<16x1xf32>
    %80 = tpu.reciprocal %79 {approx = true} : vector<16x1xf32> -> vector<16x1xf32>
    %81 = vector.broadcast %80 : vector<16x1xf32> to vector<16x16xf32>
    %82 = arith.mulf %77, %81 : vector<16x16xf32>
    %83 = arith.truncf %82 : vector<16x16xf32> to vector<16x16xbf16>
    %84 = arith.truncf %67 : vector<16x32xf32> to vector<16x32xbf16>
    %cst_32 = arith.constant dense<0.000000e+00> : vector<16x32xf32>
    %85 = tpu.matmul %83, %84, %cst_32 {dimension_numbers = #tpu.dot_dimension_numbers<[1], [0], [0], [1], [0, 0, 1, 1], [], []>} : vector<16x16xbf16>, vector<16x32xbf16>, vector<16x32xf32> -> vector<16x32xf32>
    %c0_33 = arith.constant 0 : index
    %c32 = arith.constant 32 : index
    %86 = vector.load %arg21[%c0_33, %c32] : memref<16x128xf32, #tpu.memory_space<vmem>>, vector<16x32xf32>
    tpu.vector_store %arg21[%c0_33, %c32], %85 {strides = array<i32>} : memref<16x128xf32, #tpu.memory_space<vmem>>, vector<16x32xf32>,
    %87 = vector.extract_strided_slice %38 {offsets = [0, 64], sizes = [16, 32], strides = [1, 1]} : vector<16x384xf32> to vector<16x32xf32>
    %cst_34 = arith.constant 0.176776692 : f32
    %88 = vector.broadcast %cst_34 : f32 to vector<16x32xf32>
    %89 = arith.mulf %87, %88 : vector<16x32xf32>
    %90 = vector.extract_strided_slice %38 {offsets = [0, 192], sizes = [16, 32], strides = [1, 1]} : vector<16x384xf32> to vector<16x32xf32>
    %91 = vector.extract_strided_slice %38 {offsets = [0, 320], sizes = [16, 32], strides = [1, 1]} : vector<16x384xf32> to vector<16x32xf32>
    %92 = arith.truncf %89 : vector<16x32xf32> to vector<16x32xbf16>
    %93 = arith.truncf %90 : vector<16x32xf32> to vector<16x32xbf16>
    %cst_35 = arith.constant dense<0.000000e+00> : vector<16x16xf32>
    %94 = tpu.matmul %92, %93, %cst_35 {dimension_numbers = #tpu.dot_dimension_numbers<[1], [1], [0], [0], [0, 0, 1, 0], [], []>} : vector<16x32xbf16>, vector<16x32xbf16>, vector<16x16xf32> -> vector<16x16xf32>
    %cst_36 = arith.constant -1.000000e+30 : f32
    %95 = vector.broadcast %cst_36 : f32 to vector<16x16xf32>
    %96 = arith.select %4, %94, %95 : vector<16x16xi1>, vector<16x16xf32>
    %cst_37 = arith.constant dense<0xFF800000> : vector<16xf32>
    %97 = vector.multi_reduction <maximumf>, %96, %cst_37 [1] : vector<16x16xf32> to vector<16xf32>
    %98 = vector.shape_cast %97 : vector<16xf32> to vector<16x1xf32>
    %99 = vector.broadcast %98 : vector<16x1xf32> to vector<16x16xf32>
    %100 = arith.subf %96, %99 : vector<16x16xf32>
    %101 = math.exp %100 : vector<16x16xf32>
    %cst_38 = arith.constant dense<0.000000e+00> : vector<16xf32>
    %102 = vector.multi_reduction <add>, %101, %cst_38 [1] : vector<16x16xf32> to vector<16xf32>
    %103 = vector.shape_cast %102 : vector<16xf32> to vector<16x1xf32>
    %104 = tpu.reciprocal %103 {approx = true} : vector<16x1xf32> -> vector<16x1xf32>
    %105 = vector.broadcast %104 : vector<16x1xf32> to vector<16x16xf32>
    %106 = arith.mulf %101, %105 : vector<16x16xf32>
    %107 = arith.truncf %106 : vector<16x16xf32> to vector<16x16xbf16>
    %108 = arith.truncf %91 : vector<16x32xf32> to vector<16x32xbf16>
    %cst_39 = arith.constant dense<0.000000e+00> : vector<16x32xf32>
    %109 = tpu.matmul %107, %108, %cst_39 {dimension_numbers = #tpu.dot_dimension_numbers<[1], [0], [0], [1], [0, 0, 1, 1], [], []>} : vector<16x16xbf16>, vector<16x32xbf16>, vector<16x32xf32> -> vector<16x32xf32>
    %c0_40 = arith.constant 0 : index
    %c64 = arith.constant 64 : index
    %110 = vector.load %arg21[%c0_40, %c64] : memref<16x128xf32, #tpu.memory_space<vmem>>, vector<16x32xf32>
    tpu.vector_store %arg21[%c0_40, %c64], %109 {strides = array<i32>} : memref<16x128xf32, #tpu.memory_space<vmem>>, vector<16x32xf32>,
    %111 = vector.extract_strided_slice %38 {offsets = [0, 96], sizes = [16, 32], strides = [1, 1]} : vector<16x384xf32> to vector<16x32xf32>
    %cst_41 = arith.constant 0.176776692 : f32
    %112 = vector.broadcast %cst_41 : f32 to vector<16x32xf32>
    %113 = arith.mulf %111, %112 : vector<16x32xf32>
    %114 = vector.extract_strided_slice %38 {offsets = [0, 224], sizes = [16, 32], strides = [1, 1]} : vector<16x384xf32> to vector<16x32xf32>
    %115 = vector.extract_strided_slice %38 {offsets = [0, 352], sizes = [16, 32], strides = [1, 1]} : vector<16x384xf32> to vector<16x32xf32>
    %116 = arith.truncf %113 : vector<16x32xf32> to vector<16x32xbf16>
    %117 = arith.truncf %114 : vector<16x32xf32> to vector<16x32xbf16>
    %cst_42 = arith.constant dense<0.000000e+00> : vector<16x16xf32>
    %118 = tpu.matmul %116, %117, %cst_42 {dimension_numbers = #tpu.dot_dimension_numbers<[1], [1], [0], [0], [0, 0, 1, 0], [], []>} : vector<16x32xbf16>, vector<16x32xbf16>, vector<16x16xf32> -> vector<16x16xf32>
    %cst_43 = arith.constant -1.000000e+30 : f32
    %119 = vector.broadcast %cst_43 : f32 to vector<16x16xf32>
    %120 = arith.select %4, %118, %119 : vector<16x16xi1>, vector<16x16xf32>
    %cst_44 = arith.constant dense<0xFF800000> : vector<16xf32>
    %121 = vector.multi_reduction <maximumf>, %120, %cst_44 [1] : vector<16x16xf32> to vector<16xf32>
    %122 = vector.shape_cast %121 : vector<16xf32> to vector<16x1xf32>
    %123 = vector.broadcast %122 : vector<16x1xf32> to vector<16x16xf32>
    %124 = arith.subf %120, %123 : vector<16x16xf32>
    %125 = math.exp %124 : vector<16x16xf32>
    %cst_45 = arith.constant dense<0.000000e+00> : vector<16xf32>
    %126 = vector.multi_reduction <add>, %125, %cst_45 [1] : vector<16x16xf32> to vector<16xf32>
    %127 = vector.shape_cast %126 : vector<16xf32> to vector<16x1xf32>
    %128 = tpu.reciprocal %127 {approx = true} : vector<16x1xf32> -> vector<16x1xf32>
    %129 = vector.broadcast %128 : vector<16x1xf32> to vector<16x16xf32>
    %130 = arith.mulf %125, %129 : vector<16x16xf32>
    %131 = arith.truncf %130 : vector<16x16xf32> to vector<16x16xbf16>
    %132 = arith.truncf %115 : vector<16x32xf32> to vector<16x32xbf16>
    %cst_46 = arith.constant dense<0.000000e+00> : vector<16x32xf32>
    %133 = tpu.matmul %131, %132, %cst_46 {dimension_numbers = #tpu.dot_dimension_numbers<[1], [0], [0], [1], [0, 0, 1, 1], [], []>} : vector<16x16xbf16>, vector<16x32xbf16>, vector<16x32xf32> -> vector<16x32xf32>
    %c0_47 = arith.constant 0 : index
    %c96 = arith.constant 96 : index
    %134 = vector.load %arg21[%c0_47, %c96] : memref<16x128xf32, #tpu.memory_space<vmem>>, vector<16x32xf32>
    tpu.vector_store %arg21[%c0_47, %c96], %133 {strides = array<i32>} : memref<16x128xf32, #tpu.memory_space<vmem>>, vector<16x32xf32>,
    %c0_48 = arith.constant 0 : index
    %c0_49 = arith.constant 0 : index
    %135 = vector.load %arg21[%c0_48, %c0_49] : memref<16x128xf32, #tpu.memory_space<vmem>>, vector<16x128xf32>
    %c0_50 = arith.constant 0 : index
    %c0_51 = arith.constant 0 : index
    %c0_52 = arith.constant 0 : index
    %136 = vector.load %arg7[%c0_50, %c0_51, %c0_52] : memref<2x128x128xbf16, #tpu.memory_space<vmem>>, vector<1x128x128xbf16>
    %137 = vector.shape_cast %136 : vector<1x128x128xbf16> to vector<128x128xbf16>
    %138 = arith.truncf %135 : vector<16x128xf32> to vector<16x128xbf16>
    %cst_53 = arith.constant dense<0.000000e+00> : vector<16x128xf32>
    %139 = tpu.matmul %138, %137, %cst_53 {dimension_numbers = #tpu.dot_dimension_numbers<[1], [0], [0], [1], [0, 0, 1, 1], [], []>} : vector<16x128xbf16>, vector<128x128xbf16>, vector<16x128xf32> -> vector<16x128xf32>
    %140 = arith.addf %1, %139 : vector<16x128xf32>
    %c0_54 = arith.constant 0 : index
    %c0_55 = arith.constant 0 : index
    %c0_56 = arith.constant 0 : index
    %141 = vector.load %arg8[%c0_54, %c0_55, %c0_56] : memref<2x1x128xf32, #tpu.memory_space<vmem>>, vector<1x1x128xf32>
    %142 = vector.shape_cast %141 : vector<1x1x128xf32> to vector<1x128xf32>
    %143 = vector.broadcast %142 : vector<1x128xf32> to vector<16x128xf32>
    %144 = arith.addf %140, %143 : vector<16x128xf32>
    %c0_57 = arith.constant 0 : index
    %c0_58 = arith.constant 0 : index
    %c0_59 = arith.constant 0 : index
    %145 = vector.load %arg9[%c0_57, %c0_58, %c0_59] : memref<2x1x128xf32, #tpu.memory_space<vmem>>, vector<1x1x128xf32>
    %146 = vector.shape_cast %145 : vector<1x1x128xf32> to vector<1x128xf32>
    %c0_60 = arith.constant 0 : index
    %c0_61 = arith.constant 0 : index
    %c0_62 = arith.constant 0 : index
    %147 = vector.load %arg10[%c0_60, %c0_61, %c0_62] : memref<2x1x128xf32, #tpu.memory_space<vmem>>, vector<1x1x128xf32>
    %148 = vector.shape_cast %147 : vector<1x1x128xf32> to vector<1x128xf32>
    %cst_63 = arith.constant dense<0.000000e+00> : vector<16xf32>
    %149 = vector.multi_reduction <add>, %144, %cst_63 [1] : vector<16x128xf32> to vector<16xf32>
    %150 = vector.shape_cast %149 : vector<16xf32> to vector<16x1xf32>
    %cst_64 = arith.constant 1.280000e+02 : f32
    %151 = vector.broadcast %cst_64 : f32 to vector<16x1xf32>
    %152 = arith.divf %150, %151 : vector<16x1xf32>
    %153 = vector.broadcast %152 : vector<16x1xf32> to vector<16x128xf32>
    %154 = arith.subf %144, %153 : vector<16x128xf32>
    %155 = arith.mulf %154, %154 : vector<16x128xf32>
    %cst_65 = arith.constant dense<0.000000e+00> : vector<16xf32>
    %156 = vector.multi_reduction <add>, %155, %cst_65 [1] : vector<16x128xf32> to vector<16xf32>
    %157 = vector.shape_cast %156 : vector<16xf32> to vector<16x1xf32>
    %cst_66 = arith.constant 1.280000e+02 : f32
    %158 = vector.broadcast %cst_66 : f32 to vector<16x1xf32>
    %159 = arith.divf %157, %158 : vector<16x1xf32>
    %160 = vector.broadcast %152 : vector<16x1xf32> to vector<16x128xf32>
    %161 = arith.subf %144, %160 : vector<16x128xf32>
    %cst_67 = arith.constant 9.99999974E-6 : f32
    %162 = vector.broadcast %cst_67 : f32 to vector<16x1xf32>
    %163 = arith.addf %159, %162 : vector<16x1xf32>
    %164 = math.rsqrt %163 : vector<16x1xf32>
    %165 = vector.broadcast %164 : vector<16x1xf32> to vector<16x128xf32>
    %166 = arith.mulf %161, %165 : vector<16x128xf32>
    %167 = vector.broadcast %146 : vector<1x128xf32> to vector<16x128xf32>
    %168 = arith.mulf %166, %167 : vector<16x128xf32>
    %169 = vector.broadcast %148 : vector<1x128xf32> to vector<16x128xf32>
    %170 = arith.addf %168, %169 : vector<16x128xf32>
    %c0_68 = arith.constant 0 : index
    %c0_69 = arith.constant 0 : index
    %c0_70 = arith.constant 0 : index
    %171 = vector.load %arg11[%c0_68, %c0_69, %c0_70] : memref<2x128x512xbf16, #tpu.memory_space<vmem>>, vector<1x128x512xbf16>
    %172 = vector.shape_cast %171 : vector<1x128x512xbf16> to vector<128x512xbf16>
    %173 = arith.truncf %170 : vector<16x128xf32> to vector<16x128xbf16>
    %cst_71 = arith.constant dense<0.000000e+00> : vector<16x512xf32>
    %174 = tpu.matmul %173, %172, %cst_71 {dimension_numbers = #tpu.dot_dimension_numbers<[1], [0], [0], [1], [0, 0, 1, 1], [], []>} : vector<16x128xbf16>, vector<128x512xbf16>, vector<16x512xf32> -> vector<16x512xf32>
    %c0_72 = arith.constant 0 : index
    %c0_73 = arith.constant 0 : index
    %c0_74 = arith.constant 0 : index
    %175 = vector.load %arg12[%c0_72, %c0_73, %c0_74] : memref<2x1x512xf32, #tpu.memory_space<vmem>>, vector<1x1x512xf32>
    %176 = vector.shape_cast %175 : vector<1x1x512xf32> to vector<1x512xf32>
    %177 = vector.broadcast %176 : vector<1x512xf32> to vector<16x512xf32>
    %178 = arith.addf %174, %177 : vector<16x512xf32>
    %179 = arith.mulf %178, %178 : vector<16x512xf32>
    %180 = arith.mulf %178, %179 : vector<16x512xf32>
    %cst_75 = arith.constant 4.471500e-02 : f32
    %181 = vector.broadcast %cst_75 : f32 to vector<16x512xf32>
    %182 = arith.mulf %181, %180 : vector<16x512xf32>
    %183 = arith.addf %178, %182 : vector<16x512xf32>
    %cst_76 = arith.constant 0.797884583 : f32
    %184 = vector.broadcast %cst_76 : f32 to vector<16x512xf32>
    %185 = arith.mulf %184, %183 : vector<16x512xf32>
    %186 = math.tanh %185 : vector<16x512xf32>
    %cst_77 = arith.constant 1.000000e+00 : f32
    %187 = vector.broadcast %cst_77 : f32 to vector<16x512xf32>
    %188 = arith.addf %187, %186 : vector<16x512xf32>
    %cst_78 = arith.constant 5.000000e-01 : f32
    %189 = vector.broadcast %cst_78 : f32 to vector<16x512xf32>
    %190 = arith.mulf %189, %188 : vector<16x512xf32>
    %191 = arith.mulf %178, %190 : vector<16x512xf32>
    %c0_79 = arith.constant 0 : index
    %c0_80 = arith.constant 0 : index
    %c0_81 = arith.constant 0 : index
    %192 = vector.load %arg13[%c0_79, %c0_80, %c0_81] : memref<2x512x128xbf16, #tpu.memory_space<vmem>>, vector<1x512x128xbf16>
    %193 = vector.shape_cast %192 : vector<1x512x128xbf16> to vector<512x128xbf16>
    %194 = arith.truncf %191 : vector<16x512xf32> to vector<16x512xbf16>
    %cst_82 = arith.constant dense<0.000000e+00> : vector<16x128xf32>
    %195 = tpu.matmul %194, %193, %cst_82 {dimension_numbers = #tpu.dot_dimension_numbers<[1], [0], [0], [1], [0, 0, 1, 1], [], []>} : vector<16x512xbf16>, vector<512x128xbf16>, vector<16x128xf32> -> vector<16x128xf32>
    %196 = arith.addf %144, %195 : vector<16x128xf32>
    %c0_83 = arith.constant 0 : index
    %c0_84 = arith.constant 0 : index
    %c0_85 = arith.constant 0 : index
    %197 = vector.load %arg14[%c0_83, %c0_84, %c0_85] : memref<2x1x128xf32, #tpu.memory_space<vmem>>, vector<1x1x128xf32>
    %198 = vector.shape_cast %197 : vector<1x1x128xf32> to vector<1x128xf32>
    %199 = vector.broadcast %198 : vector<1x128xf32> to vector<16x128xf32>
    %200 = arith.addf %196, %199 : vector<16x128xf32>
    %c1 = arith.constant 1 : index
    %c0_86 = arith.constant 0 : index
    %c0_87 = arith.constant 0 : index
    %201 = vector.load %arg3[%c1, %c0_86, %c0_87] : memref<2x1x128xf32, #tpu.memory_space<vmem>>, vector<1x1x128xf32>
    %202 = vector.shape_cast %201 : vector<1x1x128xf32> to vector<1x128xf32>
    %c1_88 = arith.constant 1 : index
    %c0_89 = arith.constant 0 : index
    %c0_90 = arith.constant 0 : index
    %203 = vector.load %arg4[%c1_88, %c0_89, %c0_90] : memref<2x1x128xf32, #tpu.memory_space<vmem>>, vector<1x1x128xf32>
    %204 = vector.shape_cast %203 : vector<1x1x128xf32> to vector<1x128xf32>
    %cst_91 = arith.constant dense<0.000000e+00> : vector<16xf32>
    %205 = vector.multi_reduction <add>, %200, %cst_91 [1] : vector<16x128xf32> to vector<16xf32>
    %206 = vector.shape_cast %205 : vector<16xf32> to vector<16x1xf32>
    %cst_92 = arith.constant 1.280000e+02 : f32
    %207 = vector.broadcast %cst_92 : f32 to vector<16x1xf32>
    %208 = arith.divf %206, %207 : vector<16x1xf32>
    %209 = vector.broadcast %208 : vector<16x1xf32> to vector<16x128xf32>
    %210 = arith.subf %200, %209 : vector<16x128xf32>
    %211 = arith.mulf %210, %210 : vector<16x128xf32>
    %cst_93 = arith.constant dense<0.000000e+00> : vector<16xf32>
    %212 = vector.multi_reduction <add>, %211, %cst_93 [1] : vector<16x128xf32> to vector<16xf32>
    %213 = vector.shape_cast %212 : vector<16xf32> to vector<16x1xf32>
    %cst_94 = arith.constant 1.280000e+02 : f32
    %214 = vector.broadcast %cst_94 : f32 to vector<16x1xf32>
    %215 = arith.divf %213, %214 : vector<16x1xf32>
    %216 = vector.broadcast %208 : vector<16x1xf32> to vector<16x128xf32>
    %217 = arith.subf %200, %216 : vector<16x128xf32>
    %cst_95 = arith.constant 9.99999974E-6 : f32
    %218 = vector.broadcast %cst_95 : f32 to vector<16x1xf32>
    %219 = arith.addf %215, %218 : vector<16x1xf32>
    %220 = math.rsqrt %219 : vector<16x1xf32>
    %221 = vector.broadcast %220 : vector<16x1xf32> to vector<16x128xf32>
    %222 = arith.mulf %217, %221 : vector<16x128xf32>
    %223 = vector.broadcast %202 : vector<1x128xf32> to vector<16x128xf32>
    %224 = arith.mulf %222, %223 : vector<16x128xf32>
    %225 = vector.broadcast %204 : vector<1x128xf32> to vector<16x128xf32>
    %226 = arith.addf %224, %225 : vector<16x128xf32>
    %c1_96 = arith.constant 1 : index
    %c0_97 = arith.constant 0 : index
    %c0_98 = arith.constant 0 : index
    %227 = vector.load %arg5[%c1_96, %c0_97, %c0_98] : memref<2x128x384xbf16, #tpu.memory_space<vmem>>, vector<1x128x384xbf16>
    %228 = vector.shape_cast %227 : vector<1x128x384xbf16> to vector<128x384xbf16>
    %229 = arith.truncf %226 : vector<16x128xf32> to vector<16x128xbf16>
    %cst_99 = arith.constant dense<0.000000e+00> : vector<16x384xf32>
    %230 = tpu.matmul %229, %228, %cst_99 {dimension_numbers = #tpu.dot_dimension_numbers<[1], [0], [0], [1], [0, 0, 1, 1], [], []>} : vector<16x128xbf16>, vector<128x384xbf16>, vector<16x384xf32> -> vector<16x384xf32>
    %c1_100 = arith.constant 1 : index
    %c0_101 = arith.constant 0 : index
    %c0_102 = arith.constant 0 : index
    %231 = vector.load %arg6[%c1_100, %c0_101, %c0_102] : memref<2x1x384xf32, #tpu.memory_space<vmem>>, vector<1x1x384xf32>
    %232 = vector.shape_cast %231 : vector<1x1x384xf32> to vector<1x384xf32>
    %233 = vector.broadcast %232 : vector<1x384xf32> to vector<16x384xf32>
    %234 = arith.addf %230, %233 : vector<16x384xf32>
    %235 = vector.extract_strided_slice %234 {offsets = [0, 0], sizes = [16, 32], strides = [1, 1]} : vector<16x384xf32> to vector<16x32xf32>
    %cst_103 = arith.constant 0.176776692 : f32
    %236 = vector.broadcast %cst_103 : f32 to vector<16x32xf32>
    %237 = arith.mulf %235, %236 : vector<16x32xf32>
    %238 = vector.extract_strided_slice %234 {offsets = [0, 128], sizes = [16, 32], strides = [1, 1]} : vector<16x384xf32> to vector<16x32xf32>
    %239 = vector.extract_strided_slice %234 {offsets = [0, 256], sizes = [16, 32], strides = [1, 1]} : vector<16x384xf32> to vector<16x32xf32>
    %240 = arith.truncf %237 : vector<16x32xf32> to vector<16x32xbf16>
    %241 = arith.truncf %238 : vector<16x32xf32> to vector<16x32xbf16>
    %cst_104 = arith.constant dense<0.000000e+00> : vector<16x16xf32>
    %242 = tpu.matmul %240, %241, %cst_104 {dimension_numbers = #tpu.dot_dimension_numbers<[1], [1], [0], [0], [0, 0, 1, 0], [], []>} : vector<16x32xbf16>, vector<16x32xbf16>, vector<16x16xf32> -> vector<16x16xf32>
    %cst_105 = arith.constant -1.000000e+30 : f32
    %243 = vector.broadcast %cst_105 : f32 to vector<16x16xf32>
    %244 = arith.select %4, %242, %243 : vector<16x16xi1>, vector<16x16xf32>
    %cst_106 = arith.constant dense<0xFF800000> : vector<16xf32>
    %245 = vector.multi_reduction <maximumf>, %244, %cst_106 [1] : vector<16x16xf32> to vector<16xf32>
    %246 = vector.shape_cast %245 : vector<16xf32> to vector<16x1xf32>
    %247 = vector.broadcast %246 : vector<16x1xf32> to vector<16x16xf32>
    %248 = arith.subf %244, %247 : vector<16x16xf32>
    %249 = math.exp %248 : vector<16x16xf32>
    %cst_107 = arith.constant dense<0.000000e+00> : vector<16xf32>
    %250 = vector.multi_reduction <add>, %249, %cst_107 [1] : vector<16x16xf32> to vector<16xf32>
    %251 = vector.shape_cast %250 : vector<16xf32> to vector<16x1xf32>
    %252 = tpu.reciprocal %251 {approx = true} : vector<16x1xf32> -> vector<16x1xf32>
    %253 = vector.broadcast %252 : vector<16x1xf32> to vector<16x16xf32>
    %254 = arith.mulf %249, %253 : vector<16x16xf32>
    %255 = arith.truncf %254 : vector<16x16xf32> to vector<16x16xbf16>
    %256 = arith.truncf %239 : vector<16x32xf32> to vector<16x32xbf16>
    %cst_108 = arith.constant dense<0.000000e+00> : vector<16x32xf32>
    %257 = tpu.matmul %255, %256, %cst_108 {dimension_numbers = #tpu.dot_dimension_numbers<[1], [0], [0], [1], [0, 0, 1, 1], [], []>} : vector<16x16xbf16>, vector<16x32xbf16>, vector<16x32xf32> -> vector<16x32xf32>
    %c0_109 = arith.constant 0 : index
    %c0_110 = arith.constant 0 : index
    %258 = vector.load %arg21[%c0_109, %c0_110] : memref<16x128xf32, #tpu.memory_space<vmem>>, vector<16x32xf32>
    tpu.vector_store %arg21[%c0_109, %c0_110], %257 {strides = array<i32>} : memref<16x128xf32, #tpu.memory_space<vmem>>, vector<16x32xf32>,
    %259 = vector.extract_strided_slice %234 {offsets = [0, 32], sizes = [16, 32], strides = [1, 1]} : vector<16x384xf32> to vector<16x32xf32>
    %cst_111 = arith.constant 0.176776692 : f32
    %260 = vector.broadcast %cst_111 : f32 to vector<16x32xf32>
    %261 = arith.mulf %259, %260 : vector<16x32xf32>
    %262 = vector.extract_strided_slice %234 {offsets = [0, 160], sizes = [16, 32], strides = [1, 1]} : vector<16x384xf32> to vector<16x32xf32>
    %263 = vector.extract_strided_slice %234 {offsets = [0, 288], sizes = [16, 32], strides = [1, 1]} : vector<16x384xf32> to vector<16x32xf32>
    %264 = arith.truncf %261 : vector<16x32xf32> to vector<16x32xbf16>
    %265 = arith.truncf %262 : vector<16x32xf32> to vector<16x32xbf16>
    %cst_112 = arith.constant dense<0.000000e+00> : vector<16x16xf32>
    %266 = tpu.matmul %264, %265, %cst_112 {dimension_numbers = #tpu.dot_dimension_numbers<[1], [1], [0], [0], [0, 0, 1, 0], [], []>} : vector<16x32xbf16>, vector<16x32xbf16>, vector<16x16xf32> -> vector<16x16xf32>
    %cst_113 = arith.constant -1.000000e+30 : f32
    %267 = vector.broadcast %cst_113 : f32 to vector<16x16xf32>
    %268 = arith.select %4, %266, %267 : vector<16x16xi1>, vector<16x16xf32>
    %cst_114 = arith.constant dense<0xFF800000> : vector<16xf32>
    %269 = vector.multi_reduction <maximumf>, %268, %cst_114 [1] : vector<16x16xf32> to vector<16xf32>
    %270 = vector.shape_cast %269 : vector<16xf32> to vector<16x1xf32>
    %271 = vector.broadcast %270 : vector<16x1xf32> to vector<16x16xf32>
    %272 = arith.subf %268, %271 : vector<16x16xf32>
    %273 = math.exp %272 : vector<16x16xf32>
    %cst_115 = arith.constant dense<0.000000e+00> : vector<16xf32>
    %274 = vector.multi_reduction <add>, %273, %cst_115 [1] : vector<16x16xf32> to vector<16xf32>
    %275 = vector.shape_cast %274 : vector<16xf32> to vector<16x1xf32>
    %276 = tpu.reciprocal %275 {approx = true} : vector<16x1xf32> -> vector<16x1xf32>
    %277 = vector.broadcast %276 : vector<16x1xf32> to vector<16x16xf32>
    %278 = arith.mulf %273, %277 : vector<16x16xf32>
    %279 = arith.truncf %278 : vector<16x16xf32> to vector<16x16xbf16>
    %280 = arith.truncf %263 : vector<16x32xf32> to vector<16x32xbf16>
    %cst_116 = arith.constant dense<0.000000e+00> : vector<16x32xf32>
    %281 = tpu.matmul %279, %280, %cst_116 {dimension_numbers = #tpu.dot_dimension_numbers<[1], [0], [0], [1], [0, 0, 1, 1], [], []>} : vector<16x16xbf16>, vector<16x32xbf16>, vector<16x32xf32> -> vector<16x32xf32>
    %c0_117 = arith.constant 0 : index
    %c32_118 = arith.constant 32 : index
    %282 = vector.load %arg21[%c0_117, %c32_118] : memref<16x128xf32, #tpu.memory_space<vmem>>, vector<16x32xf32>
    tpu.vector_store %arg21[%c0_117, %c32_118], %281 {strides = array<i32>} : memref<16x128xf32, #tpu.memory_space<vmem>>, vector<16x32xf32>,
    %283 = vector.extract_strided_slice %234 {offsets = [0, 64], sizes = [16, 32], strides = [1, 1]} : vector<16x384xf32> to vector<16x32xf32>
    %cst_119 = arith.constant 0.176776692 : f32
    %284 = vector.broadcast %cst_119 : f32 to vector<16x32xf32>
    %285 = arith.mulf %283, %284 : vector<16x32xf32>
    %286 = vector.extract_strided_slice %234 {offsets = [0, 192], sizes = [16, 32], strides = [1, 1]} : vector<16x384xf32> to vector<16x32xf32>
    %287 = vector.extract_strided_slice %234 {offsets = [0, 320], sizes = [16, 32], strides = [1, 1]} : vector<16x384xf32> to vector<16x32xf32>
    %288 = arith.truncf %285 : vector<16x32xf32> to vector<16x32xbf16>
    %289 = arith.truncf %286 : vector<16x32xf32> to vector<16x32xbf16>
    %cst_120 = arith.constant dense<0.000000e+00> : vector<16x16xf32>
    %290 = tpu.matmul %288, %289, %cst_120 {dimension_numbers = #tpu.dot_dimension_numbers<[1], [1], [0], [0], [0, 0, 1, 0], [], []>} : vector<16x32xbf16>, vector<16x32xbf16>, vector<16x16xf32> -> vector<16x16xf32>
    %cst_121 = arith.constant -1.000000e+30 : f32
    %291 = vector.broadcast %cst_121 : f32 to vector<16x16xf32>
    %292 = arith.select %4, %290, %291 : vector<16x16xi1>, vector<16x16xf32>
    %cst_122 = arith.constant dense<0xFF800000> : vector<16xf32>
    %293 = vector.multi_reduction <maximumf>, %292, %cst_122 [1] : vector<16x16xf32> to vector<16xf32>
    %294 = vector.shape_cast %293 : vector<16xf32> to vector<16x1xf32>
    %295 = vector.broadcast %294 : vector<16x1xf32> to vector<16x16xf32>
    %296 = arith.subf %292, %295 : vector<16x16xf32>
    %297 = math.exp %296 : vector<16x16xf32>
    %cst_123 = arith.constant dense<0.000000e+00> : vector<16xf32>
    %298 = vector.multi_reduction <add>, %297, %cst_123 [1] : vector<16x16xf32> to vector<16xf32>
    %299 = vector.shape_cast %298 : vector<16xf32> to vector<16x1xf32>
    %300 = tpu.reciprocal %299 {approx = true} : vector<16x1xf32> -> vector<16x1xf32>
    %301 = vector.broadcast %300 : vector<16x1xf32> to vector<16x16xf32>
    %302 = arith.mulf %297, %301 : vector<16x16xf32>
    %303 = arith.truncf %302 : vector<16x16xf32> to vector<16x16xbf16>
    %304 = arith.truncf %287 : vector<16x32xf32> to vector<16x32xbf16>
    %cst_124 = arith.constant dense<0.000000e+00> : vector<16x32xf32>
    %305 = tpu.matmul %303, %304, %cst_124 {dimension_numbers = #tpu.dot_dimension_numbers<[1], [0], [0], [1], [0, 0, 1, 1], [], []>} : vector<16x16xbf16>, vector<16x32xbf16>, vector<16x32xf32> -> vector<16x32xf32>
    %c0_125 = arith.constant 0 : index
    %c64_126 = arith.constant 64 : index
    %306 = vector.load %arg21[%c0_125, %c64_126] : memref<16x128xf32, #tpu.memory_space<vmem>>, vector<16x32xf32>
    tpu.vector_store %arg21[%c0_125, %c64_126], %305 {strides = array<i32>} : memref<16x128xf32, #tpu.memory_space<vmem>>, vector<16x32xf32>,
    %307 = vector.extract_strided_slice %234 {offsets = [0, 96], sizes = [16, 32], strides = [1, 1]} : vector<16x384xf32> to vector<16x32xf32>
    %cst_127 = arith.constant 0.176776692 : f32
    %308 = vector.broadcast %cst_127 : f32 to vector<16x32xf32>
    %309 = arith.mulf %307, %308 : vector<16x32xf32>
    %310 = vector.extract_strided_slice %234 {offsets = [0, 224], sizes = [16, 32], strides = [1, 1]} : vector<16x384xf32> to vector<16x32xf32>
    %311 = vector.extract_strided_slice %234 {offsets = [0, 352], sizes = [16, 32], strides = [1, 1]} : vector<16x384xf32> to vector<16x32xf32>
    %312 = arith.truncf %309 : vector<16x32xf32> to vector<16x32xbf16>
    %313 = arith.truncf %310 : vector<16x32xf32> to vector<16x32xbf16>
    %cst_128 = arith.constant dense<0.000000e+00> : vector<16x16xf32>
    %314 = tpu.matmul %312, %313, %cst_128 {dimension_numbers = #tpu.dot_dimension_numbers<[1], [1], [0], [0], [0, 0, 1, 0], [], []>} : vector<16x32xbf16>, vector<16x32xbf16>, vector<16x16xf32> -> vector<16x16xf32>
    %cst_129 = arith.constant -1.000000e+30 : f32
    %315 = vector.broadcast %cst_129 : f32 to vector<16x16xf32>
    %316 = arith.select %4, %314, %315 : vector<16x16xi1>, vector<16x16xf32>
    %cst_130 = arith.constant dense<0xFF800000> : vector<16xf32>
    %317 = vector.multi_reduction <maximumf>, %316, %cst_130 [1] : vector<16x16xf32> to vector<16xf32>
    %318 = vector.shape_cast %317 : vector<16xf32> to vector<16x1xf32>
    %319 = vector.broadcast %318 : vector<16x1xf32> to vector<16x16xf32>
    %320 = arith.subf %316, %319 : vector<16x16xf32>
    %321 = math.exp %320 : vector<16x16xf32>
    %cst_131 = arith.constant dense<0.000000e+00> : vector<16xf32>
    %322 = vector.multi_reduction <add>, %321, %cst_131 [1] : vector<16x16xf32> to vector<16xf32>
    %323 = vector.shape_cast %322 : vector<16xf32> to vector<16x1xf32>
    %324 = tpu.reciprocal %323 {approx = true} : vector<16x1xf32> -> vector<16x1xf32>
    %325 = vector.broadcast %324 : vector<16x1xf32> to vector<16x16xf32>
    %326 = arith.mulf %321, %325 : vector<16x16xf32>
    %327 = arith.truncf %326 : vector<16x16xf32> to vector<16x16xbf16>
    %328 = arith.truncf %311 : vector<16x32xf32> to vector<16x32xbf16>
    %cst_132 = arith.constant dense<0.000000e+00> : vector<16x32xf32>
    %329 = tpu.matmul %327, %328, %cst_132 {dimension_numbers = #tpu.dot_dimension_numbers<[1], [0], [0], [1], [0, 0, 1, 1], [], []>} : vector<16x16xbf16>, vector<16x32xbf16>, vector<16x32xf32> -> vector<16x32xf32>
    %c0_133 = arith.constant 0 : index
    %c96_134 = arith.constant 96 : index
    %330 = vector.load %arg21[%c0_133, %c96_134] : memref<16x128xf32, #tpu.memory_space<vmem>>, vector<16x32xf32>
    tpu.vector_store %arg21[%c0_133, %c96_134], %329 {strides = array<i32>} : memref<16x128xf32, #tpu.memory_space<vmem>>, vector<16x32xf32>,
    %c0_135 = arith.constant 0 : index
    %c0_136 = arith.constant 0 : index
    %331 = vector.load %arg21[%c0_135, %c0_136] : memref<16x128xf32, #tpu.memory_space<vmem>>, vector<16x128xf32>
    %c1_137 = arith.constant 1 : index
    %c0_138 = arith.constant 0 : index
    %c0_139 = arith.constant 0 : index
    %332 = vector.load %arg7[%c1_137, %c0_138, %c0_139] : memref<2x128x128xbf16, #tpu.memory_space<vmem>>, vector<1x128x128xbf16>
    %333 = vector.shape_cast %332 : vector<1x128x128xbf16> to vector<128x128xbf16>
    %334 = arith.truncf %331 : vector<16x128xf32> to vector<16x128xbf16>
    %cst_140 = arith.constant dense<0.000000e+00> : vector<16x128xf32>
    %335 = tpu.matmul %334, %333, %cst_140 {dimension_numbers = #tpu.dot_dimension_numbers<[1], [0], [0], [1], [0, 0, 1, 1], [], []>} : vector<16x128xbf16>, vector<128x128xbf16>, vector<16x128xf32> -> vector<16x128xf32>
    %336 = arith.addf %200, %335 : vector<16x128xf32>
    %c1_141 = arith.constant 1 : index
    %c0_142 = arith.constant 0 : index
    %c0_143 = arith.constant 0 : index
    %337 = vector.load %arg8[%c1_141, %c0_142, %c0_143] : memref<2x1x128xf32, #tpu.memory_space<vmem>>, vector<1x1x128xf32>
    %338 = vector.shape_cast %337 : vector<1x1x128xf32> to vector<1x128xf32>
    %339 = vector.broadcast %338 : vector<1x128xf32> to vector<16x128xf32>
    %340 = arith.addf %336, %339 : vector<16x128xf32>
    %c1_144 = arith.constant 1 : index
    %c0_145 = arith.constant 0 : index
    %c0_146 = arith.constant 0 : index
    %341 = vector.load %arg9[%c1_144, %c0_145, %c0_146] : memref<2x1x128xf32, #tpu.memory_space<vmem>>, vector<1x1x128xf32>
    %342 = vector.shape_cast %341 : vector<1x1x128xf32> to vector<1x128xf32>
    %c1_147 = arith.constant 1 : index
    %c0_148 = arith.constant 0 : index
    %c0_149 = arith.constant 0 : index
    %343 = vector.load %arg10[%c1_147, %c0_148, %c0_149] : memref<2x1x128xf32, #tpu.memory_space<vmem>>, vector<1x1x128xf32>
    %344 = vector.shape_cast %343 : vector<1x1x128xf32> to vector<1x128xf32>
    %cst_150 = arith.constant dense<0.000000e+00> : vector<16xf32>
    %345 = vector.multi_reduction <add>, %340, %cst_150 [1] : vector<16x128xf32> to vector<16xf32>
    %346 = vector.shape_cast %345 : vector<16xf32> to vector<16x1xf32>
    %cst_151 = arith.constant 1.280000e+02 : f32
    %347 = vector.broadcast %cst_151 : f32 to vector<16x1xf32>
    %348 = arith.divf %346, %347 : vector<16x1xf32>
    %349 = vector.broadcast %348 : vector<16x1xf32> to vector<16x128xf32>
    %350 = arith.subf %340, %349 : vector<16x128xf32>
    %351 = arith.mulf %350, %350 : vector<16x128xf32>
    %cst_152 = arith.constant dense<0.000000e+00> : vector<16xf32>
    %352 = vector.multi_reduction <add>, %351, %cst_152 [1] : vector<16x128xf32> to vector<16xf32>
    %353 = vector.shape_cast %352 : vector<16xf32> to vector<16x1xf32>
    %cst_153 = arith.constant 1.280000e+02 : f32
    %354 = vector.broadcast %cst_153 : f32 to vector<16x1xf32>
    %355 = arith.divf %353, %354 : vector<16x1xf32>
    %356 = vector.broadcast %348 : vector<16x1xf32> to vector<16x128xf32>
    %357 = arith.subf %340, %356 : vector<16x128xf32>
    %cst_154 = arith.constant 9.99999974E-6 : f32
    %358 = vector.broadcast %cst_154 : f32 to vector<16x1xf32>
    %359 = arith.addf %355, %358 : vector<16x1xf32>
    %360 = math.rsqrt %359 : vector<16x1xf32>
    %361 = vector.broadcast %360 : vector<16x1xf32> to vector<16x128xf32>
    %362 = arith.mulf %357, %361 : vector<16x128xf32>
    %363 = vector.broadcast %342 : vector<1x128xf32> to vector<16x128xf32>
    %364 = arith.mulf %362, %363 : vector<16x128xf32>
    %365 = vector.broadcast %344 : vector<1x128xf32> to vector<16x128xf32>
    %366 = arith.addf %364, %365 : vector<16x128xf32>
    %c1_155 = arith.constant 1 : index
    %c0_156 = arith.constant 0 : index
    %c0_157 = arith.constant 0 : index
    %367 = vector.load %arg11[%c1_155, %c0_156, %c0_157] : memref<2x128x512xbf16, #tpu.memory_space<vmem>>, vector<1x128x512xbf16>
    %368 = vector.shape_cast %367 : vector<1x128x512xbf16> to vector<128x512xbf16>
    %369 = arith.truncf %366 : vector<16x128xf32> to vector<16x128xbf16>
    %cst_158 = arith.constant dense<0.000000e+00> : vector<16x512xf32>
    %370 = tpu.matmul %369, %368, %cst_158 {dimension_numbers = #tpu.dot_dimension_numbers<[1], [0], [0], [1], [0, 0, 1, 1], [], []>} : vector<16x128xbf16>, vector<128x512xbf16>, vector<16x512xf32> -> vector<16x512xf32>
    %c1_159 = arith.constant 1 : index
    %c0_160 = arith.constant 0 : index
    %c0_161 = arith.constant 0 : index
    %371 = vector.load %arg12[%c1_159, %c0_160, %c0_161] : memref<2x1x512xf32, #tpu.memory_space<vmem>>, vector<1x1x512xf32>
    %372 = vector.shape_cast %371 : vector<1x1x512xf32> to vector<1x512xf32>
    %373 = vector.broadcast %372 : vector<1x512xf32> to vector<16x512xf32>
    %374 = arith.addf %370, %373 : vector<16x512xf32>
    %375 = arith.mulf %374, %374 : vector<16x512xf32>
    %376 = arith.mulf %374, %375 : vector<16x512xf32>
    %cst_162 = arith.constant 4.471500e-02 : f32
    %377 = vector.broadcast %cst_162 : f32 to vector<16x512xf32>
    %378 = arith.mulf %377, %376 : vector<16x512xf32>
    %379 = arith.addf %374, %378 : vector<16x512xf32>
    %cst_163 = arith.constant 0.797884583 : f32
    %380 = vector.broadcast %cst_163 : f32 to vector<16x512xf32>
    %381 = arith.mulf %380, %379 : vector<16x512xf32>
    %382 = math.tanh %381 : vector<16x512xf32>
    %cst_164 = arith.constant 1.000000e+00 : f32
    %383 = vector.broadcast %cst_164 : f32 to vector<16x512xf32>
    %384 = arith.addf %383, %382 : vector<16x512xf32>
    %cst_165 = arith.constant 5.000000e-01 : f32
    %385 = vector.broadcast %cst_165 : f32 to vector<16x512xf32>
    %386 = arith.mulf %385, %384 : vector<16x512xf32>
    %387 = arith.mulf %374, %386 : vector<16x512xf32>
    %c1_166 = arith.constant 1 : index
    %c0_167 = arith.constant 0 : index
    %c0_168 = arith.constant 0 : index
    %388 = vector.load %arg13[%c1_166, %c0_167, %c0_168] : memref<2x512x128xbf16, #tpu.memory_space<vmem>>, vector<1x512x128xbf16>
    %389 = vector.shape_cast %388 : vector<1x512x128xbf16> to vector<512x128xbf16>
    %390 = arith.truncf %387 : vector<16x512xf32> to vector<16x512xbf16>
    %cst_169 = arith.constant dense<0.000000e+00> : vector<16x128xf32>
    %391 = tpu.matmul %390, %389, %cst_169 {dimension_numbers = #tpu.dot_dimension_numbers<[1], [0], [0], [1], [0, 0, 1, 1], [], []>} : vector<16x512xbf16>, vector<512x128xbf16>, vector<16x128xf32> -> vector<16x128xf32>
    %392 = arith.addf %340, %391 : vector<16x128xf32>
    %c1_170 = arith.constant 1 : index
    %c0_171 = arith.constant 0 : index
    %c0_172 = arith.constant 0 : index
    %393 = vector.load %arg14[%c1_170, %c0_171, %c0_172] : memref<2x1x128xf32, #tpu.memory_space<vmem>>, vector<1x1x128xf32>
    %394 = vector.shape_cast %393 : vector<1x1x128xf32> to vector<1x128xf32>
    %395 = vector.broadcast %394 : vector<1x128xf32> to vector<16x128xf32>
    %396 = arith.addf %392, %395 : vector<16x128xf32>
    %c0_173 = arith.constant 0 : index
    %c0_174 = arith.constant 0 : index
    %397 = vector.load %arg15[%c0_173, %c0_174] : memref<1x128xf32, #tpu.memory_space<vmem>>, vector<1x128xf32>
    %c0_175 = arith.constant 0 : index
    %c0_176 = arith.constant 0 : index
    %398 = vector.load %arg16[%c0_175, %c0_176] : memref<1x128xf32, #tpu.memory_space<vmem>>, vector<1x128xf32>
    %cst_177 = arith.constant dense<0.000000e+00> : vector<16xf32>
    %399 = vector.multi_reduction <add>, %396, %cst_177 [1] : vector<16x128xf32> to vector<16xf32>
    %400 = vector.shape_cast %399 : vector<16xf32> to vector<16x1xf32>
    %cst_178 = arith.constant 1.280000e+02 : f32
    %401 = vector.broadcast %cst_178 : f32 to vector<16x1xf32>
    %402 = arith.divf %400, %401 : vector<16x1xf32>
    %403 = vector.broadcast %402 : vector<16x1xf32> to vector<16x128xf32>
    %404 = arith.subf %396, %403 : vector<16x128xf32>
    %405 = arith.mulf %404, %404 : vector<16x128xf32>
    %cst_179 = arith.constant dense<0.000000e+00> : vector<16xf32>
    %406 = vector.multi_reduction <add>, %405, %cst_179 [1] : vector<16x128xf32> to vector<16xf32>
    %407 = vector.shape_cast %406 : vector<16xf32> to vector<16x1xf32>
    %cst_180 = arith.constant 1.280000e+02 : f32
    %408 = vector.broadcast %cst_180 : f32 to vector<16x1xf32>
    %409 = arith.divf %407, %408 : vector<16x1xf32>
    %410 = vector.broadcast %402 : vector<16x1xf32> to vector<16x128xf32>
    %411 = arith.subf %396, %410 : vector<16x128xf32>
    %cst_181 = arith.constant 9.99999974E-6 : f32
    %412 = vector.broadcast %cst_181 : f32 to vector<16x1xf32>
    %413 = arith.addf %409, %412 : vector<16x1xf32>
    %414 = math.rsqrt %413 : vector<16x1xf32>
    %415 = vector.broadcast %414 : vector<16x1xf32> to vector<16x128xf32>
    %416 = arith.mulf %411, %415 : vector<16x128xf32>
    %417 = vector.broadcast %397 : vector<1x128xf32> to vector<16x128xf32>
    %418 = arith.mulf %416, %417 : vector<16x128xf32>
    %419 = vector.broadcast %398 : vector<1x128xf32> to vector<16x128xf32>
    %420 = arith.addf %418, %419 : vector<16x128xf32>
    %c0_182 = arith.constant 0 : index
    %c0_183 = arith.constant 0 : index
    %421 = vector.load %arg17[%c0_182, %c0_183] : memref<128x256xbf16, #tpu.memory_space<vmem>>, vector<128x256xbf16>
    %422 = arith.truncf %420 : vector<16x128xf32> to vector<16x128xbf16>
    %cst_184 = arith.constant dense<0.000000e+00> : vector<16x256xf32>
    %423 = tpu.matmul %422, %421, %cst_184 {dimension_numbers = #tpu.dot_dimension_numbers<[1], [0], [0], [1], [0, 0, 1, 1], [], []>} : vector<16x128xbf16>, vector<128x256xbf16>, vector<16x256xf32> -> vector<16x256xf32>
    %c0_185 = arith.constant 0 : index
    %c0_186 = arith.constant 0 : index
    %424 = vector.load %arg18[%c0_185, %c0_186] : memref<1x256xf32, #tpu.memory_space<vmem>>, vector<1x256xf32>
    %425 = vector.broadcast %424 : vector<1x256xf32> to vector<16x256xf32>
    %426 = arith.addf %423, %425 : vector<16x256xf32>
    %c0_187 = arith.constant 0 : index
    %c0_188 = arith.constant 0 : index
    %c0_189 = arith.constant 0 : index
    %427 = vector.load %arg19[%c0_187, %c0_188, %c0_189] : memref<1x16x256xf32, #tpu.memory_space<vmem>>, vector<1x16x256xf32>
    %428 = vector.shape_cast %427 : vector<1x16x256xf32> to vector<16x256xf32>
    %429 = vector.shape_cast %426 : vector<16x256xf32> to vector<1x16x256xf32>
    tpu.vector_store %arg19[%c0_187, %c0_188, %c0_189], %429 {strides = array<i32>} : memref<1x16x256xf32, #tpu.memory_space<vmem>>, vector<1x16x256xf32>,
    %c0_190 = arith.constant 0 : index
    %c0_191 = arith.constant 0 : index
    %c0_192 = arith.constant 0 : index
    %430 = vector.load %arg2[%c0_190, %c0_191, %c0_192] : memref<1x16x1xi32, #tpu.memory_space<vmem>>, vector<1x16x1xi32>
    %431 = vector.shape_cast %430 : vector<1x16x1xi32> to vector<16x1xi32>
    %cst_193 = arith.constant dense<0xFF800000> : vector<16xf32>
    %432 = vector.multi_reduction <maximumf>, %426, %cst_193 [1] : vector<16x256xf32> to vector<16xf32>
    %433 = vector.shape_cast %432 : vector<16xf32> to vector<16x1xf32>
    %434 = vector.broadcast %433 : vector<16x1xf32> to vector<16x256xf32>
    %435 = arith.subf %426, %434 : vector<16x256xf32>
    %436 = math.exp %435 : vector<16x256xf32>
    %cst_194 = arith.constant dense<0.000000e+00> : vector<16xf32>
    %437 = vector.multi_reduction <add>, %436, %cst_194 [1] : vector<16x256xf32> to vector<16xf32>
    %438 = vector.shape_cast %437 : vector<16xf32> to vector<16x1xf32>
    %439 = math.log %438 : vector<16x1xf32>
    %440 = arith.addf %439, %433 : vector<16x1xf32>
    %441 = tpu.iota {dimensions = array<i32: 1>} : vector<16x256xi32>
    %442 = vector.broadcast %431 : vector<16x1xi32> to vector<16x256xi32>
    %443 = arith.cmpi eq, %441, %442 : vector<16x256xi32>
    %444 = arith.extui %443 : vector<16x256xi1> to vector<16x256xi32>
    %445 = arith.sitofp %444 : vector<16x256xi32> to vector<16x256xf32>
    %446 = arith.mulf %426, %445 : vector<16x256xf32>
    %cst_195 = arith.constant dense<0.000000e+00> : vector<16xf32>
    %447 = vector.multi_reduction <add>, %446, %cst_195 [1] : vector<16x256xf32> to vector<16xf32>
    %448 = vector.shape_cast %447 : vector<16xf32> to vector<16x1xf32>
    %c-100_i32 = arith.constant -100 : i32
    %449 = vector.broadcast %c-100_i32 : i32 to vector<16x1xi32>
    %450 = arith.cmpi ne, %431, %449 : vector<16x1xi32>
    %451 = arith.extui %450 : vector<16x1xi1> to vector<16x1xi32>
    %452 = arith.sitofp %451 : vector<16x1xi32> to vector<16x1xf32>
    %453 = arith.subf %440, %448 : vector<16x1xf32>
    %454 = arith.mulf %453, %452 : vector<16x1xf32>
    %455 = vector.broadcast %433 : vector<16x1xf32> to vector<16x256xf32>
    %456 = arith.cmpf oeq, %426, %455 : vector<16x256xf32>
    %c256_i32 = arith.constant 256 : i32
    %457 = vector.broadcast %c256_i32 : i32 to vector<16x256xi32>
    %458 = arith.select %456, %441, %457 : vector<16x256xi1>, vector<16x256xi32>
    %cst_196 = arith.constant dense<2147483647> : vector<16xi32>
    %459 = vector.multi_reduction <minsi>, %458, %cst_196 [1] : vector<16x256xi32> to vector<16xi32>
    %460 = vector.shape_cast %459 : vector<16xi32> to vector<16x1xi32>
    %461 = arith.cmpi eq, %460, %431 : vector<16x1xi32>
    %462 = arith.extui %461 : vector<16x1xi1> to vector<16x1xi32>
    %463 = arith.sitofp %462 : vector<16x1xi32> to vector<16x1xf32>
    %464 = arith.mulf %463, %452 : vector<16x1xf32>
    %465 = tpu.iota {dimensions = array<i32: 1>} : vector<1x128xi32>
    %c0_i32 = arith.constant 0 : i32
    %466 = vector.broadcast %c0_i32 : i32 to vector<1x128xi32>
    %467 = arith.cmpi eq, %465, %466 : vector<1x128xi32>
    %468 = vector.shape_cast %454 : vector<16x1xf32> to vector<1x16x1xf32>
    %cst_197 = arith.constant dense<0.000000e+00> : vector<1xf32>
    %469 = vector.multi_reduction <add>, %468, %cst_197 [1, 2] : vector<1x16x1xf32> to vector<1xf32>
    %470 = vector.shape_cast %469 : vector<1xf32> to vector<1x1x1xf32>
    %471 = vector.extract %470[0, 0, 0] : f32 from vector<1x1x1xf32>
    %cst_198 = arith.constant 0.000000e+00 : f32
    %472 = vector.broadcast %471 : f32 to vector<1x128xf32>
    %473 = vector.broadcast %cst_198 : f32 to vector<1x128xf32>
    %474 = arith.select %467, %472, %473 : vector<1x128xi1>, vector<1x128xf32>
    %c1_i32 = arith.constant 1 : i32
    %475 = vector.broadcast %c1_i32 : i32 to vector<1x128xi32>
    %476 = arith.cmpi eq, %465, %475 : vector<1x128xi32>
    %477 = vector.shape_cast %464 : vector<16x1xf32> to vector<1x16x1xf32>
    %cst_199 = arith.constant dense<0.000000e+00> : vector<1xf32>
    %478 = vector.multi_reduction <add>, %477, %cst_199 [1, 2] : vector<1x16x1xf32> to vector<1xf32>
    %479 = vector.shape_cast %478 : vector<1xf32> to vector<1x1x1xf32>
    %480 = vector.extract %479[0, 0, 0] : f32 from vector<1x1x1xf32>
    %cst_200 = arith.constant 0.000000e+00 : f32
    %481 = vector.broadcast %480 : f32 to vector<1x128xf32>
    %482 = vector.broadcast %cst_200 : f32 to vector<1x128xf32>
    %483 = arith.select %476, %481, %482 : vector<1x128xi1>, vector<1x128xf32>
    %484 = arith.addf %474, %483 : vector<1x128xf32>
    %c2_i32 = arith.constant 2 : i32
    %485 = vector.broadcast %c2_i32 : i32 to vector<1x128xi32>
    %486 = arith.cmpi eq, %465, %485 : vector<1x128xi32>
    %487 = vector.shape_cast %452 : vector<16x1xf32> to vector<1x16x1xf32>
    %cst_201 = arith.constant dense<0.000000e+00> : vector<1xf32>
    %488 = vector.multi_reduction <add>, %487, %cst_201 [1, 2] : vector<1x16x1xf32> to vector<1xf32>
    %489 = vector.shape_cast %488 : vector<1xf32> to vector<1x1x1xf32>
    %490 = vector.extract %489[0, 0, 0] : f32 from vector<1x1x1xf32>
    %cst_202 = arith.constant 0.000000e+00 : f32
    %491 = vector.broadcast %490 : f32 to vector<1x128xf32>
    %492 = vector.broadcast %cst_202 : f32 to vector<1x128xf32>
    %493 = arith.select %486, %491, %492 : vector<1x128xi1>, vector<1x128xf32>
    %494 = arith.addf %484, %493 : vector<1x128xf32>
    %c0_203 = arith.constant 0 : index
    %c0_204 = arith.constant 0 : index
    %c0_205 = arith.constant 0 : index
    %495 = vector.load %arg20[%c0_203, %c0_204, %c0_205] : memref<1x1x128xf32, #tpu.memory_space<vmem>>, vector<1x1x128xf32>
    %496 = vector.shape_cast %495 : vector<1x1x128xf32> to vector<1x128xf32>
    %497 = vector.shape_cast %494 : vector<1x128xf32> to vector<1x1x128xf32>
    tpu.vector_store %arg20[%c0_203, %c0_204, %c0_205], %497 {strides = array<i32>} : memref<1x1x128xf32, #tpu.memory_space<vmem>>, vector<1x1x128xf32>,
    return
  }
  func.func @transform_0(%arg0: i32) -> (i32, i32, i32) {
    %c0_i32 = arith.constant 0 : i32
    %c0_i32_0 = arith.constant 0 : i32
    %c0_i32_1 = arith.constant 0 : i32
    return %arg0, %c0_i32, %c0_i32_0 : i32, i32, i32
  }
  func.func @transform_1(%arg0: i32) -> (i32, i32, i32) {
    %c0_i32 = arith.constant 0 : i32
    %c0_i32_0 = arith.constant 0 : i32
    %c0_i32_1 = arith.constant 0 : i32
    return %arg0, %c0_i32, %c0_i32_0 : i32, i32, i32
  }
  func.func @transform_2(%arg0: i32) -> (i32, i32, i32) {
    %c0_i32 = arith.constant 0 : i32
    %c0_i32_0 = arith.constant 0 : i32
    %c0_i32_1 = arith.constant 0 : i32
    %c0_i32_2 = arith.constant 0 : i32
    return %c0_i32, %c0_i32_0, %c0_i32_1 : i32, i32, i32
  }
  func.func @transform_3(%arg0: i32) -> (i32, i32, i32) {
    %c0_i32 = arith.constant 0 : i32
    %c0_i32_0 = arith.constant 0 : i32
    %c0_i32_1 = arith.constant 0 : i32
    %c0_i32_2 = arith.constant 0 : i32
    return %c0_i32, %c0_i32_0, %c0_i32_1 : i32, i32, i32
  }
  func.func @transform_4(%arg0: i32) -> (i32, i32, i32) {
    %c0_i32 = arith.constant 0 : i32
    %c0_i32_0 = arith.constant 0 : i32
    %c0_i32_1 = arith.constant 0 : i32
    %c0_i32_2 = arith.constant 0 : i32
    return %c0_i32, %c0_i32_0, %c0_i32_1 : i32, i32, i32
  }
  func.func @transform_5(%arg0: i32) -> (i32, i32, i32) {
    %c0_i32 = arith.constant 0 : i32
    %c0_i32_0 = arith.constant 0 : i32
    %c0_i32_1 = arith.constant 0 : i32
    %c0_i32_2 = arith.constant 0 : i32
    return %c0_i32, %c0_i32_0, %c0_i32_1 : i32, i32, i32
  }
  func.func @transform_6(%arg0: i32) -> (i32, i32, i32) {
    %c0_i32 = arith.constant 0 : i32
    %c0_i32_0 = arith.constant 0 : i32
    %c0_i32_1 = arith.constant 0 : i32
    %c0_i32_2 = arith.constant 0 : i32
    return %c0_i32, %c0_i32_0, %c0_i32_1 : i32, i32, i32
  }
  func.func @transform_7(%arg0: i32) -> (i32, i32, i32) {
    %c0_i32 = arith.constant 0 : i32
    %c0_i32_0 = arith.constant 0 : i32
    %c0_i32_1 = arith.constant 0 : i32
    %c0_i32_2 = arith.constant 0 : i32
    return %c0_i32, %c0_i32_0, %c0_i32_1 : i32, i32, i32
  }
  func.func @transform_8(%arg0: i32) -> (i32, i32, i32) {
    %c0_i32 = arith.constant 0 : i32
    %c0_i32_0 = arith.constant 0 : i32
    %c0_i32_1 = arith.constant 0 : i32
    %c0_i32_2 = arith.constant 0 : i32
    return %c0_i32, %c0_i32_0, %c0_i32_1 : i32, i32, i32
  }
  func.func @transform_9(%arg0: i32) -> (i32, i32, i32) {
    %c0_i32 = arith.constant 0 : i32
    %c0_i32_0 = arith.constant 0 : i32
    %c0_i32_1 = arith.constant 0 : i32
    %c0_i32_2 = arith.constant 0 : i32
    return %c0_i32, %c0_i32_0, %c0_i32_1 : i32, i32, i32
  }
  func.func @transform_10(%arg0: i32) -> (i32, i32, i32) {
    %c0_i32 = arith.constant 0 : i32
    %c0_i32_0 = arith.constant 0 : i32
    %c0_i32_1 = arith.constant 0 : i32
    %c0_i32_2 = arith.constant 0 : i32
    return %c0_i32, %c0_i32_0, %c0_i32_1 : i32, i32, i32
  }
  func.func @transform_11(%arg0: i32) -> (i32, i32, i32) {
    %c0_i32 = arith.constant 0 : i32
    %c0_i32_0 = arith.constant 0 : i32
    %c0_i32_1 = arith.constant 0 : i32
    %c0_i32_2 = arith.constant 0 : i32
    return %c0_i32, %c0_i32_0, %c0_i32_1 : i32, i32, i32
  }
  func.func @transform_12(%arg0: i32) -> (i32, i32, i32) {
    %c0_i32 = arith.constant 0 : i32
    %c0_i32_0 = arith.constant 0 : i32
    %c0_i32_1 = arith.constant 0 : i32
    %c0_i32_2 = arith.constant 0 : i32
    return %c0_i32, %c0_i32_0, %c0_i32_1 : i32, i32, i32
  }
  func.func @transform_13(%arg0: i32) -> (i32, i32, i32) {
    %c0_i32 = arith.constant 0 : i32
    %c0_i32_0 = arith.constant 0 : i32
    %c0_i32_1 = arith.constant 0 : i32
    %c0_i32_2 = arith.constant 0 : i32
    return %c0_i32, %c0_i32_0, %c0_i32_1 : i32, i32, i32
  }
  func.func @transform_14(%arg0: i32) -> (i32, i32) {
    %c0_i32 = arith.constant 0 : i32
    %c0_i32_0 = arith.constant 0 : i32
    %c0_i32_1 = arith.constant 0 : i32
    return %c0_i32, %c0_i32_0 : i32, i32
  }
  func.func @transform_15(%arg0: i32) -> (i32, i32) {
    %c0_i32 = arith.constant 0 : i32
    %c0_i32_0 = arith.constant 0 : i32
    %c0_i32_1 = arith.constant 0 : i32
    return %c0_i32, %c0_i32_0 : i32, i32
  }
  func.func @transform_16(%arg0: i32) -> (i32, i32) {
    %c0_i32 = arith.constant 0 : i32
    %c0_i32_0 = arith.constant 0 : i32
    %c0_i32_1 = arith.constant 0 : i32
    return %c0_i32, %c0_i32_0 : i32, i32
  }
  func.func @transform_17(%arg0: i32) -> (i32, i32) {
    %c0_i32 = arith.constant 0 : i32
    %c0_i32_0 = arith.constant 0 : i32
    %c0_i32_1 = arith.constant 0 : i32
    return %c0_i32, %c0_i32_0 : i32, i32
  }
  func.func @transform_18(%arg0: i32) -> (i32, i32, i32) {
    %c0_i32 = arith.constant 0 : i32
    %c0_i32_0 = arith.constant 0 : i32
    %c0_i32_1 = arith.constant 0 : i32
    return %arg0, %c0_i32, %c0_i32_0 : i32, i32, i32
  }
  func.func @transform_19(%arg0: i32) -> (i32, i32, i32) {
    %c0_i32 = arith.constant 0 : i32
    %c0_i32_0 = arith.constant 0 : i32
    %c0_i32_1 = arith.constant 0 : i32
    return %arg0, %c0_i32, %c0_i32_0 : i32, i32, i32
  }
}

</mosaic_0001>

<llo_original>
// kernel: tpu_custom_call.1
$region0: #{tpu_custom_call.1}
  #allocation0 [shape = 'u32[]', space=smem, size = 0x4, offset = 0x4, fixed_abs, tag = 'smem constant byte address 0x4 - core index']
  #allocation1 [shape = 'u32[72,128]{1,0:T(1,128)}', space=vmem, size = 0x9000, scoped, tag = 'internal scratch']
  #allocation2 [shape = 'f32[16,128]{1,0:T(8,128)}', space=vmem, size = 0x2000, scoped, tag = 'scratch operand']
  %s0 = inlined_call_operand.vmem [shape: f32[2,16,128], index: 0, kind: input, shape index: {}]
  %s1 = inlined_call_operand.vmem [shape: s32[2,16,1], index: 1, kind: input, shape index: {}]
  %s2 = inlined_call_operand.hbm [shape: f32[2,1,128], index: 2, kind: input, shape index: {}]
  %s3 = inlined_call_operand.hbm [shape: f32[2,1,128], index: 3, kind: input, shape index: {}]
  %s4 = inlined_call_operand.hbm [shape: bf16[2,128,384], index: 4, kind: input, shape index: {}]
  %s5 = inlined_call_operand.hbm [shape: f32[2,1,384], index: 5, kind: input, shape index: {}]
  %s6 = inlined_call_operand.hbm [shape: bf16[2,128,128], index: 6, kind: input, shape index: {}]
  %s7 = inlined_call_operand.hbm [shape: f32[2,1,128], index: 7, kind: input, shape index: {}]
  %s8 = inlined_call_operand.hbm [shape: f32[2,1,128], index: 8, kind: input, shape index: {}]
  %s9 = inlined_call_operand.vmem [shape: f32[2,1,128], index: 9, kind: input, shape index: {}]
  %s10 = inlined_call_operand.hbm [shape: bf16[2,128,512], index: 10, kind: input, shape index: {}]
  %s11 = inlined_call_operand.vmem [shape: f32[2,1,512], index: 11, kind: input, shape index: {}]
  %s12 = inlined_call_operand.hbm [shape: bf16[2,512,128], index: 12, kind: input, shape index: {}]
  %s13 = inlined_call_operand.vmem [shape: f32[2,1,128], index: 13, kind: input, shape index: {}]
  %s14 = inlined_call_operand.vmem [shape: f32[1,128], index: 14, kind: input, shape index: {}]
  %s15 = inlined_call_operand.vmem [shape: f32[1,128], index: 15, kind: input, shape index: {}]
  %s16 = inlined_call_operand.hbm [shape: bf16[128,256], index: 16, kind: input, shape index: {}]
  %s17 = inlined_call_operand.vmem [shape: f32[1,256], index: 17, kind: input, shape index: {}]
  %s18 = inlined_call_operand.hbm [shape: f32[2,16,256], index: 18, kind: output, shape index: {0}]
  %s19 = inlined_call_operand.hbm [shape: f32[2,1,128], index: 19, kind: output, shape index: {1}]
  %20 = xla_tuple %s18, %s19
  %s21 = sld [smem:[#allocation0]]
  $region153: #{tpu_custom_call.1} parent=0
    _
  %s23 = ssub.s32 1, %s21
  %s24 = scalar_select 0, %s23, %s21
  $region1: #{tpu_custom_call.1} parent=0
    #allocation3 [shape = 'u8[1024]{0}', space=vmem, size = 0x400, scoped, tag = 'input window, operand 2, single buffered']
    #allocation4 [shape = 's32[2]{0}', space=sflag, size = 0x8, scoped, tag = 'scoped memory for tpu_custom_call.1']
    #allocation5 [shape = 's32[2]{0}', space=sflag, size = 0x8, scoped, tag = 'scoped memory for tpu_custom_call.1']
    #allocation6 [shape = 'u8[1024]{0}', space=vmem, size = 0x400, scoped, tag = 'input window, operand 3, single buffered']
    #allocation7 [shape = 's32[1]{0}', space=sflag, size = 0x4, scoped, tag = 'scoped memory for tpu_custom_call.1']
    #allocation8 [shape = 'u8[196608]{0}', space=vmem, size = 0x30000, scoped, tag = 'input window, operand 4, single buffered']
    #allocation9 [shape = 'u8[3072]{0}', space=vmem, size = 0xc00, scoped, tag = 'input window, operand 5, single buffered']
    #allocation10 [shape = 's32[1]{0}', space=sflag, size = 0x4, scoped, tag = 'scoped memory for tpu_custom_call.1']
    #allocation11 [shape = 'u8[65536]{0}', space=vmem, size = 0x10000, scoped, tag = 'input window, operand 6, single buffered']
    #allocation12 [shape = 'u8[1024]{0}', space=vmem, size = 0x400, scoped, tag = 'input window, operand 7, single buffered']
    #allocation13 [shape = 's32[1]{0}', space=sflag, size = 0x4, scoped, tag = 'scoped memory for tpu_custom_call.1']
    #allocation14 [shape = 'u8[1024]{0}', space=vmem, size = 0x400, scoped, tag = 'input window, operand 8, single buffered']
    #allocation15 [shape = 'u8[262144]{0}', space=vmem, size = 0x40000, scoped, tag = 'input window, operand 10, single buffered']
    #allocation16 [shape = 's32[1]{0}', space=sflag, size = 0x4, scoped, tag = 'scoped memory for tpu_custom_call.1']
    #allocation17 [shape = 'u8[262144]{0}', space=vmem, size = 0x40000, scoped, tag = 'input window, operand 12, single buffered']
    #allocation18 [shape = 'u8[65536]{0}', space=vmem, size = 0x10000, scoped, tag = 'input window, operand 16, single buffered']
    #allocation19 [shape = 's32[1]{0}', space=sflag, size = 0x4, scoped, tag = 'scoped memory for tpu_custom_call.1']
    #allocation20 [shape = 'u8[32768]{0}', space=vmem, size = 0x8000, scoped, tag = 'output window, operand 0']
    #allocation21 [shape = 'u8[1024]{0}', space=vmem, size = 0x400, scoped, tag = 'output window, operand 1']
    #allocation22 [shape = 's32[2]{0}', space=sflag, size = 0x8, scoped, tag = 'scoped memory for tpu_custom_call.1']
    %25 = vsyncpa [#allocation4], 0
    %26 = vsyncpa [#allocation7], 0
    %27 = vsyncpa [#allocation10], 0
    %28 = vsyncpa [#allocation13], 0
    %29 = vsyncpa [#allocation16], 0
    %30 = vsyncpa [#allocation19], 0
    %31 = vsyncpa [#allocation5], 0
    %s32 = scalar_lea.sflag [#allocation5], 1
    %33 = vsyncpa %s32, 0
    %34 = vsyncpa [#allocation22], 0
    %s35 = scalar_lea.sflag [#allocation22], 1
    %36 = vsyncpa %s35, 0
    loop: start=0, step=1, limit=4
    $region2: #{tpu_custom_call.1} parent=1 // loop_pre_header
      _
    $region3: #{tpu_custom_call.1} parent=1 // loop_header
      %s38 = sphi 0, %s42
      %p39 = scmp.ge.s32.totalorder %s38, 4
      %s48 = sphi 0, %s50
      %s51 = sphi 0, %s48
      %s52 = sphi 0, %s51
      %s68 = sphi 0, %s52
      %s74 = sphi 0, %s76
      %s77 = sphi 0, %s74
      %s78 = sphi 0, %s77
      %s94 = sphi 0, %s78
      %s98 = sphi 0, %s98
      %s100 = sphi 0, %s98
      %s101 = sphi 0, %s100
      %s115 = sphi 0, %s101
      %s119 = sphi 0, %s119
      %s121 = sphi 0, %s119
      %s122 = sphi 0, %s121
      %s136 = sphi 0, %s122
      %s140 = sphi 0, %s140
      %s142 = sphi 0, %s140
      %s143 = sphi 0, %s142
      %s157 = sphi 0, %s143
      %s161 = sphi 0, %s161
      %s163 = sphi 0, %s161
      %s164 = sphi 0, %s163
      %s178 = sphi 0, %s164
      %s182 = sphi 0, %s182
      %s184 = sphi 0, %s182
      %s185 = sphi 0, %s184
      %s199 = sphi 0, %s185
      %s203 = sphi 0, %s203
      %s205 = sphi 0, %s203
      %s206 = sphi 0, %s205
      %s220 = sphi 0, %s206
      %s224 = sphi 0, %s224
      %s226 = sphi 0, %s224
      %s227 = sphi 0, %s226
      %s241 = sphi 0, %s227
      %s245 = sphi 0, %s245
      %s247 = sphi 0, %s245
      %s248 = sphi 0, %s247
      %s262 = sphi 0, %s248
      %s266 = sphi 0, %s266
      %s268 = sphi 0, %s266
      %s269 = sphi 0, %s268
      %s283 = sphi 0, %s269
      %s287 = sphi 0, %s287
      %s289 = sphi 0, %s287
      %s290 = sphi 0, %s289
      %s304 = sphi 0, %s290
      %s308 = sphi 0, %s308
      %s310 = sphi 0, %s308
      %s311 = sphi 0, %s310
      %s325 = sphi 0, %s311
      %s329 = sphi 0, %s329
      %s331 = sphi 0, %s329
      %s332 = sphi 0, %s331
      %s346 = sphi 0, %s332
      %s350 = sphi 0, %s350
      %s352 = sphi 0, %s350
      %s353 = sphi 0, %s352
      %s367 = sphi 0, %s353
      %s371 = sphi 0, %s371
      %s373 = sphi 0, %s371
      %s374 = sphi 0, %s373
      %s388 = sphi 0, %s374
      %s392 = sphi 0, %s392
      %s394 = sphi 0, %s392
      %s395 = sphi 0, %s394
      %s409 = sphi 0, %s395
      %s413 = sphi 0, %s413
      %s415 = sphi 0, %s413
      %s416 = sphi 0, %s415
      %s430 = sphi 0, %s416
      %s436 = sphi 0, %s438
      %s439 = sphi 0, %s436
      %s440 = sphi 0, %s439
      %s456 = sphi 0, %s440
      %s462 = sphi 0, %s464
      %s465 = sphi 0, %s462
      %s466 = sphi 0, %s465
      %s482 = sphi 0, %s466
    $region4: #{tpu_custom_call.1} parent=1 // loop_header_branch
      %41 = sbr.rel (%p39) target = $region8
    $region5: #{tpu_custom_call.1} parent=1 // loop_body
      %s43 = ssub.s32 %s38, 1
      %s44 = ssub.s32 %s38, 2
      %s45 = sadd.s32 %s38, 1
      %s46 = ssub.s32 %s38, %s45
      %p47 = scmp.eq.s32.totalorder %s46, 0
      %s49 = sadd.s32 %s48, 1
      %s50 = scalar_select %p47, %s48, %s49
      %p53 = pneg %p47
      %p54 = scmp.eq.s32.totalorder %s38, 1
      %p55 = por %p53, %p54
      %p56 = scmp.ne.s32.totalorder %s48, %s51
      %p57 = scmp.eq.s32.totalorder %s38, 0
      %p58 = por %p56, %p57
      %p59 = scmp.ne.s32.totalorder %s48, %s51
      %p60 = scmp.eq.s32.totalorder %s43, 1
      %p61 = por %p59, %p60
      %p62 = scmp.ne.s32.totalorder %s51, %s52
      %p63 = scmp.eq.s32.totalorder %s43, 0
      %p64 = por %p62, %p63
      %p65 = scmp.ne.s32.totalorder %s51, %s52
      %p66 = scmp.eq.s32.totalorder %s44, 1
      %p67 = por %p65, %p66
      %p69 = scmp.ne.s32.totalorder %s52, %s68
      %p70 = scmp.eq.s32.totalorder %s44, 0
      %p71 = por %p69, %p70
      %s72 = ssub.s32 %s38, %s45
      %p73 = scmp.eq.s32.totalorder %s72, 0
      %s75 = sadd.s32 %s74, 1
      %s76 = scalar_select %p73, %s74, %s75
      %p79 = pneg %p73
      %p80 = scmp.eq.s32.totalorder %s38, 1
      %p81 = por %p79, %p80
      %p82 = scmp.ne.s32.totalorder %s74, %s77
      %p83 = scmp.eq.s32.totalorder %s38, 0
      %p84 = por %p82, %p83
      %p85 = scmp.ne.s32.totalorder %s74, %s77
      %p86 = scmp.eq.s32.totalorder %s43, 1
      %p87 = por %p85, %p86
      %p88 = scmp.ne.s32.totalorder %s77, %s78
      %p89 = scmp.eq.s32.totalorder %s43, 0
      %p90 = por %p88, %p89
      %p91 = scmp.ne.s32.totalorder %s77, %s78
      %p92 = scmp.eq.s32.totalorder %s44, 1
      %p93 = por %p91, %p92
      %p95 = scmp.ne.s32.totalorder %s78, %s94
      %p96 = scmp.eq.s32.totalorder %s44, 0
      %p97 = por %p95, %p96
      %s99 = sadd.s32 %s98, 1
      %p102 = scmp.eq.s32.totalorder %s38, 1
      %p103 = scmp.ne.s32.totalorder %s98, %s100
      %p104 = scmp.eq.s32.totalorder %s38, 0
      %p105 = por %p103, %p104
      %p106 = scmp.ne.s32.totalorder %s98, %s100
      %p107 = scmp.eq.s32.totalorder %s43, 1
      %p108 = por %p106, %p107
      %p109 = scmp.ne.s32.totalorder %s100, %s101
      %p110 = scmp.eq.s32.totalorder %s43, 0
      %p111 = por %p109, %p110
      %p112 = scmp.ne.s32.totalorder %s100, %s101
      %p113 = scmp.eq.s32.totalorder %s44, 1
      %p114 = por %p112, %p113
      %p116 = scmp.ne.s32.totalorder %s101, %s115
      %p117 = scmp.eq.s32.totalorder %s44, 0
      %p118 = por %p116, %p117
      %s120 = sadd.s32 %s119, 1
      %p123 = scmp.eq.s32.totalorder %s38, 1
      %p124 = scmp.ne.s32.totalorder %s119, %s121
      %p125 = scmp.eq.s32.totalorder %s38, 0
      %p126 = por %p124, %p125
      %p127 = scmp.ne.s32.totalorder %s119, %s121
      %p128 = scmp.eq.s32.totalorder %s43, 1
      %p129 = por %p127, %p128
      %p130 = scmp.ne.s32.totalorder %s121, %s122
      %p131 = scmp.eq.s32.totalorder %s43, 0
      %p132 = por %p130, %p131
      %p133 = scmp.ne.s32.totalorder %s121, %s122
      %p134 = scmp.eq.s32.totalorder %s44, 1
      %p135 = por %p133, %p134
      %p137 = scmp.ne.s32.totalorder %s122, %s136
      %p138 = scmp.eq.s32.totalorder %s44, 0
      %p139 = por %p137, %p138
      %s141 = sadd.s32 %s140, 1
      %p144 = scmp.eq.s32.totalorder %s38, 1
      %p145 = scmp.ne.s32.totalorder %s140, %s142
      %p146 = scmp.eq.s32.totalorder %s38, 0
      %p147 = por %p145, %p146
      %p148 = scmp.ne.s32.totalorder %s140, %s142
      %p149 = scmp.eq.s32.totalorder %s43, 1
      %p150 = por %p148, %p149
      %p151 = scmp.ne.s32.totalorder %s142, %s143
      %p152 = scmp.eq.s32.totalorder %s43, 0
      %p153 = por %p151, %p152
      %p154 = scmp.ne.s32.totalorder %s142, %s143
      %p155 = scmp.eq.s32.totalorder %s44, 1
      %p156 = por %p154, %p155
      %p158 = scmp.ne.s32.totalorder %s143, %s157
      %p159 = scmp.eq.s32.totalorder %s44, 0
      %p160 = por %p158, %p159
      %s162 = sadd.s32 %s161, 1
      %p165 = scmp.eq.s32.totalorder %s38, 1
      %p166 = scmp.ne.s32.totalorder %s161, %s163
      %p167 = scmp.eq.s32.totalorder %s38, 0
      %p168 = por %p166, %p167
      %p169 = scmp.ne.s32.totalorder %s161, %s163
      %p170 = scmp.eq.s32.totalorder %s43, 1
      %p171 = por %p169, %p170
      %p172 = scmp.ne.s32.totalorder %s163, %s164
      %p173 = scmp.eq.s32.totalorder %s43, 0
      %p174 = por %p172, %p173
      %p175 = scmp.ne.s32.totalorder %s163, %s164
      %p176 = scmp.eq.s32.totalorder %s44, 1
      %p177 = por %p175, %p176
      %p179 = scmp.ne.s32.totalorder %s164, %s178
      %p180 = scmp.eq.s32.totalorder %s44, 0
      %p181 = por %p179, %p180
      %s183 = sadd.s32 %s182, 1
      %p186 = scmp.eq.s32.totalorder %s38, 1
      %p187 = scmp.ne.s32.totalorder %s182, %s184
      %p188 = scmp.eq.s32.totalorder %s38, 0
      %p189 = por %p187, %p188
      %p190 = scmp.ne.s32.totalorder %s182, %s184
      %p191 = scmp.eq.s32.totalorder %s43, 1
      %p192 = por %p190, %p191
      %p193 = scmp.ne.s32.totalorder %s184, %s185
      %p194 = scmp.eq.s32.totalorder %s43, 0
      %p195 = por %p193, %p194
      %p196 = scmp.ne.s32.totalorder %s184, %s185
      %p197 = scmp.eq.s32.totalorder %s44, 1
      %p198 = por %p196, %p197
      %p200 = scmp.ne.s32.totalorder %s185, %s199
      %p201 = scmp.eq.s32.totalorder %s44, 0
      %p202 = por %p200, %p201
      %s204 = sadd.s32 %s203, 1
      %p207 = scmp.eq.s32.totalorder %s38, 1
      %p208 = scmp.ne.s32.totalorder %s203, %s205
      %p209 = scmp.eq.s32.totalorder %s38, 0
      %p210 = por %p208, %p209
      %p211 = scmp.ne.s32.totalorder %s203, %s205
      %p212 = scmp.eq.s32.totalorder %s43, 1
      %p213 = por %p211, %p212
      %p214 = scmp.ne.s32.totalorder %s205, %s206
      %p215 = scmp.eq.s32.totalorder %s43, 0
      %p216 = por %p214, %p215
      %p217 = scmp.ne.s32.totalorder %s205, %s206
      %p218 = scmp.eq.s32.totalorder %s44, 1
      %p219 = por %p217, %p218
      %p221 = scmp.ne.s32.totalorder %s206, %s220
      %p222 = scmp.eq.s32.totalorder %s44, 0
      %p223 = por %p221, %p222
      %s225 = sadd.s32 %s224, 1
      %p228 = scmp.eq.s32.totalorder %s38, 1
      %p229 = scmp.ne.s32.totalorder %s224, %s226
      %p230 = scmp.eq.s32.totalorder %s38, 0
      %p231 = por %p229, %p230
      %p232 = scmp.ne.s32.totalorder %s224, %s226
      %p233 = scmp.eq.s32.totalorder %s43, 1
      %p234 = por %p232, %p233
      %p235 = scmp.ne.s32.totalorder %s226, %s227
      %p236 = scmp.eq.s32.totalorder %s43, 0
      %p237 = por %p235, %p236
      %p238 = scmp.ne.s32.totalorder %s226, %s227
      %p239 = scmp.eq.s32.totalorder %s44, 1
      %p240 = por %p238, %p239
      %p242 = scmp.ne.s32.totalorder %s227, %s241
      %p243 = scmp.eq.s32.totalorder %s44, 0
      %p244 = por %p242, %p243
      %s246 = sadd.s32 %s245, 1
      %p249 = scmp.eq.s32.totalorder %s38, 1
      %p250 = scmp.ne.s32.totalorder %s245, %s247
      %p251 = scmp.eq.s32.totalorder %s38, 0
      %p252 = por %p250, %p251
      %p253 = scmp.ne.s32.totalorder %s245, %s247
      %p254 = scmp.eq.s32.totalorder %s43, 1
      %p255 = por %p253, %p254
      %p256 = scmp.ne.s32.totalorder %s247, %s248
      %p257 = scmp.eq.s32.totalorder %s43, 0
      %p258 = por %p256, %p257
      %p259 = scmp.ne.s32.totalorder %s247, %s248
      %p260 = scmp.eq.s32.totalorder %s44, 1
      %p261 = por %p259, %p260
      %p263 = scmp.ne.s32.totalorder %s248, %s262
      %p264 = scmp.eq.s32.totalorder %s44, 0
      %p265 = por %p263, %p264
      %s267 = sadd.s32 %s266, 1
      %p270 = scmp.eq.s32.totalorder %s38, 1
      %p271 = scmp.ne.s32.totalorder %s266, %s268
      %p272 = scmp.eq.s32.totalorder %s38, 0
      %p273 = por %p271, %p272
      %p274 = scmp.ne.s32.totalorder %s266, %s268
      %p275 = scmp.eq.s32.totalorder %s43, 1
      %p276 = por %p274, %p275
      %p277 = scmp.ne.s32.totalorder %s268, %s269
      %p278 = scmp.eq.s32.totalorder %s43, 0
      %p279 = por %p277, %p278
      %p280 = scmp.ne.s32.totalorder %s268, %s269
      %p281 = scmp.eq.s32.totalorder %s44, 1
      %p282 = por %p280, %p281
      %p284 = scmp.ne.s32.totalorder %s269, %s283
      %p285 = scmp.eq.s32.totalorder %s44, 0
      %p286 = por %p284, %p285
      %s288 = sadd.s32 %s287, 1
      %p291 = scmp.eq.s32.totalorder %s38, 1
      %p292 = scmp.ne.s32.totalorder %s287, %s289
      %p293 = scmp.eq.s32.totalorder %s38, 0
      %p294 = por %p292, %p293
      %p295 = scmp.ne.s32.totalorder %s287, %s289
      %p296 = scmp.eq.s32.totalorder %s43, 1
      %p297 = por %p295, %p296
      %p298 = scmp.ne.s32.totalorder %s289, %s290
      %p299 = scmp.eq.s32.totalorder %s43, 0
      %p300 = por %p298, %p299
      %p301 = scmp.ne.s32.totalorder %s289, %s290
      %p302 = scmp.eq.s32.totalorder %s44, 1
      %p303 = por %p301, %p302
      %p305 = scmp.ne.s32.totalorder %s290, %s304
      %p306 = scmp.eq.s32.totalorder %s44, 0
      %p307 = por %p305, %p306
      %s309 = sadd.s32 %s308, 1
      %p312 = scmp.eq.s32.totalorder %s38, 1
      %p313 = scmp.ne.s32.totalorder %s308, %s310
      %p314 = scmp.eq.s32.totalorder %s38, 0
      %p315 = por %p313, %p314
      %p316 = scmp.ne.s32.totalorder %s308, %s310
      %p317 = scmp.eq.s32.totalorder %s43, 1
      %p318 = por %p316, %p317
      %p319 = scmp.ne.s32.totalorder %s310, %s311
      %p320 = scmp.eq.s32.totalorder %s43, 0
      %p321 = por %p319, %p320
      %p322 = scmp.ne.s32.totalorder %s310, %s311
      %p323 = scmp.eq.s32.totalorder %s44, 1
      %p324 = por %p322, %p323
      %p326 = scmp.ne.s32.totalorder %s311, %s325
      %p327 = scmp.eq.s32.totalorder %s44, 0
      %p328 = por %p326, %p327
      %s330 = sadd.s32 %s329, 1
      %p333 = scmp.eq.s32.totalorder %s38, 1
      %p334 = scmp.ne.s32.totalorder %s329, %s331
      %p335 = scmp.eq.s32.totalorder %s38, 0
      %p336 = por %p334, %p335
      %p337 = scmp.ne.s32.totalorder %s329, %s331
      %p338 = scmp.eq.s32.totalorder %s43, 1
      %p339 = por %p337, %p338
      %p340 = scmp.ne.s32.totalorder %s331, %s332
      %p341 = scmp.eq.s32.totalorder %s43, 0
      %p342 = por %p340, %p341
      %p343 = scmp.ne.s32.totalorder %s331, %s332
      %p344 = scmp.eq.s32.totalorder %s44, 1
      %p345 = por %p343, %p344
      %p347 = scmp.ne.s32.totalorder %s332, %s346
      %p348 = scmp.eq.s32.totalorder %s44, 0
      %p349 = por %p347, %p348
      %s351 = sadd.s32 %s350, 1
      %p354 = scmp.eq.s32.totalorder %s38, 1
      %p355 = scmp.ne.s32.totalorder %s350, %s352
      %p356 = scmp.eq.s32.totalorder %s38, 0
      %p357 = por %p355, %p356
      %p358 = scmp.ne.s32.totalorder %s350, %s352
      %p359 = scmp.eq.s32.totalorder %s43, 1
      %p360 = por %p358, %p359
      %p361 = scmp.ne.s32.totalorder %s352, %s353
      %p362 = scmp.eq.s32.totalorder %s43, 0
      %p363 = por %p361, %p362
      %p364 = scmp.ne.s32.totalorder %s352, %s353
      %p365 = scmp.eq.s32.totalorder %s44, 1
      %p366 = por %p364, %p365
      %p368 = scmp.ne.s32.totalorder %s353, %s367
      %p369 = scmp.eq.s32.totalorder %s44, 0
      %p370 = por %p368, %p369
      %s372 = sadd.s32 %s371, 1
      %p375 = scmp.eq.s32.totalorder %s38, 1
      %p376 = scmp.ne.s32.totalorder %s371, %s373
      %p377 = scmp.eq.s32.totalorder %s38, 0
      %p378 = por %p376, %p377
      %p379 = scmp.ne.s32.totalorder %s371, %s373
      %p380 = scmp.eq.s32.totalorder %s43, 1
      %p381 = por %p379, %p380
      %p382 = scmp.ne.s32.totalorder %s373, %s374
      %p383 = scmp.eq.s32.totalorder %s43, 0
      %p384 = por %p382, %p383
      %p385 = scmp.ne.s32.totalorder %s373, %s374
      %p386 = scmp.eq.s32.totalorder %s44, 1
      %p387 = por %p385, %p386
      %p389 = scmp.ne.s32.totalorder %s374, %s388
      %p390 = scmp.eq.s32.totalorder %s44, 0
      %p391 = por %p389, %p390
      %s393 = sadd.s32 %s392, 1
      %p396 = scmp.eq.s32.totalorder %s38, 1
      %p397 = scmp.ne.s32.totalorder %s392, %s394
      %p398 = scmp.eq.s32.totalorder %s38, 0
      %p399 = por %p397, %p398
      %p400 = scmp.ne.s32.totalorder %s392, %s394
      %p401 = scmp.eq.s32.totalorder %s43, 1
      %p402 = por %p400, %p401
      %p403 = scmp.ne.s32.totalorder %s394, %s395
      %p404 = scmp.eq.s32.totalorder %s43, 0
      %p405 = por %p403, %p404
      %p406 = scmp.ne.s32.totalorder %s394, %s395
      %p407 = scmp.eq.s32.totalorder %s44, 1
      %p408 = por %p406, %p407
      %p410 = scmp.ne.s32.totalorder %s395, %s409
      %p411 = scmp.eq.s32.totalorder %s44, 0
      %p412 = por %p410, %p411
      %s414 = sadd.s32 %s413, 1
      %p417 = scmp.eq.s32.totalorder %s38, 1
      %p418 = scmp.ne.s32.totalorder %s413, %s415
      %p419 = scmp.eq.s32.totalorder %s38, 0
      %p420 = por %p418, %p419
      %p421 = scmp.ne.s32.totalorder %s413, %s415
      %p422 = scmp.eq.s32.totalorder %s43, 1
      %p423 = por %p421, %p422
      %p424 = scmp.ne.s32.totalorder %s415, %s416
      %p425 = scmp.eq.s32.totalorder %s43, 0
      %p426 = por %p424, %p425
      %p427 = scmp.ne.s32.totalorder %s415, %s416
      %p428 = scmp.eq.s32.totalorder %s44, 1
      %p429 = por %p427, %p428
      %p431 = scmp.ne.s32.totalorder %s416, %s430
      %p432 = scmp.eq.s32.totalorder %s44, 0
      %p433 = por %p431, %p432
      %s434 = ssub.s32 %s38, %s45
      %p435 = scmp.eq.s32.totalorder %s434, 0
      %s437 = sadd.s32 %s436, 1
      %s438 = scalar_select %p435, %s436, %s437
      %p441 = pneg %p435
      %p442 = scmp.eq.s32.totalorder %s38, 1
      %p443 = por %p441, %p442
      %p444 = scmp.ne.s32.totalorder %s436, %s439
      %p445 = scmp.eq.s32.totalorder %s38, 0
      %p446 = por %p444, %p445
      %p447 = scmp.ne.s32.totalorder %s436, %s439
      %p448 = scmp.eq.s32.totalorder %s43, 1
      %p449 = por %p447, %p448
      %p450 = scmp.ne.s32.totalorder %s439, %s440
      %p451 = scmp.eq.s32.totalorder %s43, 0
      %p452 = por %p450, %p451
      %p453 = scmp.ne.s32.totalorder %s439, %s440
      %p454 = scmp.eq.s32.totalorder %s44, 1
      %p455 = por %p453, %p454
      %p457 = scmp.ne.s32.totalorder %s440, %s456
      %p458 = scmp.eq.s32.totalorder %s44, 0
      %p459 = por %p457, %p458
      %s460 = ssub.s32 %s38, %s45
      %p461 = scmp.eq.s32.totalorder %s460, 0
      %s463 = sadd.s32 %s462, 1
      %s464 = scalar_select %p461, %s462, %s463
      %p467 = pneg %p461
      %p468 = scmp.eq.s32.totalorder %s38, 1
      %p469 = por %p467, %p468
      %p470 = scmp.ne.s32.totalorder %s462, %s465
      %p471 = scmp.eq.s32.totalorder %s38, 0
      %p472 = por %p470, %p471
      %p473 = scmp.ne.s32.totalorder %s462, %s465
      %p474 = scmp.eq.s32.totalorder %s43, 1
      %p475 = por %p473, %p474
      %p476 = scmp.ne.s32.totalorder %s465, %s466
      %p477 = scmp.eq.s32.totalorder %s43, 0
      %p478 = por %p476, %p477
      %p479 = scmp.ne.s32.totalorder %s465, %s466
      %p480 = scmp.eq.s32.totalorder %s44, 1
      %p481 = por %p479, %p480
      %p483 = scmp.ne.s32.totalorder %s466, %s482
      %p484 = scmp.eq.s32.totalorder %s44, 0
      %p485 = por %p483, %p484
      %p486 = scmp.le.s32.totalorder 1, %s38
      %p487 = scmp.lt.s32.totalorder %s38, 3
      %p488 = pnand %p486, %p487
      %p489 = pneg %p488
      // Predicated region
      $region9: #{tpu_custom_call.1} parent=5 // pred_check
        _
      $region10: #{tpu_custom_call.1} parent=5 // pred_check_branch
        %491 = sbr.rel (%p488) target = $region12
      $region11: #{tpu_custom_call.1} parent=5 // pred_region
        %s492 = ssub.s32 %s38, 1
        // Predicated region
        $region13: #{tpu_custom_call.1} parent=11 // pred_check
          %p493 = pneg %p111
        $region14: #{tpu_custom_call.1} parent=11 // pred_check_branch
          %495 = sbr.rel (%p493) target = $region16
        $region15: #{tpu_custom_call.1} parent=11 // pred_region
          %497 = vsyncadd [#allocation4], 0
          %s498 = sshll.u32 %s2, 4
          %s499 = int_to_ptr.hbm [resolvable:$true] %s498
          %s500 = sshll.u32 [#allocation3], 4
          %s501 = int_to_ptr.vmem [resolvable:$true] %s500
          %506 = dma.hbm_to_vmem [thread:$0]  %s499, 32, %s501, [#allocation4], 16, 16, 1
        $region16: #{tpu_custom_call.1} parent=11 // pred_fallthru
          _
        // Predicated region
        $region17: #{tpu_custom_call.1} parent=11 // pred_check
          %p507 = pneg %p132
        $region18: #{tpu_custom_call.1} parent=11 // pred_check_branch
          %509 = sbr.rel (%p507) target = $region20
        $region19: #{tpu_custom_call.1} parent=11 // pred_region
          %511 = vsyncadd [#allocation7], 0
          %s512 = sshll.u32 %s3, 4
          %s513 = int_to_ptr.hbm [resolvable:$true] %s512
          %s514 = sshll.u32 [#allocation6], 4
          %s515 = int_to_ptr.vmem [resolvable:$true] %s514
          %520 = dma.hbm_to_vmem [thread:$0]  %s513, 32, %s515, [#allocation7], 16, 16, 1
        $region20: #{tpu_custom_call.1} parent=11 // pred_fallthru
          _
        // Predicated region
        $region21: #{tpu_custom_call.1} parent=11 // pred_check
          %p521 = pneg %p153
        $region22: #{tpu_custom_call.1} parent=11 // pred_check_branch
          %523 = sbr.rel (%p521) target = $region24
        $region23: #{tpu_custom_call.1} parent=11 // pred_region
          %525 = vsyncadd [#allocation7], 0
          %s526 = sshll.u32 %s4, 4
          %s527 = int_to_ptr.hbm [resolvable:$true] %s526
          %s528 = sshll.u32 [#allocation8], 4
          %s529 = int_to_ptr.vmem [resolvable:$true] %s528
          %534 = dma.hbm_to_vmem [thread:$0]  %s527, 6144, %s529, [#allocation7], 192, 192, 12
        $region24: #{tpu_custom_call.1} parent=11 // pred_fallthru
          _
        // Predicated region
        $region25: #{tpu_custom_call.1} parent=11 // pred_check
          %p535 = pneg %p174
        $region26: #{tpu_custom_call.1} parent=11 // pred_check_branch
          %537 = sbr.rel (%p535) target = $region28
        $region27: #{tpu_custom_call.1} parent=11 // pred_region
          %539 = vsyncadd [#allocation10], 0
          %s540 = sshll.u32 %s5, 4
          %s541 = int_to_ptr.hbm [resolvable:$true] %s540
          %s542 = sshll.u32 [#allocation9], 4
          %s543 = int_to_ptr.vmem [resolvable:$true] %s542
          %548 = dma.hbm_to_vmem [thread:$0]  %s541, 96, %s543, [#allocation10], 48, 48, 3
        $region28: #{tpu_custom_call.1} parent=11 // pred_fallthru
          _
        // Predicated region
        $region29: #{tpu_custom_call.1} parent=11 // pred_check
          %p549 = pneg %p195
        $region30: #{tpu_custom_call.1} parent=11 // pred_check_branch
          %551 = sbr.rel (%p549) target = $region32
        $region31: #{tpu_custom_call.1} parent=11 // pred_region
          %553 = vsyncadd [#allocation10], 0
          %s554 = sshll.u32 %s6, 4
          %s555 = int_to_ptr.hbm [resolvable:$true] %s554
          %s556 = sshll.u32 [#allocation11], 4
          %s557 = int_to_ptr.vmem [resolvable:$true] %s556
          %562 = dma.hbm_to_vmem [thread:$0]  %s555, 2048, %s557, [#allocation10], 64, 64, 4
        $region32: #{tpu_custom_call.1} parent=11 // pred_fallthru
          _
        // Predicated region
        $region33: #{tpu_custom_call.1} parent=11 // pred_check
          %p563 = pneg %p216
        $region34: #{tpu_custom_call.1} parent=11 // pred_check_branch
          %565 = sbr.rel (%p563) target = $region36
        $region35: #{tpu_custom_call.1} parent=11 // pred_region
          %567 = vsyncadd [#allocation13], 0
          %s568 = sshll.u32 %s7, 4
          %s569 = int_to_ptr.hbm [resolvable:$true] %s568
          %s570 = sshll.u32 [#allocation12], 4
          %s571 = int_to_ptr.vmem [resolvable:$true] %s570
          %576 = dma.hbm_to_vmem [thread:$0]  %s569, 32, %s571, [#allocation13], 16, 16, 1
        $region36: #{tpu_custom_call.1} parent=11 // pred_fallthru
          _
        // Predicated region
        $region37: #{tpu_custom_call.1} parent=11 // pred_check
          %p577 = pneg %p237
        $region38: #{tpu_custom_call.1} parent=11 // pred_check_branch
          %579 = sbr.rel (%p577) target = $region40
        $region39: #{tpu_custom_call.1} parent=11 // pred_region
          %581 = vsyncadd [#allocation13], 0
          %s582 = sshll.u32 %s8, 4
          %s583 = int_to_ptr.hbm [resolvable:$true] %s582
          %s584 = sshll.u32 [#allocation14], 4
          %s585 = int_to_ptr.vmem [resolvable:$true] %s584
          %590 = dma.hbm_to_vmem [thread:$0]  %s583, 32, %s585, [#allocation13], 16, 16, 1
        $region40: #{tpu_custom_call.1} parent=11 // pred_fallthru
          _
        // Predicated region
        $region41: #{tpu_custom_call.1} parent=11 // pred_check
          %p591 = pneg %p258
        $region42: #{tpu_custom_call.1} parent=11 // pred_check_branch
          %593 = sbr.rel (%p591) target = $region44
        $region43: #{tpu_custom_call.1} parent=11 // pred_region
          _
        $region44: #{tpu_custom_call.1} parent=11 // pred_fallthru
          _
        // Predicated region
        $region45: #{tpu_custom_call.1} parent=11 // pred_check
          %p594 = pneg %p279
        $region46: #{tpu_custom_call.1} parent=11 // pred_check_branch
          %596 = sbr.rel (%p594) target = $region48
        $region47: #{tpu_custom_call.1} parent=11 // pred_region
          %598 = vsyncadd [#allocation16], 0
          %s599 = sshll.u32 %s10, 4
          %s600 = int_to_ptr.hbm [resolvable:$true] %s599
          %s601 = sshll.u32 [#allocation15], 4
          %s602 = int_to_ptr.vmem [resolvable:$true] %s601
          %607 = dma.hbm_to_vmem [thread:$0]  %s600, 8192, %s602, [#allocation16], 256, 256, 16
        $region48: #{tpu_custom_call.1} parent=11 // pred_fallthru
          _
        // Predicated region
        $region49: #{tpu_custom_call.1} parent=11 // pred_check
          %p608 = pneg %p300
        $region50: #{tpu_custom_call.1} parent=11 // pred_check_branch
          %610 = sbr.rel (%p608) target = $region52
        $region51: #{tpu_custom_call.1} parent=11 // pred_region
          _
        $region52: #{tpu_custom_call.1} parent=11 // pred_fallthru
          _
        // Predicated region
        $region53: #{tpu_custom_call.1} parent=11 // pred_check
          %p611 = pneg %p321
        $region54: #{tpu_custom_call.1} parent=11 // pred_check_branch
          %613 = sbr.rel (%p611) target = $region56
        $region55: #{tpu_custom_call.1} parent=11 // pred_region
          %615 = vsyncadd [#allocation16], 0
          %s616 = sshll.u32 %s12, 4
          %s617 = int_to_ptr.hbm [resolvable:$true] %s616
          %s618 = sshll.u32 [#allocation17], 4
          %s619 = int_to_ptr.vmem [resolvable:$true] %s618
          %624 = dma.hbm_to_vmem [thread:$0]  %s617, 8192, %s619, [#allocation16], 64, 64, 4
        $region56: #{tpu_custom_call.1} parent=11 // pred_fallthru
          _
        // Predicated region
        $region57: #{tpu_custom_call.1} parent=11 // pred_check
          %p625 = pneg %p342
        $region58: #{tpu_custom_call.1} parent=11 // pred_check_branch
          %627 = sbr.rel (%p625) target = $region60
        $region59: #{tpu_custom_call.1} parent=11 // pred_region
          _
        $region60: #{tpu_custom_call.1} parent=11 // pred_fallthru
          _
        // Predicated region
        $region61: #{tpu_custom_call.1} parent=11 // pred_check
          %p628 = pneg %p363
        $region62: #{tpu_custom_call.1} parent=11 // pred_check_branch
          %630 = sbr.rel (%p628) target = $region64
        $region63: #{tpu_custom_call.1} parent=11 // pred_region
          _
        $region64: #{tpu_custom_call.1} parent=11 // pred_fallthru
          _
        // Predicated region
        $region65: #{tpu_custom_call.1} parent=11 // pred_check
          %p631 = pneg %p384
        $region66: #{tpu_custom_call.1} parent=11 // pred_check_branch
          %633 = sbr.rel (%p631) target = $region68
        $region67: #{tpu_custom_call.1} parent=11 // pred_region
          _
        $region68: #{tpu_custom_call.1} parent=11 // pred_fallthru
          _
        // Predicated region
        $region69: #{tpu_custom_call.1} parent=11 // pred_check
          %p634 = pneg %p405
        $region70: #{tpu_custom_call.1} parent=11 // pred_check_branch
          %636 = sbr.rel (%p634) target = $region72
        $region71: #{tpu_custom_call.1} parent=11 // pred_region
          %638 = vsyncadd [#allocation19], 0
          %s639 = sshll.u32 %s16, 4
          %s640 = int_to_ptr.hbm [resolvable:$true] %s639
          %s641 = sshll.u32 [#allocation18], 4
          %s642 = int_to_ptr.vmem [resolvable:$true] %s641
          %647 = dma.hbm_to_vmem [thread:$0]  %s640, 2048, %s642, [#allocation19], 128, 128, 8
        $region72: #{tpu_custom_call.1} parent=11 // pred_fallthru
          _
        // Predicated region
        $region73: #{tpu_custom_call.1} parent=11 // pred_check
          %p648 = pneg %p426
        $region74: #{tpu_custom_call.1} parent=11 // pred_check_branch
          %650 = sbr.rel (%p648) target = $region76
        $region75: #{tpu_custom_call.1} parent=11 // pred_region
          _
        $region76: #{tpu_custom_call.1} parent=11 // pred_fallthru
          _
      $region12: #{tpu_custom_call.1} parent=5 // pred_fallthru
        _
      %p651 = scmp.lt.s32.totalorder %s38, 2
      // Predicated region
      $region77: #{tpu_custom_call.1} parent=5 // pred_check
        %p652 = pneg %p651
      $region78: #{tpu_custom_call.1} parent=5 // pred_check_branch
        %654 = sbr.rel (%p652) target = $region80
      $region79: #{tpu_custom_call.1} parent=5 // pred_region
        // Predicated region
        $region81: #{tpu_custom_call.1} parent=79 // pred_check
          %p655 = pneg %p58
        $region82: #{tpu_custom_call.1} parent=79 // pred_check_branch
          %657 = sbr.rel (%p655) target = $region84
        $region83: #{tpu_custom_call.1} parent=79 // pred_region
          %p658 = scmp.lt.s32.totalorder %s38, 1
          %s659 = scalar_select %p658, %s38, 1
          %s660 = smul.addr %s659, 2
          %s661 = smul.addr %s660, 8
          %s662 = scalar_lea.vmem %s0, %s661
        $region84: #{tpu_custom_call.1} parent=79 // pred_fallthru
          _
        // Predicated region
        $region85: #{tpu_custom_call.1} parent=79 // pred_check
          %p663 = pneg %p84
        $region86: #{tpu_custom_call.1} parent=79 // pred_check_branch
          %665 = sbr.rel (%p663) target = $region88
        $region87: #{tpu_custom_call.1} parent=79 // pred_region
          %p666 = scmp.lt.s32.totalorder %s38, 1
          %s667 = scalar_select %p666, %s38, 1
          %s668 = smul.addr %s667, 2
          %s669 = smul.addr %s668, 8
          %s670 = scalar_lea.vmem %s1, %s669
        $region88: #{tpu_custom_call.1} parent=79 // pred_fallthru
          _
      $region80: #{tpu_custom_call.1} parent=5 // pred_fallthru
        _
      %p671 = scmp.le.s32.totalorder 1, %s38
      %p672 = scmp.lt.s32.totalorder %s38, 3
      %p673 = pnand %p671, %p672
      %p674 = pneg %p673
      // Predicated region
      $region89: #{tpu_custom_call.1} parent=5 // pred_check
        _
      $region90: #{tpu_custom_call.1} parent=5 // pred_check_branch
        %676 = sbr.rel (%p673) target = $region92
      $region91: #{tpu_custom_call.1} parent=5 // pred_region
        %s677 = ssub.s32 %s38, 1
        // Predicated region
        $region93: #{tpu_custom_call.1} parent=91 // pred_check
          %p678 = pneg %p111
        $region94: #{tpu_custom_call.1} parent=91 // pred_check_branch
          %680 = sbr.rel (%p678) target = $region96
        $region95: #{tpu_custom_call.1} parent=91 // pred_region
          %682 = dma.done [#allocation4], 32
        $region96: #{tpu_custom_call.1} parent=91 // pred_fallthru
          _
        // Predicated region
        $region97: #{tpu_custom_call.1} parent=91 // pred_check
          %p683 = pneg %p132
        $region98: #{tpu_custom_call.1} parent=91 // pred_check_branch
          %685 = sbr.rel (%p683) target = $region100
        $region99: #{tpu_custom_call.1} parent=91 // pred_region
          %687 = dma.done [#allocation7], 32
        $region100: #{tpu_custom_call.1} parent=91 // pred_fallthru
          _
        // Predicated region
        $region101: #{tpu_custom_call.1} parent=91 // pred_check
          %p688 = pneg %p153
        $region102: #{tpu_custom_call.1} parent=91 // pred_check_branch
          %690 = sbr.rel (%p688) target = $region104
        $region103: #{tpu_custom_call.1} parent=91 // pred_region
          %692 = dma.done [#allocation7], 6144
        $region104: #{tpu_custom_call.1} parent=91 // pred_fallthru
          _
        // Predicated region
        $region105: #{tpu_custom_call.1} parent=91 // pred_check
          %p693 = pneg %p174
        $region106: #{tpu_custom_call.1} parent=91 // pred_check_branch
          %695 = sbr.rel (%p693) target = $region108
        $region107: #{tpu_custom_call.1} parent=91 // pred_region
          %697 = dma.done [#allocation10], 96
        $region108: #{tpu_custom_call.1} parent=91 // pred_fallthru
          _
        // Predicated region
        $region109: #{tpu_custom_call.1} parent=91 // pred_check
          %p698 = pneg %p195
        $region110: #{tpu_custom_call.1} parent=91 // pred_check_branch
          %700 = sbr.rel (%p698) target = $region112
        $region111: #{tpu_custom_call.1} parent=91 // pred_region
          %702 = dma.done [#allocation10], 2048
        $region112: #{tpu_custom_call.1} parent=91 // pred_fallthru
          _
        // Predicated region
        $region113: #{tpu_custom_call.1} parent=91 // pred_check
          %p703 = pneg %p216
        $region114: #{tpu_custom_call.1} parent=91 // pred_check_branch
          %705 = sbr.rel (%p703) target = $region116
        $region115: #{tpu_custom_call.1} parent=91 // pred_region
          %707 = dma.done [#allocation13], 32
        $region116: #{tpu_custom_call.1} parent=91 // pred_fallthru
          _
        // Predicated region
        $region117: #{tpu_custom_call.1} parent=91 // pred_check
          %p708 = pneg %p237
        $region118: #{tpu_custom_call.1} parent=91 // pred_check_branch
          %710 = sbr.rel (%p708) target = $region120
        $region119: #{tpu_custom_call.1} parent=91 // pred_region
          %712 = dma.done [#allocation13], 32
        $region120: #{tpu_custom_call.1} parent=91 // pred_fallthru
          _
        // Predicated region
        $region121: #{tpu_custom_call.1} parent=91 // pred_check
          %p713 = pneg %p279
        $region122: #{tpu_custom_call.1} parent=91 // pred_check_branch
          %715 = sbr.rel (%p713) target = $region124
        $region123: #{tpu_custom_call.1} parent=91 // pred_region
          %717 = dma.done [#allocation16], 8192
        $region124: #{tpu_custom_call.1} parent=91 // pred_fallthru
          _
        // Predicated region
        $region125: #{tpu_custom_call.1} parent=91 // pred_check
          %p718 = pneg %p321
        $region126: #{tpu_custom_call.1} parent=91 // pred_check_branch
          %720 = sbr.rel (%p718) target = $region128
        $region127: #{tpu_custom_call.1} parent=91 // pred_region
          %722 = dma.done [#allocation16], 8192
        $region128: #{tpu_custom_call.1} parent=91 // pred_fallthru
          _
        // Predicated region
        $region129: #{tpu_custom_call.1} parent=91 // pred_check
          %p723 = pneg %p405
        $region130: #{tpu_custom_call.1} parent=91 // pred_check_branch
          %725 = sbr.rel (%p723) target = $region132
        $region131: #{tpu_custom_call.1} parent=91 // pred_region
          %727 = dma.done [#allocation19], 2048
        $region132: #{tpu_custom_call.1} parent=91 // pred_fallthru
          _
        %p728 = scmp.lt.s32.totalorder %s43, 1
        %s729 = scalar_select %p728, %s43, 1
        %s730 = smul.addr %s729, 2
        %s731 = smul.addr %s730, 8
        %s732 = scalar_lea.vmem %s0, %s731
        %p733 = pneg %p64
        %p734 = pneg %p61
        %p735 = scmp.lt.s32.totalorder %s43, 1
        %s736 = scalar_select %p735, %s43, 1
        %s737 = smul.addr %s736, 2
        %s738 = smul.addr %s737, 8
        %s739 = scalar_lea.vmem %s1, %s738
        %p740 = pneg %p90
        %p741 = pneg %p87
        %p742 = pneg %p111
        %p743 = pneg %p108
        %p744 = pneg %p132
        %p745 = pneg %p129
        %p746 = pneg %p153
        %p747 = pneg %p150
        %p748 = pneg %p174
        %p749 = pneg %p171
        %p750 = pneg %p195
        %p751 = pneg %p192
        %p752 = pneg %p216
        %p753 = pneg %p213
        %p754 = pneg %p237
        %p755 = pneg %p234
        %p756 = pneg %p258
        %p757 = pneg %p255
        %p758 = pneg %p279
        %p759 = pneg %p276
        %p760 = pneg %p300
        %p761 = pneg %p297
        %p762 = pneg %p321
        %p763 = pneg %p318
        %p764 = pneg %p342
        %p765 = pneg %p339
        %p766 = pneg %p363
        %p767 = pneg %p360
        %p768 = pneg %p384
        %p769 = pneg %p381
        %p770 = pneg %p405
        %p771 = pneg %p402
        %p772 = pneg %p426
        %p773 = pneg %p423
        %p774 = pneg %p452
        %p775 = pneg %p449
        %s776 = sand.u32 %s439, 1
        %s777 = scalar_lea.sflag [#allocation5], %s776
        %s778 = sand.u32 %s439, 1
        %s779 = smul.addr %s778, 32
        %s780 = scalar_lea.vmem [#allocation20], %s779
        %p781 = pneg %p478
        %p782 = pneg %p475
        %s783 = sand.u32 %s465, 1
        %s784 = scalar_lea.sflag [#allocation22], %s783
        %s785 = sand.u32 %s465, 1
        %s786 = scalar_lea.vmem [#allocation21], %s785
        %p787 = scmp.lt.s32.totalorder %s43, 1
        %s788 = scalar_select %p787, %s43, 1
        %s789 = smul.addr %s788, 2
        %s790 = smul.addr %s789, 8
        %s791 = scalar_lea.vmem %s0, %s790
        %p792 = scmp.lt.s32.totalorder %s43, 1
        %s793 = scalar_select %p792, %s43, 1
        %s794 = smul.addr %s793, 2
        %s795 = smul.addr %s794, 8
        %s796 = scalar_lea.vmem %s1, %s795
        %v798 = vld [vmem:[%s791] sm:$0xff]
        %v799 = vld [vmem:[%s791 + $0x8] sm:$0xff]
        %v800 = vlaneseq
        %v801 = vshrl.u32 %v800, 7
        %v802 = vadd.s32 %v801, 8
        %v803 = vlaneseq
        %v804 = vand.u32 %v803, 127
        %vm805 = vcmp.le.s32.totalorder %v804, %v801
        %vm806 = vcmp.le.s32.totalorder %v804, %v802
        %v807 = vld [vmem:[#allocation3] sm:$0x1]
        %v808 = vld [vmem:[#allocation6] sm:$0x1]
        %809 = vadd.xlane.f32.xlu0 %v798
        %v810 = vpop.xlane.xlu0 %809
        %811 = vadd.xlane.f32.xlu0 %v799
        %v812 = vpop.xlane.xlu0 %811
        %v813 = vrcp.pop 128.0
        %v814 = vmul.f32 128.0, %v813
        %v815 = vsub.f32 1.0, %v814
        %v816 = vmul.f32 %v813, %v815
        %v817 = vadd.f32 %v813, %v816
        %vm818 = vweird.f32 %v813
        %v819 = vsel %vm818, %v813, %v817
        %v820 = vmul.f32 %v810, %v819
        %v821 = vmul.f32 %v812, %v819
        %v822 = vsub.f32 %v798, %v820
        %v823 = vsub.f32 %v799, %v821
        %v824 = vmul.f32 %v822, %v822
        %v825 = vmul.f32 %v823, %v823
        %826 = vadd.xlane.f32.xlu0 %v824
        %v827 = vpop.xlane.xlu0 %826
        %828 = vadd.xlane.f32.xlu0 %v825
        %v829 = vpop.xlane.xlu0 %828
        %v830 = vmul.f32 %v827, %v819
        %v831 = vmul.f32 %v829, %v819
        %v832 = vadd.f32 %v830, 1e-05
        %v833 = vadd.f32 %v831, 1e-05
        %v834 = vrsqrt.pop %v832
        %v835 = vmul.f32 %v834, %v832
        %v836 = vmul.f32 %v835, %v834
        %v837 = vmul.f32 0.5, %v836
        %v838 = vsub.f32 1.5, %v837
        %v839 = vmul.f32 %v834, %v838
        %vm840 = vweird.f32 %v832
        %vm841 = vweird.f32 %v834
        %vm842 = vmor %vm840, %vm841
        %v843 = vsel %vm842, %v834, %v839
        %v844 = vrsqrt.pop %v833
        %v845 = vmul.f32 %v844, %v833
        %v846 = vmul.f32 %v845, %v844
        %v847 = vmul.f32 0.5, %v846
        %v848 = vsub.f32 1.5, %v847
        %v849 = vmul.f32 %v844, %v848
        %vm850 = vweird.f32 %v833
        %vm851 = vweird.f32 %v844
        %vm852 = vmor %vm850, %vm851
        %v853 = vsel %vm852, %v844, %v849
        %v854 = vmul.f32 %v822, %v843
        %v855 = vmul.f32 %v823, %v853
        %v857 = vperm.slane %v807, 0
        %v859 = vmul.f32 %v854, %v857
        %v860 = vmul.f32 %v855, %v857
        %v862 = vperm.slane %v808, 0
        %v864 = vadd.f32 %v859, %v862
        %v865 = vadd.f32 %v860, %v862
        %v866 = vld [vmem:[#allocation8] sm:$0xff]
        %v867 = vld [vmem:[#allocation8 + $0x8] sm:$0xf]
        %v868 = vld [vmem:[#allocation8 + $0xc] sm:$0xff]
        %v869 = vld [vmem:[#allocation8 + $0x14] sm:$0xf]
        %v870 = vld [vmem:[#allocation8 + $0x18] sm:$0xff]
        %v871 = vld [vmem:[#allocation8 + $0x20] sm:$0xf]
        %v872 = vld [vmem:[#allocation8 + $0x24] sm:$0xff]
        %v873 = vld [vmem:[#allocation8 + $0x2c] sm:$0xf]
        %v874 = vld [vmem:[#allocation8 + $0x30] sm:$0xff]
        %v875 = vld [vmem:[#allocation8 + $0x38] sm:$0xf]
        %v876 = vld [vmem:[#allocation8 + $0x3c] sm:$0xff]
        %v877 = vld [vmem:[#allocation8 + $0x44] sm:$0xf]
        %v878 = vld [vmem:[#allocation8 + $0x48] sm:$0xff]
        %v879 = vld [vmem:[#allocation8 + $0x50] sm:$0xf]
        %v880 = vld [vmem:[#allocation8 + $0x54] sm:$0xff]
        %v881 = vld [vmem:[#allocation8 + $0x5c] sm:$0xf]
        %v882 = vld [vmem:[#allocation8 + $0x60] sm:$0xff]
        %v883 = vld [vmem:[#allocation8 + $0x68] sm:$0xf]
        %v884 = vld [vmem:[#allocation8 + $0x6c] sm:$0xff]
        %v885 = vld [vmem:[#allocation8 + $0x74] sm:$0xf]
        %v886 = vld [vmem:[#allocation8 + $0x78] sm:$0xff]
        %v887 = vld [vmem:[#allocation8 + $0x80] sm:$0xf]
        %v888 = vld [vmem:[#allocation8 + $0x84] sm:$0xff]
        %v889 = vld [vmem:[#allocation8 + $0x8c] sm:$0xf]
        %v890 = vld [vmem:[#allocation8 + $0x90] sm:$0xff]
        %v891 = vld [vmem:[#allocation8 + $0x98] sm:$0xf]
        %v892 = vld [vmem:[#allocation8 + $0x9c] sm:$0xff]
        %v893 = vld [vmem:[#allocation8 + $0xa4] sm:$0xf]
        %v894 = vld [vmem:[#allocation8 + $0xa8] sm:$0xff]
        %v895 = vld [vmem:[#allocation8 + $0xb0] sm:$0xf]
        %v896 = vld [vmem:[#allocation8 + $0xb4] sm:$0xff]
        %v897 = vld [vmem:[#allocation8 + $0xbc] sm:$0xf]
        %v898 = vpack.c.bf16 %v865, %v864
        %v899 = vld [vmem:[#allocation9] sm:$0x7]
        %v901 = vperm.slane %v899, 0
        %v902 = vperm.slane %v899, 1
        %v903 = vperm.slane %v899, 2
        %v939 = vunpack.c.l.b16 %v866
        %v940 = vunpack.c.h.b16 %v866
        %v941 = vunpack.c.l.b16 %v867
        %v942 = vunpack.c.l.b16 %v868
        %v943 = vunpack.c.h.b16 %v868
        %v944 = vunpack.c.l.b16 %v869
        %v945 = vunpack.c.l.b16 %v870
        %v946 = vunpack.c.h.b16 %v870
        %v947 = vunpack.c.l.b16 %v871
        %v948 = vunpack.c.l.b16 %v872
        %v949 = vunpack.c.h.b16 %v872
        %v950 = vunpack.c.l.b16 %v873
        %v951 = vunpack.c.l.b16 %v874
        %v952 = vunpack.c.h.b16 %v874
        %v953 = vunpack.c.l.b16 %v875
        %v954 = vunpack.c.l.b16 %v876
        %v955 = vunpack.c.h.b16 %v876
        %v956 = vunpack.c.l.b16 %v877
        %v957 = vunpack.c.l.b16 %v878
        %v958 = vunpack.c.h.b16 %v878
        %v959 = vunpack.c.l.b16 %v879
        %v960 = vunpack.c.l.b16 %v880
        %v961 = vunpack.c.h.b16 %v880
        %v962 = vunpack.c.l.b16 %v881
        %v963 = vunpack.c.l.b16 %v882
        %v964 = vunpack.c.h.b16 %v882
        %v965 = vunpack.c.l.b16 %v883
        %v966 = vunpack.c.l.b16 %v884
        %v967 = vunpack.c.h.b16 %v884
        %v968 = vunpack.c.l.b16 %v885
        %v969 = vunpack.c.l.b16 %v886
        %v970 = vunpack.c.h.b16 %v886
        %v971 = vunpack.c.l.b16 %v887
        %v972 = vunpack.c.l.b16 %v888
        %v973 = vunpack.c.h.b16 %v888
        %v974 = vunpack.c.l.b16 %v889
        %v975 = vunpack.c.l.b16 %v890
        %v976 = vunpack.c.h.b16 %v890
        %v977 = vunpack.c.l.b16 %v891
        %v978 = vunpack.c.l.b16 %v892
        %v979 = vunpack.c.h.b16 %v892
        %v980 = vunpack.c.l.b16 %v893
        %v981 = vunpack.c.l.b16 %v894
        %v982 = vunpack.c.h.b16 %v894
        %v983 = vunpack.c.l.b16 %v895
        %v984 = vunpack.c.l.b16 %v896
        %v985 = vunpack.c.h.b16 %v896
        %v986 = vunpack.c.l.b16 %v897
        %v987 = vpack.c.b16 %v942, %v939
        %v988 = vpack.c.b16 %v943, %v940
        %v989 = vpack.c.b16 %v944, %v941
        %v990 = vpack.c.b16 %v948, %v945
        %v991 = vpack.c.b16 %v949, %v946
        %v992 = vpack.c.b16 %v950, %v947
        %v993 = vpack.c.b16 %v954, %v951
        %v994 = vpack.c.b16 %v955, %v952
        %v995 = vpack.c.b16 %v956, %v953
        %v996 = vpack.c.b16 %v960, %v957
        %v997 = vpack.c.b16 %v961, %v958
        %v998 = vpack.c.b16 %v962, %v959
        %v999 = vpack.c.b16 %v966, %v963
        %v1000 = vpack.c.b16 %v967, %v964
        %v1001 = vpack.c.b16 %v968, %v965
        %v1002 = vpack.c.b16 %v972, %v969
        %v1003 = vpack.c.b16 %v973, %v970
        %v1004 = vpack.c.b16 %v974, %v971
        %v1005 = vpack.c.b16 %v978, %v975
        %v1006 = vpack.c.b16 %v979, %v976
        %v1007 = vpack.c.b16 %v980, %v977
        %v1008 = vpack.c.b16 %v984, %v981
        %v1009 = vpack.c.b16 %v985, %v982
        %v1010 = vpack.c.b16 %v986, %v983
        %1035 = vmatpush.bf16.msra.mxu0 %v1008
        %1036 = vmatpush.bf16.msra.mxu0 %v1005
        %1037 = vmatpush.bf16.msra.mxu0 %v1002
        %1038 = vmatpush.bf16.msra.mxu0 %v999
        %1039 = vmatpush.bf16.msra.mxu0 %v996
        %1040 = vmatpush.bf16.msra.mxu0 %v993
        %1041 = vmatpush.bf16.msra.mxu0 %v990
        %1042 = vmatpush.bf16.msra.mxu0 %v987
        %1043 = vmatmul.bf16.gmra.mxu0 %v898
        %v1044 = vpop.f32.mrf.mxu0
        %v1045 = vadd.f32 %v901, %v1044
        %v1046 = vpop.f32.mrf.mxu0
        %v1047 = vadd.f32 %v901, %v1046
        %1048 = vdwg.mxu0
        %1049 = vmatpush.bf16.msra.mxu0 %v1009
        %1050 = vmatpush.bf16.msra.mxu0 %v1006
        %1051 = vmatpush.bf16.msra.mxu0 %v1003
        %1052 = vmatpush.bf16.msra.mxu0 %v1000
        %1053 = vmatpush.bf16.msra.mxu0 %v997
        %1054 = vmatpush.bf16.msra.mxu0 %v994
        %1055 = vmatpush.bf16.msra.mxu0 %v991
        %1056 = vmatpush.bf16.msra.mxu0 %v988
        %1057 = vmatmul.bf16.gmra.mxu0 %v898
        %v1058 = vpop.f32.mrf.mxu0
        %v1059 = vadd.f32 %v902, %v1058
        %v1060 = vpop.f32.mrf.mxu0
        %v1061 = vadd.f32 %v902, %v1060
        %1062 = vdwg.mxu0
        %1063 = vmatpush.bf16.msra.mxu0 %v1010
        %1064 = vmatpush.bf16.msra.mxu0 %v1007
        %1065 = vmatpush.bf16.msra.mxu0 %v1004
        %1066 = vmatpush.bf16.msra.mxu0 %v1001
        %1067 = vmatpush.bf16.msra.mxu0 %v998
        %1068 = vmatpush.bf16.msra.mxu0 %v995
        %1069 = vmatpush.bf16.msra.mxu0 %v992
        %1070 = vmatpush.bf16.msra.mxu0 %v989
        %1071 = vmatmul.bf16.gmra.mxu0 %v898
        %v1072 = vpop.f32.mrf.mxu0
        %v1073 = vadd.f32 %v903, %v1072
        %v1074 = vpop.f32.mrf.mxu0
        %v1075 = vadd.f32 %v903, %v1074
        %1076 = vdwg.mxu0
        %v1077 = vmul.f32 %v1045, 0.17677669
        %v1078 = vmul.f32 %v1047, 0.17677669
        %v1079 = vpack.c.bf16 %v1078, %v1077
        %v1080 = vpack.c.bf16 %v1061, %v1059
        %vm1081 = vcmask 261120
        %v1083 = vsel %vm1081, %v1079, 0
        %v1086 = vsel %vm1081, %v1080, 0
        %1088 = vmatpush.bf16.xpose.msra.mxu0 0
        %1089 = vmatpush.bf16.xpose.msra.mxu0 0
        %1090 = vmatpush.bf16.xpose.msra.mxu0 0
        %1091 = vmatpush.bf16.xpose.msra.mxu0 0
        %1092 = vmatpush.bf16.xpose.msra.mxu0 0
        %1093 = vmatpush.bf16.xpose.msra.mxu0 0
        %1094 = vmatpush.bf16.xpose.msra.mxu0 0
        %1095 = vmatpush.bf16.xpose.msra.mxu0 %v1086
        %1096 = vmatmul.bf16.gmra.mxu0 %v1083
        %v1097 = vpop.f32.mrf.mxu0
        %v1098 = vadd.f32 0.0, %v1097
        %v1099 = vpop.f32.mrf.mxu0
        %v1100 = vadd.f32 0.0, %v1099
        %1101 = vdwg.mxu0
        %v1102 = vsel %vm805, %v1098, -1e+30
        %v1103 = vsel %vm806, %v1100, -1e+30
        %vm1104 = vcmask 130048
        %v1105 = vsel %vm1104, %v1102, -inf
        %1106 = vmax.xlane.f32.xlu0 %v1105
        %v1107 = vpop.xlane.xlu0 %1106
        %v1108 = vsel %vm1104, %v1103, -inf
        %1109 = vmax.xlane.f32.xlu0 %v1108
        %v1110 = vpop.xlane.xlu0 %1109
        %v1111 = vsub.f32 %v1102, %v1107
        %v1112 = vsub.f32 %v1103, %v1110
        %v1113 = vmul.f32 %v1111, 1.442695
        %v1114 = vpow.pop %v1113
        %v1115 = vmul.f32 %v1112, 1.442695
        %v1116 = vpow.pop %v1115
        %v1117 = vsel %vm1104, %v1114, 0.0
        %1118 = vadd.xlane.f32.xlu0 %v1117
        %v1119 = vpop.xlane.xlu0 %1118
        %v1120 = vsel %vm1104, %v1116, 0.0
        %1121 = vadd.xlane.f32.xlu0 %v1120
        %v1122 = vpop.xlane.xlu0 %1121
        %v1123 = vrcp.pop %v1119
        %v1124 = vrcp.pop %v1122
        %v1125 = vmul.f32 %v1114, %v1123
        %v1126 = vmul.f32 %v1116, %v1124
        %v1127 = vpack.c.bf16 %v1126, %v1125
        %v1128 = vpack.c.bf16 %v1075, %v1073
        %v1130 = vsel %vm1104, %v1127, 0
        %1132 = vmatpush.bf16.msra.mxu0 0
        %1133 = vmatpush.bf16.msra.mxu0 0
        %1134 = vmatpush.bf16.msra.mxu0 0
        %1135 = vmatpush.bf16.msra.mxu0 0
        %1136 = vmatpush.bf16.msra.mxu0 0
        %1137 = vmatpush.bf16.msra.mxu0 0
        %1138 = vmatpush.bf16.msra.mxu0 0
        %1139 = vmatpush.bf16.msra.mxu0 %v1128
        %1140 = vmatmul.bf16.gmra.mxu0 %v1130
        %v1141 = vpop.f32.mrf.mxu0
        %v1142 = vadd.f32 0.0, %v1141
        %v1143 = vpop.f32.mrf.mxu0
        %v1144 = vadd.f32 0.0, %v1143
        %1145 = vdwg.mxu0
        %1146 = vst.msk [vmem:[#allocation2] sm:$0xff] %vm1081, %v1142
        %1147 = vst.msk [vmem:[#allocation2 + $0x8] sm:$0xff] %vm1081, %v1144
        %1149 = vrot.lane.b32.xlu0 %v1079, 96
        %v1150 = vpop.permute.xlu0 %1149
        %1152 = vrot.lane.b32.xlu0 %v1080, 96
        %v1153 = vpop.permute.xlu0 %1152
        %v1155 = vsel %vm1081, %v1150, 0
        %v1158 = vsel %vm1081, %v1153, 0
        %1160 = vmatpush.bf16.xpose.msra.mxu0 0
        %1161 = vmatpush.bf16.xpose.msra.mxu0 0
        %1162 = vmatpush.bf16.xpose.msra.mxu0 0
        %1163 = vmatpush.bf16.xpose.msra.mxu0 0
        %1164 = vmatpush.bf16.xpose.msra.mxu0 0
        %1165 = vmatpush.bf16.xpose.msra.mxu0 0
        %1166 = vmatpush.bf16.xpose.msra.mxu0 0
        %1167 = vmatpush.bf16.xpose.msra.mxu0 %v1158
        %1168 = vmatmul.bf16.gmra.mxu0 %v1155
        %v1169 = vpop.f32.mrf.mxu0
        %v1170 = vadd.f32 0.0, %v1169
        %v1171 = vpop.f32.mrf.mxu0
        %v1172 = vadd.f32 0.0, %v1171
        %1173 = vdwg.mxu0
        %v1174 = vsel %vm805, %v1170, -1e+30
        %v1175 = vsel %vm806, %v1172, -1e+30
        %v1176 = vsel %vm1104, %v1174, -inf
        %1177 = vmax.xlane.f32.xlu0 %v1176
        %v1178 = vpop.xlane.xlu0 %1177
        %v1179 = vsel %vm1104, %v1175, -inf
        %1180 = vmax.xlane.f32.xlu0 %v1179
        %v1181 = vpop.xlane.xlu0 %1180
        %v1182 = vsub.f32 %v1174, %v1178
        %v1183 = vsub.f32 %v1175, %v1181
        %v1184 = vmul.f32 %v1182, 1.442695
        %v1185 = vpow.pop %v1184
        %v1186 = vmul.f32 %v1183, 1.442695
        %v1187 = vpow.pop %v1186
        %v1188 = vsel %vm1104, %v1185, 0.0
        %1189 = vadd.xlane.f32.xlu0 %v1188
        %v1190 = vpop.xlane.xlu0 %1189
        %v1191 = vsel %vm1104, %v1187, 0.0
        %1192 = vadd.xlane.f32.xlu0 %v1191
        %v1193 = vpop.xlane.xlu0 %1192
        %v1194 = vrcp.pop %v1190
        %v1195 = vrcp.pop %v1193
        %v1196 = vmul.f32 %v1185, %v1194
        %v1197 = vmul.f32 %v1187, %v1195
        %v1198 = vpack.c.bf16 %v1197, %v1196
        %1200 = vrot.lane.b32.xlu0 %v1128, 96
        %v1201 = vpop.permute.xlu0 %1200
        %v1204 = vsel %vm1104, %v1198, 0
        %1206 = vmatpush.bf16.msra.mxu0 0
        %1207 = vmatpush.bf16.msra.mxu0 0
        %1208 = vmatpush.bf16.msra.mxu0 0
        %1209 = vmatpush.bf16.msra.mxu0 0
        %1210 = vmatpush.bf16.msra.mxu0 0
        %1211 = vmatpush.bf16.msra.mxu0 0
        %1212 = vmatpush.bf16.msra.mxu0 0
        %1213 = vmatpush.bf16.msra.mxu0 %v1201
        %1214 = vmatmul.bf16.gmra.mxu0 %v1204
        %v1215 = vpop.f32.mrf.mxu0
        %v1216 = vadd.f32 0.0, %v1215
        %v1217 = vpop.f32.mrf.mxu0
        %v1218 = vadd.f32 0.0, %v1217
        %1219 = vdwg.mxu0
        %1222 = vrot.lane.b32.xlu0 %v1216, 32
        %v1223 = vpop.permute.xlu0 %1222
        %1224 = vrot.lane.b32.xlu0 %v1218, 32
        %v1225 = vpop.permute.xlu0 %1224
        %vm1228 = vcmask 523520
        %1229 = vst.msk [vmem:[#allocation2] sm:$0xff] %vm1228, %v1223
        %1230 = vst.msk [vmem:[#allocation2 + $0x8] sm:$0xff] %vm1228, %v1225
        %1231 = vrot.lane.b32.xlu0 %v1079, 64
        %v1232 = vpop.permute.xlu0 %1231
        %1233 = vrot.lane.b32.xlu0 %v1080, 64
        %v1234 = vpop.permute.xlu0 %1233
        %v1236 = vsel %vm1081, %v1232, 0
        %v1239 = vsel %vm1081, %v1234, 0
        %1241 = vmatpush.bf16.xpose.msra.mxu0 0
        %1242 = vmatpush.bf16.xpose.msra.mxu0 0
        %1243 = vmatpush.bf16.xpose.msra.mxu0 0
        %1244 = vmatpush.bf16.xpose.msra.mxu0 0
        %1245 = vmatpush.bf16.xpose.msra.mxu0 0
        %1246 = vmatpush.bf16.xpose.msra.mxu0 0
        %1247 = vmatpush.bf16.xpose.msra.mxu0 0
        %1248 = vmatpush.bf16.xpose.msra.mxu0 %v1239
        %1249 = vmatmul.bf16.gmra.mxu0 %v1236
        %v1250 = vpop.f32.mrf.mxu0
        %v1251 = vadd.f32 0.0, %v1250
        %v1252 = vpop.f32.mrf.mxu0
        %v1253 = vadd.f32 0.0, %v1252
        %1254 = vdwg.mxu0
        %v1255 = vsel %vm805, %v1251, -1e+30
        %v1256 = vsel %vm806, %v1253, -1e+30
        %v1257 = vsel %vm1104, %v1255, -inf
        %1258 = vmax.xlane.f32.xlu0 %v1257
        %v1259 = vpop.xlane.xlu0 %1258
        %v1260 = vsel %vm1104, %v1256, -inf
        %1261 = vmax.xlane.f32.xlu0 %v1260
        %v1262 = vpop.xlane.xlu0 %1261
        %v1263 = vsub.f32 %v1255, %v1259
        %v1264 = vsub.f32 %v1256, %v1262
        %v1265 = vmul.f32 %v1263, 1.442695
        %v1266 = vpow.pop %v1265
        %v1267 = vmul.f32 %v1264, 1.442695
        %v1268 = vpow.pop %v1267
        %v1269 = vsel %vm1104, %v1266, 0.0
        %1270 = vadd.xlane.f32.xlu0 %v1269
        %v1271 = vpop.xlane.xlu0 %1270
        %v1272 = vsel %vm1104, %v1268, 0.0
        %1273 = vadd.xlane.f32.xlu0 %v1272
        %v1274 = vpop.xlane.xlu0 %1273
        %v1275 = vrcp.pop %v1271
        %v1276 = vrcp.pop %v1274
        %v1277 = vmul.f32 %v1266, %v1275
        %v1278 = vmul.f32 %v1268, %v1276
        %v1279 = vpack.c.bf16 %v1278, %v1277
        %1280 = vrot.lane.b32.xlu0 %v1128, 64
        %v1281 = vpop.permute.xlu0 %1280
        %v1284 = vsel %vm1104, %v1279, 0
        %1286 = vmatpush.bf16.msra.mxu0 0
        %1287 = vmatpush.bf16.msra.mxu0 0
        %1288 = vmatpush.bf16.msra.mxu0 0
        %1289 = vmatpush.bf16.msra.mxu0 0
        %1290 = vmatpush.bf16.msra.mxu0 0
        %1291 = vmatpush.bf16.msra.mxu0 0
        %1292 = vmatpush.bf16.msra.mxu0 0
        %1293 = vmatpush.bf16.msra.mxu0 %v1281
        %1294 = vmatmul.bf16.gmra.mxu0 %v1284
        %v1295 = vpop.f32.mrf.mxu0
        %v1296 = vadd.f32 0.0, %v1295
        %v1297 = vpop.f32.mrf.mxu0
        %v1298 = vadd.f32 0.0, %v1297
        %1299 = vdwg.mxu0
        %1302 = vrot.lane.b32.xlu0 %v1296, 64
        %v1303 = vpop.permute.xlu0 %1302
        %1304 = vrot.lane.b32.xlu0 %v1298, 64
        %v1305 = vpop.permute.xlu0 %1304
        %vm1308 = vcmask 785920
        %1309 = vst.msk [vmem:[#allocation2] sm:$0xff] %vm1308, %v1303
        %1310 = vst.msk [vmem:[#allocation2 + $0x8] sm:$0xff] %vm1308, %v1305
        %1311 = vrot.lane.b32.xlu0 %v1079, 32
        %v1312 = vpop.permute.xlu0 %1311
        %1313 = vrot.lane.b32.xlu0 %v1080, 32
        %v1314 = vpop.permute.xlu0 %1313
        %v1316 = vsel %vm1081, %v1312, 0
        %v1319 = vsel %vm1081, %v1314, 0
        %1321 = vmatpush.bf16.xpose.msra.mxu0 0
        %1322 = vmatpush.bf16.xpose.msra.mxu0 0
        %1323 = vmatpush.bf16.xpose.msra.mxu0 0
        %1324 = vmatpush.bf16.xpose.msra.mxu0 0
        %1325 = vmatpush.bf16.xpose.msra.mxu0 0
        %1326 = vmatpush.bf16.xpose.msra.mxu0 0
        %1327 = vmatpush.bf16.xpose.msra.mxu0 0
        %1328 = vmatpush.bf16.xpose.msra.mxu0 %v1319
        %1329 = vmatmul.bf16.gmra.mxu0 %v1316
        %v1330 = vpop.f32.mrf.mxu0
        %v1331 = vadd.f32 0.0, %v1330
        %v1332 = vpop.f32.mrf.mxu0
        %v1333 = vadd.f32 0.0, %v1332
        %1334 = vdwg.mxu0
        %v1335 = vsel %vm805, %v1331, -1e+30
        %v1336 = vsel %vm806, %v1333, -1e+30
        %v1337 = vsel %vm1104, %v1335, -inf
        %1338 = vmax.xlane.f32.xlu0 %v1337
        %v1339 = vpop.xlane.xlu0 %1338
        %v1340 = vsel %vm1104, %v1336, -inf
        %1341 = vmax.xlane.f32.xlu0 %v1340
        %v1342 = vpop.xlane.xlu0 %1341
        %v1343 = vsub.f32 %v1335, %v1339
        %v1344 = vsub.f32 %v1336, %v1342
        %v1345 = vmul.f32 %v1343, 1.442695
        %v1346 = vpow.pop %v1345
        %v1347 = vmul.f32 %v1344, 1.442695
        %v1348 = vpow.pop %v1347
        %v1349 = vsel %vm1104, %v1346, 0.0
        %1350 = vadd.xlane.f32.xlu0 %v1349
        %v1351 = vpop.xlane.xlu0 %1350
        %v1352 = vsel %vm1104, %v1348, 0.0
        %1353 = vadd.xlane.f32.xlu0 %v1352
        %v1354 = vpop.xlane.xlu0 %1353
        %v1355 = vrcp.pop %v1351
        %v1356 = vrcp.pop %v1354
        %v1357 = vmul.f32 %v1346, %v1355
        %v1358 = vmul.f32 %v1348, %v1356
        %v1359 = vpack.c.bf16 %v1358, %v1357
        %1360 = vrot.lane.b32.xlu0 %v1128, 32
        %v1361 = vpop.permute.xlu0 %1360
        %v1364 = vsel %vm1104, %v1359, 0
        %1366 = vmatpush.bf16.msra.mxu0 0
        %1367 = vmatpush.bf16.msra.mxu0 0
        %1368 = vmatpush.bf16.msra.mxu0 0
        %1369 = vmatpush.bf16.msra.mxu0 0
        %1370 = vmatpush.bf16.msra.mxu0 0
        %1371 = vmatpush.bf16.msra.mxu0 0
        %1372 = vmatpush.bf16.msra.mxu0 0
        %1373 = vmatpush.bf16.msra.mxu0 %v1361
        %1374 = vmatmul.bf16.gmra.mxu0 %v1364
        %v1375 = vpop.f32.mrf.mxu0
        %v1376 = vadd.f32 0.0, %v1375
        %v1377 = vpop.f32.mrf.mxu0
        %v1378 = vadd.f32 0.0, %v1377
        %1379 = vdwg.mxu0
        %1382 = vrot.lane.b32.xlu0 %v1376, 96
        %v1383 = vpop.permute.xlu0 %1382
        %1384 = vrot.lane.b32.xlu0 %v1378, 96
        %v1385 = vpop.permute.xlu0 %1384
        %vm1388 = vcmask 1048320
        %1389 = vst.msk [vmem:[#allocation2] sm:$0xff] %vm1388, %v1383
        %1390 = vst.msk [vmem:[#allocation2 + $0x8] sm:$0xff] %vm1388, %v1385
        %v1391 = vld [vmem:[#allocation2] sm:$0xff]
        %v1392 = vld [vmem:[#allocation2 + $0x8] sm:$0xff]
        %v1393 = vld [vmem:[#allocation11] sm:$0xf]
        %v1394 = vld [vmem:[#allocation11 + $0x4] sm:$0xf]
        %v1395 = vld [vmem:[#allocation11 + $0x8] sm:$0xf]
        %v1396 = vld [vmem:[#allocation11 + $0xc] sm:$0xf]
        %v1397 = vld [vmem:[#allocation11 + $0x10] sm:$0xf]
        %v1398 = vld [vmem:[#allocation11 + $0x14] sm:$0xf]
        %v1399 = vld [vmem:[#allocation11 + $0x18] sm:$0xf]
        %v1400 = vld [vmem:[#allocation11 + $0x1c] sm:$0xf]
        %v1401 = vld [vmem:[#allocation11 + $0x20] sm:$0xf]
        %v1402 = vld [vmem:[#allocation11 + $0x24] sm:$0xf]
        %v1403 = vld [vmem:[#allocation11 + $0x28] sm:$0xf]
        %v1404 = vld [vmem:[#allocation11 + $0x2c] sm:$0xf]
        %v1405 = vld [vmem:[#allocation11 + $0x30] sm:$0xf]
        %v1406 = vld [vmem:[#allocation11 + $0x34] sm:$0xf]
        %v1407 = vld [vmem:[#allocation11 + $0x38] sm:$0xf]
        %v1408 = vld [vmem:[#allocation11 + $0x3c] sm:$0xf]
        %v1409 = vpack.c.bf16 %v1392, %v1391
        %v1426 = vunpack.c.l.b16 %v1393
        %v1427 = vunpack.c.l.b16 %v1394
        %v1428 = vunpack.c.l.b16 %v1395
        %v1429 = vunpack.c.l.b16 %v1396
        %v1430 = vunpack.c.l.b16 %v1397
        %v1431 = vunpack.c.l.b16 %v1398
        %v1432 = vunpack.c.l.b16 %v1399
        %v1433 = vunpack.c.l.b16 %v1400
        %v1434 = vunpack.c.l.b16 %v1401
        %v1435 = vunpack.c.l.b16 %v1402
        %v1436 = vunpack.c.l.b16 %v1403
        %v1437 = vunpack.c.l.b16 %v1404
        %v1438 = vunpack.c.l.b16 %v1405
        %v1439 = vunpack.c.l.b16 %v1406
        %v1440 = vunpack.c.l.b16 %v1407
        %v1441 = vunpack.c.l.b16 %v1408
        %v1442 = vpack.c.b16 %v1427, %v1426
        %v1443 = vpack.c.b16 %v1429, %v1428
        %v1444 = vpack.c.b16 %v1431, %v1430
        %v1445 = vpack.c.b16 %v1433, %v1432
        %v1446 = vpack.c.b16 %v1435, %v1434
        %v1447 = vpack.c.b16 %v1437, %v1436
        %v1448 = vpack.c.b16 %v1439, %v1438
        %v1449 = vpack.c.b16 %v1441, %v1440
        %1458 = vmatpush.bf16.msra.mxu0 %v1449
        %1459 = vmatpush.bf16.msra.mxu0 %v1448
        %1460 = vmatpush.bf16.msra.mxu0 %v1447
        %1461 = vmatpush.bf16.msra.mxu0 %v1446
        %1462 = vmatpush.bf16.msra.mxu0 %v1445
        %1463 = vmatpush.bf16.msra.mxu0 %v1444
        %1464 = vmatpush.bf16.msra.mxu0 %v1443
        %1465 = vmatpush.bf16.msra.mxu0 %v1442
        %1466 = vmatmul.bf16.gmra.mxu0 %v1409
        %v1467 = vpop.f32.mrf.mxu0
        %v1468 = vadd.f32 0.0, %v1467
        %v1469 = vpop.f32.mrf.mxu0
        %v1470 = vadd.f32 0.0, %v1469
        %1471 = vdwg.mxu0
        %v1472 = vadd.f32 %v798, %v1468
        %v1473 = vadd.f32 %v799, %v1470
        %v1474 = vld [vmem:[#allocation12] sm:$0x1]
        %v1476 = vperm.slane %v1474, 0
        %v1478 = vadd.f32 %v1472, %v1476
        %v1479 = vadd.f32 %v1473, %v1476
        %v1480 = vld [vmem:[#allocation14] sm:$0x1]
        %v1481 = vld [vmem:[%s9] sm:$0x1]
        %1482 = vadd.xlane.f32.xlu0 %v1478
        %v1483 = vpop.xlane.xlu0 %1482
        %1484 = vadd.xlane.f32.xlu0 %v1479
        %v1485 = vpop.xlane.xlu0 %1484
        %v1486 = vmul.f32 %v1483, %v819
        %v1487 = vmul.f32 %v1485, %v819
        %v1488 = vsub.f32 %v1478, %v1486
        %v1489 = vsub.f32 %v1479, %v1487
        %v1490 = vmul.f32 %v1488, %v1488
        %v1491 = vmul.f32 %v1489, %v1489
        %1492 = vadd.xlane.f32.xlu0 %v1490
        %v1493 = vpop.xlane.xlu0 %1492
        %1494 = vadd.xlane.f32.xlu0 %v1491
        %v1495 = vpop.xlane.xlu0 %1494
        %v1496 = vmul.f32 %v1493, %v819
        %v1497 = vmul.f32 %v1495, %v819
        %v1498 = vadd.f32 %v1496, 1e-05
        %v1499 = vadd.f32 %v1497, 1e-05
        %v1500 = vrsqrt.pop %v1498
        %v1501 = vmul.f32 %v1500, %v1498
        %v1502 = vmul.f32 %v1501, %v1500
        %v1503 = vmul.f32 0.5, %v1502
        %v1504 = vsub.f32 1.5, %v1503
        %v1505 = vmul.f32 %v1500, %v1504
        %vm1506 = vweird.f32 %v1498
        %vm1507 = vweird.f32 %v1500
        %vm1508 = vmor %vm1506, %vm1507
        %v1509 = vsel %vm1508, %v1500, %v1505
        %v1510 = vrsqrt.pop %v1499
        %v1511 = vmul.f32 %v1510, %v1499
        %v1512 = vmul.f32 %v1511, %v1510
        %v1513 = vmul.f32 0.5, %v1512
        %v1514 = vsub.f32 1.5, %v1513
        %v1515 = vmul.f32 %v1510, %v1514
        %vm1516 = vweird.f32 %v1499
        %vm1517 = vweird.f32 %v1510
        %vm1518 = vmor %vm1516, %vm1517
        %v1519 = vsel %vm1518, %v1510, %v1515
        %v1520 = vmul.f32 %v1488, %v1509
        %v1521 = vmul.f32 %v1489, %v1519
        %v1523 = vperm.slane %v1480, 0
        %v1525 = vmul.f32 %v1520, %v1523
        %v1526 = vmul.f32 %v1521, %v1523
        %v1528 = vperm.slane %v1481, 0
        %v1530 = vadd.f32 %v1525, %v1528
        %v1531 = vadd.f32 %v1526, %v1528
        %v1532 = vld [vmem:[#allocation15] sm:$0xff]
        %v1533 = vld [vmem:[#allocation15 + $0x8] sm:$0xff]
        %v1534 = vld [vmem:[#allocation15 + $0x10] sm:$0xff]
        %v1535 = vld [vmem:[#allocation15 + $0x18] sm:$0xff]
        %v1536 = vld [vmem:[#allocation15 + $0x20] sm:$0xff]
        %v1537 = vld [vmem:[#allocation15 + $0x28] sm:$0xff]
        %v1538 = vld [vmem:[#allocation15 + $0x30] sm:$0xff]
        %v1539 = vld [vmem:[#allocation15 + $0x38] sm:$0xff]
        %v1540 = vld [vmem:[#allocation15 + $0x40] sm:$0xff]
        %v1541 = vld [vmem:[#allocation15 + $0x48] sm:$0xff]
        %v1542 = vld [vmem:[#allocation15 + $0x50] sm:$0xff]
        %v1543 = vld [vmem:[#allocation15 + $0x58] sm:$0xff]
        %v1544 = vld [vmem:[#allocation15 + $0x60] sm:$0xff]
        %v1545 = vld [vmem:[#allocation15 + $0x68] sm:$0xff]
        %v1546 = vld [vmem:[#allocation15 + $0x70] sm:$0xff]
        %v1547 = vld [vmem:[#allocation15 + $0x78] sm:$0xff]
        %v1548 = vld [vmem:[#allocation15 + $0x80] sm:$0xff]
        %v1549 = vld [vmem:[#allocation15 + $0x88] sm:$0xff]
        %v1550 = vld [vmem:[#allocation15 + $0x90] sm:$0xff]
        %v1551 = vld [vmem:[#allocation15 + $0x98] sm:$0xff]
        %v1552 = vld [vmem:[#allocation15 + $0xa0] sm:$0xff]
        %v1553 = vld [vmem:[#allocation15 + $0xa8] sm:$0xff]
        %v1554 = vld [vmem:[#allocation15 + $0xb0] sm:$0xff]
        %v1555 = vld [vmem:[#allocation15 + $0xb8] sm:$0xff]
        %v1556 = vld [vmem:[#allocation15 + $0xc0] sm:$0xff]
        %v1557 = vld [vmem:[#allocation15 + $0xc8] sm:$0xff]
        %v1558 = vld [vmem:[#allocation15 + $0xd0] sm:$0xff]
        %v1559 = vld [vmem:[#allocation15 + $0xd8] sm:$0xff]
        %v1560 = vld [vmem:[#allocation15 + $0xe0] sm:$0xff]
        %v1561 = vld [vmem:[#allocation15 + $0xe8] sm:$0xff]
        %v1562 = vld [vmem:[#allocation15 + $0xf0] sm:$0xff]
        %v1563 = vld [vmem:[#allocation15 + $0xf8] sm:$0xff]
        %v1564 = vpack.c.bf16 %v1531, %v1530
        %v1565 = vld [vmem:[%s11] sm:$0xf]
        %v1567 = vperm.slane %v1565, 0
        %v1568 = vperm.slane %v1565, 1
        %v1569 = vperm.slane %v1565, 2
        %v1570 = vperm.slane %v1565, 3
        %v1607 = vunpack.c.l.b16 %v1532
        %v1608 = vunpack.c.h.b16 %v1532
        %v1609 = vunpack.c.l.b16 %v1533
        %v1610 = vunpack.c.h.b16 %v1533
        %v1611 = vunpack.c.l.b16 %v1534
        %v1612 = vunpack.c.h.b16 %v1534
        %v1613 = vunpack.c.l.b16 %v1535
        %v1614 = vunpack.c.h.b16 %v1535
        %v1615 = vunpack.c.l.b16 %v1536
        %v1616 = vunpack.c.h.b16 %v1536
        %v1617 = vunpack.c.l.b16 %v1537
        %v1618 = vunpack.c.h.b16 %v1537
        %v1619 = vunpack.c.l.b16 %v1538
        %v1620 = vunpack.c.h.b16 %v1538
        %v1621 = vunpack.c.l.b16 %v1539
        %v1622 = vunpack.c.h.b16 %v1539
        %v1623 = vunpack.c.l.b16 %v1540
        %v1624 = vunpack.c.h.b16 %v1540
        %v1625 = vunpack.c.l.b16 %v1541
        %v1626 = vunpack.c.h.b16 %v1541
        %v1627 = vunpack.c.l.b16 %v1542
        %v1628 = vunpack.c.h.b16 %v1542
        %v1629 = vunpack.c.l.b16 %v1543
        %v1630 = vunpack.c.h.b16 %v1543
        %v1631 = vunpack.c.l.b16 %v1544
        %v1632 = vunpack.c.h.b16 %v1544
        %v1633 = vunpack.c.l.b16 %v1545
        %v1634 = vunpack.c.h.b16 %v1545
        %v1635 = vunpack.c.l.b16 %v1546
        %v1636 = vunpack.c.h.b16 %v1546
        %v1637 = vunpack.c.l.b16 %v1547
        %v1638 = vunpack.c.h.b16 %v1547
        %v1639 = vunpack.c.l.b16 %v1548
        %v1640 = vunpack.c.h.b16 %v1548
        %v1641 = vunpack.c.l.b16 %v1549
        %v1642 = vunpack.c.h.b16 %v1549
        %v1643 = vunpack.c.l.b16 %v1550
        %v1644 = vunpack.c.h.b16 %v1550
        %v1645 = vunpack.c.l.b16 %v1551
        %v1646 = vunpack.c.h.b16 %v1551
        %v1647 = vunpack.c.l.b16 %v1552
        %v1648 = vunpack.c.h.b16 %v1552
        %v1649 = vunpack.c.l.b16 %v1553
        %v1650 = vunpack.c.h.b16 %v1553
        %v1651 = vunpack.c.l.b16 %v1554
        %v1652 = vunpack.c.h.b16 %v1554
        %v1653 = vunpack.c.l.b16 %v1555
        %v1654 = vunpack.c.h.b16 %v1555
        %v1655 = vunpack.c.l.b16 %v1556
        %v1656 = vunpack.c.h.b16 %v1556
        %v1657 = vunpack.c.l.b16 %v1557
        %v1658 = vunpack.c.h.b16 %v1557
        %v1659 = vunpack.c.l.b16 %v1558
        %v1660 = vunpack.c.h.b16 %v1558
        %v1661 = vunpack.c.l.b16 %v1559
        %v1662 = vunpack.c.h.b16 %v1559
        %v1663 = vunpack.c.l.b16 %v1560
        %v1664 = vunpack.c.h.b16 %v1560
        %v1665 = vunpack.c.l.b16 %v1561
        %v1666 = vunpack.c.h.b16 %v1561
        %v1667 = vunpack.c.l.b16 %v1562
        %v1668 = vunpack.c.h.b16 %v1562
        %v1669 = vunpack.c.l.b16 %v1563
        %v1670 = vunpack.c.h.b16 %v1563
        %v1671 = vpack.c.b16 %v1611, %v1607
        %v1672 = vpack.c.b16 %v1612, %v1608
        %v1673 = vpack.c.b16 %v1613, %v1609
        %v1674 = vpack.c.b16 %v1614, %v1610
        %v1675 = vpack.c.b16 %v1619, %v1615
        %v1676 = vpack.c.b16 %v1620, %v1616
        %v1677 = vpack.c.b16 %v1621, %v1617
        %v1678 = vpack.c.b16 %v1622, %v1618
        %v1679 = vpack.c.b16 %v1627, %v1623
        %v1680 = vpack.c.b16 %v1628, %v1624
        %v1681 = vpack.c.b16 %v1629, %v1625
        %v1682 = vpack.c.b16 %v1630, %v1626
        %v1683 = vpack.c.b16 %v1635, %v1631
        %v1684 = vpack.c.b16 %v1636, %v1632
        %v1685 = vpack.c.b16 %v1637, %v1633
        %v1686 = vpack.c.b16 %v1638, %v1634
        %v1687 = vpack.c.b16 %v1643, %v1639
        %v1688 = vpack.c.b16 %v1644, %v1640
        %v1689 = vpack.c.b16 %v1645, %v1641
        %v1690 = vpack.c.b16 %v1646, %v1642
        %v1691 = vpack.c.b16 %v1651, %v1647
        %v1692 = vpack.c.b16 %v1652, %v1648
        %v1693 = vpack.c.b16 %v1653, %v1649
        %v1694 = vpack.c.b16 %v1654, %v1650
        %v1695 = vpack.c.b16 %v1659, %v1655
        %v1696 = vpack.c.b16 %v1660, %v1656
        %v1697 = vpack.c.b16 %v1661, %v1657
        %v1698 = vpack.c.b16 %v1662, %v1658
        %v1699 = vpack.c.b16 %v1667, %v1663
        %v1700 = vpack.c.b16 %v1668, %v1664
        %v1701 = vpack.c.b16 %v1669, %v1665
        %v1702 = vpack.c.b16 %v1670, %v1666
        %1735 = vmatpush.bf16.msra.mxu0 %v1699
        %1736 = vmatpush.bf16.msra.mxu0 %v1695
        %1737 = vmatpush.bf16.msra.mxu0 %v1691
        %1738 = vmatpush.bf16.msra.mxu0 %v1687
        %1739 = vmatpush.bf16.msra.mxu0 %v1683
        %1740 = vmatpush.bf16.msra.mxu0 %v1679
        %1741 = vmatpush.bf16.msra.mxu0 %v1675
        %1742 = vmatpush.bf16.msra.mxu0 %v1671
        %1743 = vmatmul.bf16.gmra.mxu0 %v1564
        %v1744 = vpop.f32.mrf.mxu0
        %v1745 = vadd.f32 %v1567, %v1744
        %v1746 = vpop.f32.mrf.mxu0
        %v1747 = vadd.f32 %v1567, %v1746
        %1748 = vdwg.mxu0
        %1749 = vmatpush.bf16.msra.mxu0 %v1700
        %1750 = vmatpush.bf16.msra.mxu0 %v1696
        %1751 = vmatpush.bf16.msra.mxu0 %v1692
        %1752 = vmatpush.bf16.msra.mxu0 %v1688
        %1753 = vmatpush.bf16.msra.mxu0 %v1684
        %1754 = vmatpush.bf16.msra.mxu0 %v1680
        %1755 = vmatpush.bf16.msra.mxu0 %v1676
        %1756 = vmatpush.bf16.msra.mxu0 %v1672
        %1757 = vmatmul.bf16.gmra.mxu0 %v1564
        %v1758 = vpop.f32.mrf.mxu0
        %v1759 = vadd.f32 %v1568, %v1758
        %v1760 = vpop.f32.mrf.mxu0
        %v1761 = vadd.f32 %v1568, %v1760
        %1762 = vdwg.mxu0
        %1763 = vmatpush.bf16.msra.mxu0 %v1701
        %1764 = vmatpush.bf16.msra.mxu0 %v1697
        %1765 = vmatpush.bf16.msra.mxu0 %v1693
        %1766 = vmatpush.bf16.msra.mxu0 %v1689
        %1767 = vmatpush.bf16.msra.mxu0 %v1685
        %1768 = vmatpush.bf16.msra.mxu0 %v1681
        %1769 = vmatpush.bf16.msra.mxu0 %v1677
        %1770 = vmatpush.bf16.msra.mxu0 %v1673
        %1771 = vmatmul.bf16.gmra.mxu0 %v1564
        %v1772 = vpop.f32.mrf.mxu0
        %v1773 = vadd.f32 %v1569, %v1772
        %v1774 = vpop.f32.mrf.mxu0
        %v1775 = vadd.f32 %v1569, %v1774
        %1776 = vdwg.mxu0
        %1777 = vmatpush.bf16.msra.mxu0 %v1702
        %1778 = vmatpush.bf16.msra.mxu0 %v1698
        %1779 = vmatpush.bf16.msra.mxu0 %v1694
        %1780 = vmatpush.bf16.msra.mxu0 %v1690
        %1781 = vmatpush.bf16.msra.mxu0 %v1686
        %1782 = vmatpush.bf16.msra.mxu0 %v1682
        %1783 = vmatpush.bf16.msra.mxu0 %v1678
        %1784 = vmatpush.bf16.msra.mxu0 %v1674
        %1785 = vmatmul.bf16.gmra.mxu0 %v1564
        %v1786 = vpop.f32.mrf.mxu0
        %v1787 = vadd.f32 %v1570, %v1786
        %v1788 = vpop.f32.mrf.mxu0
        %v1789 = vadd.f32 %v1570, %v1788
        %1790 = vdwg.mxu0
        %v1791 = vmul.f32 %v1745, %v1745
        %v1792 = vmul.f32 %v1759, %v1759
        %v1793 = vmul.f32 %v1773, %v1773
        %v1794 = vmul.f32 %v1787, %v1787
        %v1795 = vmul.f32 %v1747, %v1747
        %v1796 = vmul.f32 %v1761, %v1761
        %v1797 = vmul.f32 %v1775, %v1775
        %v1798 = vmul.f32 %v1789, %v1789
        %v1799 = vmul.f32 %v1745, %v1791
        %v1800 = vmul.f32 %v1759, %v1792
        %v1801 = vmul.f32 %v1773, %v1793
        %v1802 = vmul.f32 %v1787, %v1794
        %v1803 = vmul.f32 %v1747, %v1795
        %v1804 = vmul.f32 %v1761, %v1796
        %v1805 = vmul.f32 %v1775, %v1797
        %v1806 = vmul.f32 %v1789, %v1798
        %v1807 = vmul.f32 %v1799, 0.044715
        %v1808 = vmul.f32 %v1800, 0.044715
        %v1809 = vmul.f32 %v1801, 0.044715
        %v1810 = vmul.f32 %v1802, 0.044715
        %v1811 = vmul.f32 %v1803, 0.044715
        %v1812 = vmul.f32 %v1804, 0.044715
        %v1813 = vmul.f32 %v1805, 0.044715
        %v1814 = vmul.f32 %v1806, 0.044715
        %v1815 = vadd.f32 %v1745, %v1807
        %v1816 = vadd.f32 %v1759, %v1808
        %v1817 = vadd.f32 %v1773, %v1809
        %v1818 = vadd.f32 %v1787, %v1810
        %v1819 = vadd.f32 %v1747, %v1811
        %v1820 = vadd.f32 %v1761, %v1812
        %v1821 = vadd.f32 %v1775, %v1813
        %v1822 = vadd.f32 %v1789, %v1814
        %v1823 = vmul.f32 %v1815, 0.7978846
        %v1824 = vmul.f32 %v1816, 0.7978846
        %v1825 = vmul.f32 %v1817, 0.7978846
        %v1826 = vmul.f32 %v1818, 0.7978846
        %v1827 = vmul.f32 %v1819, 0.7978846
        %v1828 = vmul.f32 %v1820, 0.7978846
        %v1829 = vmul.f32 %v1821, 0.7978846
        %v1830 = vmul.f32 %v1822, 0.7978846
        %v1831 = vtanh.pop %v1823
        %v1832 = vtanh.pop %v1824
        %v1833 = vtanh.pop %v1825
        %v1834 = vtanh.pop %v1826
        %v1835 = vtanh.pop %v1827
        %v1836 = vtanh.pop %v1828
        %v1837 = vtanh.pop %v1829
        %v1838 = vtanh.pop %v1830
        %v1839 = vadd.f32 %v1831, 1.0
        %v1840 = vadd.f32 %v1832, 1.0
        %v1841 = vadd.f32 %v1833, 1.0
        %v1842 = vadd.f32 %v1834, 1.0
        %v1843 = vadd.f32 %v1835, 1.0
        %v1844 = vadd.f32 %v1836, 1.0
        %v1845 = vadd.f32 %v1837, 1.0
        %v1846 = vadd.f32 %v1838, 1.0
        %v1847 = vmul.f32 %v1839, 0.5
        %v1848 = vmul.f32 %v1840, 0.5
        %v1849 = vmul.f32 %v1841, 0.5
        %v1850 = vmul.f32 %v1842, 0.5
        %v1851 = vmul.f32 %v1843, 0.5
        %v1852 = vmul.f32 %v1844, 0.5
        %v1853 = vmul.f32 %v1845, 0.5
        %v1854 = vmul.f32 %v1846, 0.5
        %v1855 = vmul.f32 %v1745, %v1847
        %v1856 = vmul.f32 %v1759, %v1848
        %v1857 = vmul.f32 %v1773, %v1849
        %v1858 = vmul.f32 %v1787, %v1850
        %v1859 = vmul.f32 %v1747, %v1851
        %v1860 = vmul.f32 %v1761, %v1852
        %v1861 = vmul.f32 %v1775, %v1853
        %v1862 = vmul.f32 %v1789, %v1854
        %v1863 = vld [vmem:[#allocation17] sm:$0xf]
        %v1864 = vld [vmem:[#allocation17 + $0x4] sm:$0xf]
        %v1865 = vld [vmem:[#allocation17 + $0x8] sm:$0xf]
        %v1866 = vld [vmem:[#allocation17 + $0xc] sm:$0xf]
        %v1867 = vld [vmem:[#allocation17 + $0x10] sm:$0xf]
        %v1868 = vld [vmem:[#allocation17 + $0x14] sm:$0xf]
        %v1869 = vld [vmem:[#allocation17 + $0x18] sm:$0xf]
        %v1870 = vld [vmem:[#allocation17 + $0x1c] sm:$0xf]
        %v1871 = vld [vmem:[#allocation17 + $0x20] sm:$0xf]
        %v1872 = vld [vmem:[#allocation17 + $0x24] sm:$0xf]
        %v1873 = vld [vmem:[#allocation17 + $0x28] sm:$0xf]
        %v1874 = vld [vmem:[#allocation17 + $0x2c] sm:$0xf]
        %v1875 = vld [vmem:[#allocation17 + $0x30] sm:$0xf]
        %v1876 = vld [vmem:[#allocation17 + $0x34] sm:$0xf]
        %v1877 = vld [vmem:[#allocation17 + $0x38] sm:$0xf]
        %v1878 = vld [vmem:[#allocation17 + $0x3c] sm:$0xf]
        %v1879 = vld [vmem:[#allocation17 + $0x40] sm:$0xf]
        %v1880 = vld [vmem:[#allocation17 + $0x44] sm:$0xf]
        %v1881 = vld [vmem:[#allocation17 + $0x48] sm:$0xf]
        %v1882 = vld [vmem:[#allocation17 + $0x4c] sm:$0xf]
        %v1883 = vld [vmem:[#allocation17 + $0x50] sm:$0xf]
        %v1884 = vld [vmem:[#allocation17 + $0x54] sm:$0xf]
        %v1885 = vld [vmem:[#allocation17 + $0x58] sm:$0xf]
        %v1886 = vld [vmem:[#allocation17 + $0x5c] sm:$0xf]
        %v1887 = vld [vmem:[#allocation17 + $0x60] sm:$0xf]
        %v1888 = vld [vmem:[#allocation17 + $0x64] sm:$0xf]
        %v1889 = vld [vmem:[#allocation17 + $0x68] sm:$0xf]
        %v1890 = vld [vmem:[#allocation17 + $0x6c] sm:$0xf]
        %v1891 = vld [vmem:[#allocation17 + $0x70] sm:$0xf]
        %v1892 = vld [vmem:[#allocation17 + $0x74] sm:$0xf]
        %v1893 = vld [vmem:[#allocation17 + $0x78] sm:$0xf]
        %v1894 = vld [vmem:[#allocation17 + $0x7c] sm:$0xf]
        %v1895 = vld [vmem:[#allocation17 + $0x80] sm:$0xf]
        %v1896 = vld [vmem:[#allocation17 + $0x84] sm:$0xf]
        %v1897 = vld [vmem:[#allocation17 + $0x88] sm:$0xf]
        %v1898 = vld [vmem:[#allocation17 + $0x8c] sm:$0xf]
        %v1899 = vld [vmem:[#allocation17 + $0x90] sm:$0xf]
        %v1900 = vld [vmem:[#allocation17 + $0x94] sm:$0xf]
        %v1901 = vld [vmem:[#allocation17 + $0x98] sm:$0xf]
        %v1902 = vld [vmem:[#allocation17 + $0x9c] sm:$0xf]
        %v1903 = vld [vmem:[#allocation17 + $0xa0] sm:$0xf]
        %v1904 = vld [vmem:[#allocation17 + $0xa4] sm:$0xf]
        %v1905 = vld [vmem:[#allocation17 + $0xa8] sm:$0xf]
        %v1906 = vld [vmem:[#allocation17 + $0xac] sm:$0xf]
        %v1907 = vld [vmem:[#allocation17 + $0xb0] sm:$0xf]
        %v1908 = vld [vmem:[#allocation17 + $0xb4] sm:$0xf]
        %v1909 = vld [vmem:[#allocation17 + $0xb8] sm:$0xf]
        %v1910 = vld [vmem:[#allocation17 + $0xbc] sm:$0xf]
        %v1911 = vld [vmem:[#allocation17 + $0xc0] sm:$0xf]
        %v1912 = vld [vmem:[#allocation17 + $0xc4] sm:$0xf]
        %v1913 = vld [vmem:[#allocation17 + $0xc8] sm:$0xf]
        %v1914 = vld [vmem:[#allocation17 + $0xcc] sm:$0xf]
        %v1915 = vld [vmem:[#allocation17 + $0xd0] sm:$0xf]
        %v1916 = vld [vmem:[#allocation17 + $0xd4] sm:$0xf]
        %v1917 = vld [vmem:[#allocation17 + $0xd8] sm:$0xf]
        %v1918 = vld [vmem:[#allocation17 + $0xdc] sm:$0xf]
        %v1919 = vld [vmem:[#allocation17 + $0xe0] sm:$0xf]
        %v1920 = vld [vmem:[#allocation17 + $0xe4] sm:$0xf]
        %v1921 = vld [vmem:[#allocation17 + $0xe8] sm:$0xf]
        %v1922 = vld [vmem:[#allocation17 + $0xec] sm:$0xf]
        %v1923 = vld [vmem:[#allocation17 + $0xf0] sm:$0xf]
        %v1924 = vld [vmem:[#allocation17 + $0xf4] sm:$0xf]
        %v1925 = vld [vmem:[#allocation17 + $0xf8] sm:$0xf]
        %v1926 = vld [vmem:[#allocation17 + $0xfc] sm:$0xf]
        %v1927 = vpack.c.bf16 %v1859, %v1855
        %v1928 = vpack.c.bf16 %v1860, %v1856
        %v1929 = vpack.c.bf16 %v1861, %v1857
        %v1930 = vpack.c.bf16 %v1862, %v1858
        %v1995 = vunpack.c.l.b16 %v1863
        %v1996 = vunpack.c.l.b16 %v1864
        %v1997 = vunpack.c.l.b16 %v1865
        %v1998 = vunpack.c.l.b16 %v1866
        %v1999 = vunpack.c.l.b16 %v1867
        %v2000 = vunpack.c.l.b16 %v1868
        %v2001 = vunpack.c.l.b16 %v1869
        %v2002 = vunpack.c.l.b16 %v1870
        %v2003 = vunpack.c.l.b16 %v1871
        %v2004 = vunpack.c.l.b16 %v1872
        %v2005 = vunpack.c.l.b16 %v1873
        %v2006 = vunpack.c.l.b16 %v1874
        %v2007 = vunpack.c.l.b16 %v1875
        %v2008 = vunpack.c.l.b16 %v1876
        %v2009 = vunpack.c.l.b16 %v1877
        %v2010 = vunpack.c.l.b16 %v1878
        %v2011 = vunpack.c.l.b16 %v1879
        %v2012 = vunpack.c.l.b16 %v1880
        %v2013 = vunpack.c.l.b16 %v1881
        %v2014 = vunpack.c.l.b16 %v1882
        %v2015 = vunpack.c.l.b16 %v1883
        %v2016 = vunpack.c.l.b16 %v1884
        %v2017 = vunpack.c.l.b16 %v1885
        %v2018 = vunpack.c.l.b16 %v1886
        %v2019 = vunpack.c.l.b16 %v1887
        %v2020 = vunpack.c.l.b16 %v1888
        %v2021 = vunpack.c.l.b16 %v1889
        %v2022 = vunpack.c.l.b16 %v1890
        %v2023 = vunpack.c.l.b16 %v1891
        %v2024 = vunpack.c.l.b16 %v1892
        %v2025 = vunpack.c.l.b16 %v1893
        %v2026 = vunpack.c.l.b16 %v1894
        %v2027 = vunpack.c.l.b16 %v1895
        %v2028 = vunpack.c.l.b16 %v1896
        %v2029 = vunpack.c.l.b16 %v1897
        %v2030 = vunpack.c.l.b16 %v1898
        %v2031 = vunpack.c.l.b16 %v1899
        %v2032 = vunpack.c.l.b16 %v1900
        %v2033 = vunpack.c.l.b16 %v1901
        %v2034 = vunpack.c.l.b16 %v1902
        %v2035 = vunpack.c.l.b16 %v1903
        %v2036 = vunpack.c.l.b16 %v1904
        %v2037 = vunpack.c.l.b16 %v1905
        %v2038 = vunpack.c.l.b16 %v1906
        %v2039 = vunpack.c.l.b16 %v1907
        %v2040 = vunpack.c.l.b16 %v1908
        %v2041 = vunpack.c.l.b16 %v1909
        %v2042 = vunpack.c.l.b16 %v1910
        %v2043 = vunpack.c.l.b16 %v1911
        %v2044 = vunpack.c.l.b16 %v1912
        %v2045 = vunpack.c.l.b16 %v1913
        %v2046 = vunpack.c.l.b16 %v1914
        %v2047 = vunpack.c.l.b16 %v1915
        %v2048 = vunpack.c.l.b16 %v1916
        %v2049 = vunpack.c.l.b16 %v1917
        %v2050 = vunpack.c.l.b16 %v1918
        %v2051 = vunpack.c.l.b16 %v1919
        %v2052 = vunpack.c.l.b16 %v1920
        %v2053 = vunpack.c.l.b16 %v1921
        %v2054 = vunpack.c.l.b16 %v1922
        %v2055 = vunpack.c.l.b16 %v1923
        %v2056 = vunpack.c.l.b16 %v1924
        %v2057 = vunpack.c.l.b16 %v1925
        %v2058 = vunpack.c.l.b16 %v1926
        %v2059 = vpack.c.b16 %v1996, %v1995
        %v2060 = vpack.c.b16 %v1998, %v1997
        %v2061 = vpack.c.b16 %v2000, %v1999
        %v2062 = vpack.c.b16 %v2002, %v2001
        %v2063 = vpack.c.b16 %v2004, %v2003
        %v2064 = vpack.c.b16 %v2006, %v2005
        %v2065 = vpack.c.b16 %v2008, %v2007
        %v2066 = vpack.c.b16 %v2010, %v2009
        %v2067 = vpack.c.b16 %v2012, %v2011
        %v2068 = vpack.c.b16 %v2014, %v2013
        %v2069 = vpack.c.b16 %v2016, %v2015
        %v2070 = vpack.c.b16 %v2018, %v2017
        %v2071 = vpack.c.b16 %v2020, %v2019
        %v2072 = vpack.c.b16 %v2022, %v2021
        %v2073 = vpack.c.b16 %v2024, %v2023
        %v2074 = vpack.c.b16 %v2026, %v2025
        %v2075 = vpack.c.b16 %v2028, %v2027
        %v2076 = vpack.c.b16 %v2030, %v2029
        %v2077 = vpack.c.b16 %v2032, %v2031
        %v2078 = vpack.c.b16 %v2034, %v2033
        %v2079 = vpack.c.b16 %v2036, %v2035
        %v2080 = vpack.c.b16 %v2038, %v2037
        %v2081 = vpack.c.b16 %v2040, %v2039
        %v2082 = vpack.c.b16 %v2042, %v2041
        %v2083 = vpack.c.b16 %v2044, %v2043
        %v2084 = vpack.c.b16 %v2046, %v2045
        %v2085 = vpack.c.b16 %v2048, %v2047
        %v2086 = vpack.c.b16 %v2050, %v2049
        %v2087 = vpack.c.b16 %v2052, %v2051
        %v2088 = vpack.c.b16 %v2054, %v2053
        %v2089 = vpack.c.b16 %v2056, %v2055
        %v2090 = vpack.c.b16 %v2058, %v2057
        %2123 = vmatpush.bf16.msra.mxu0 %v2066
        %2124 = vmatpush.bf16.msra.mxu0 %v2065
        %2125 = vmatpush.bf16.msra.mxu0 %v2064
        %2126 = vmatpush.bf16.msra.mxu0 %v2063
        %2127 = vmatpush.bf16.msra.mxu0 %v2062
        %2128 = vmatpush.bf16.msra.mxu0 %v2061
        %2129 = vmatpush.bf16.msra.mxu0 %v2060
        %2130 = vmatpush.bf16.msra.mxu0 %v2059
        %2131 = vmatmul.bf16.gmra.mxu0 %v1927
        %v2132 = vpop.f32.mrf.mxu0
        %v2133 = vadd.f32 0.0, %v2132
        %v2134 = vpop.f32.mrf.mxu0
        %v2135 = vadd.f32 0.0, %v2134
        %2136 = vdwg.mxu0
        %2137 = vmatpush.bf16.msra.mxu0 %v2074
        %2138 = vmatpush.bf16.msra.mxu0 %v2073
        %2139 = vmatpush.bf16.msra.mxu0 %v2072
        %2140 = vmatpush.bf16.msra.mxu0 %v2071
        %2141 = vmatpush.bf16.msra.mxu0 %v2070
        %2142 = vmatpush.bf16.msra.mxu0 %v2069
        %2143 = vmatpush.bf16.msra.mxu0 %v2068
        %2144 = vmatpush.bf16.msra.mxu0 %v2067
        %2145 = vmatmul.bf16.gmra.mxu0 %v1928
        %v2146 = vpop.f32.mrf.mxu0
        %v2147 = vadd.f32 %v2133, %v2146
        %v2148 = vpop.f32.mrf.mxu0
        %v2149 = vadd.f32 %v2135, %v2148
        %2150 = vdwg.mxu0
        %2151 = vmatpush.bf16.msra.mxu0 %v2082
        %2152 = vmatpush.bf16.msra.mxu0 %v2081
        %2153 = vmatpush.bf16.msra.mxu0 %v2080
        %2154 = vmatpush.bf16.msra.mxu0 %v2079
        %2155 = vmatpush.bf16.msra.mxu0 %v2078
        %2156 = vmatpush.bf16.msra.mxu0 %v2077
        %2157 = vmatpush.bf16.msra.mxu0 %v2076
        %2158 = vmatpush.bf16.msra.mxu0 %v2075
        %2159 = vmatmul.bf16.gmra.mxu0 %v1929
        %v2160 = vpop.f32.mrf.mxu0
        %v2161 = vadd.f32 %v2147, %v2160
        %v2162 = vpop.f32.mrf.mxu0
        %v2163 = vadd.f32 %v2149, %v2162
        %2164 = vdwg.mxu0
        %2165 = vmatpush.bf16.msra.mxu0 %v2090
        %2166 = vmatpush.bf16.msra.mxu0 %v2089
        %2167 = vmatpush.bf16.msra.mxu0 %v2088
        %2168 = vmatpush.bf16.msra.mxu0 %v2087
        %2169 = vmatpush.bf16.msra.mxu0 %v2086
        %2170 = vmatpush.bf16.msra.mxu0 %v2085
        %2171 = vmatpush.bf16.msra.mxu0 %v2084
        %2172 = vmatpush.bf16.msra.mxu0 %v2083
        %2173 = vmatmul.bf16.gmra.mxu0 %v1930
        %v2174 = vpop.f32.mrf.mxu0
        %v2175 = vadd.f32 %v2161, %v2174
        %v2176 = vpop.f32.mrf.mxu0
        %v2177 = vadd.f32 %v2163, %v2176
        %2178 = vdwg.mxu0
        %v2179 = vadd.f32 %v1478, %v2175
        %v2180 = vadd.f32 %v1479, %v2177
        %v2181 = vld [vmem:[%s13] sm:$0x1]
        %v2183 = vperm.slane %v2181, 0
        %v2185 = vadd.f32 %v2179, %v2183
        %v2186 = vadd.f32 %v2180, %v2183
        %s2187 = scalar_lea.vmem [#allocation3], 1
        %v2188 = vld [vmem:[%s2187] sm:$0x1]
        %s2189 = scalar_lea.vmem [#allocation6], 1
        %v2190 = vld [vmem:[%s2189] sm:$0x1]
        %2191 = vadd.xlane.f32.xlu0 %v2185
        %v2192 = vpop.xlane.xlu0 %2191
        %2193 = vadd.xlane.f32.xlu0 %v2186
        %v2194 = vpop.xlane.xlu0 %2193
        %v2195 = vmul.f32 %v2192, %v819
        %v2196 = vmul.f32 %v2194, %v819
        %v2197 = vsub.f32 %v2185, %v2195
        %v2198 = vsub.f32 %v2186, %v2196
        %v2199 = vmul.f32 %v2197, %v2197
        %v2200 = vmul.f32 %v2198, %v2198
        %2201 = vadd.xlane.f32.xlu0 %v2199
        %v2202 = vpop.xlane.xlu0 %2201
        %2203 = vadd.xlane.f32.xlu0 %v2200
        %v2204 = vpop.xlane.xlu0 %2203
        %v2205 = vmul.f32 %v2202, %v819
        %v2206 = vmul.f32 %v2204, %v819
        %v2207 = vadd.f32 %v2205, 1e-05
        %v2208 = vadd.f32 %v2206, 1e-05
        %v2209 = vrsqrt.pop %v2207
        %v2210 = vmul.f32 %v2209, %v2207
        %v2211 = vmul.f32 %v2210, %v2209
        %v2212 = vmul.f32 0.5, %v2211
        %v2213 = vsub.f32 1.5, %v2212
        %v2214 = vmul.f32 %v2209, %v2213
        %vm2215 = vweird.f32 %v2207
        %vm2216 = vweird.f32 %v2209
        %vm2217 = vmor %vm2215, %vm2216
        %v2218 = vsel %vm2217, %v2209, %v2214
        %v2219 = vrsqrt.pop %v2208
        %v2220 = vmul.f32 %v2219, %v2208
        %v2221 = vmul.f32 %v2220, %v2219
        %v2222 = vmul.f32 0.5, %v2221
        %v2223 = vsub.f32 1.5, %v2222
        %v2224 = vmul.f32 %v2219, %v2223
        %vm2225 = vweird.f32 %v2208
        %vm2226 = vweird.f32 %v2219
        %vm2227 = vmor %vm2225, %vm2226
        %v2228 = vsel %vm2227, %v2219, %v2224
        %v2229 = vmul.f32 %v2197, %v2218
        %v2230 = vmul.f32 %v2198, %v2228
        %v2232 = vperm.slane %v2188, 0
        %v2234 = vmul.f32 %v2229, %v2232
        %v2235 = vmul.f32 %v2230, %v2232
        %v2237 = vperm.slane %v2190, 0
        %v2239 = vadd.f32 %v2234, %v2237
        %v2240 = vadd.f32 %v2235, %v2237
        %s2241 = scalar_lea.vmem [#allocation8], 192
        %v2242 = vld [vmem:[%s2241] sm:$0xff]
        %v2243 = vld [vmem:[%s2241 + $0x8] sm:$0xf]
        %v2244 = vld [vmem:[%s2241 + $0xc] sm:$0xff]
        %v2245 = vld [vmem:[%s2241 + $0x14] sm:$0xf]
        %v2246 = vld [vmem:[%s2241 + $0x18] sm:$0xff]
        %v2247 = vld [vmem:[%s2241 + $0x20] sm:$0xf]
        %v2248 = vld [vmem:[%s2241 + $0x24] sm:$0xff]
        %v2249 = vld [vmem:[%s2241 + $0x2c] sm:$0xf]
        %v2250 = vld [vmem:[%s2241 + $0x30] sm:$0xff]
        %v2251 = vld [vmem:[%s2241 + $0x38] sm:$0xf]
        %v2252 = vld [vmem:[%s2241 + $0x3c] sm:$0xff]
        %v2253 = vld [vmem:[%s2241 + $0x44] sm:$0xf]
        %v2254 = vld [vmem:[%s2241 + $0x48] sm:$0xff]
        %v2255 = vld [vmem:[%s2241 + $0x50] sm:$0xf]
        %v2256 = vld [vmem:[%s2241 + $0x54] sm:$0xff]
        %v2257 = vld [vmem:[%s2241 + $0x5c] sm:$0xf]
        %v2258 = vld [vmem:[%s2241 + $0x60] sm:$0xff]
        %v2259 = vld [vmem:[%s2241 + $0x68] sm:$0xf]
        %v2260 = vld [vmem:[%s2241 + $0x6c] sm:$0xff]
        %v2261 = vld [vmem:[%s2241 + $0x74] sm:$0xf]
        %v2262 = vld [vmem:[%s2241 + $0x78] sm:$0xff]
        %v2263 = vld [vmem:[%s2241 + $0x80] sm:$0xf]
        %v2264 = vld [vmem:[%s2241 + $0x84] sm:$0xff]
        %v2265 = vld [vmem:[%s2241 + $0x8c] sm:$0xf]
        %v2266 = vld [vmem:[%s2241 + $0x90] sm:$0xff]
        %v2267 = vld [vmem:[%s2241 + $0x98] sm:$0xf]
        %v2268 = vld [vmem:[%s2241 + $0x9c] sm:$0xff]
        %v2269 = vld [vmem:[%s2241 + $0xa4] sm:$0xf]
        %v2270 = vld [vmem:[%s2241 + $0xa8] sm:$0xff]
        %v2271 = vld [vmem:[%s2241 + $0xb0] sm:$0xf]
        %v2272 = vld [vmem:[%s2241 + $0xb4] sm:$0xff]
        %v2273 = vld [vmem:[%s2241 + $0xbc] sm:$0xf]
        %v2274 = vpack.c.bf16 %v2240, %v2239
        %s2275 = scalar_lea.vmem [#allocation9], 3
        %v2276 = vld [vmem:[%s2275] sm:$0x7]
        %v2278 = vperm.slane %v2276, 0
        %v2279 = vperm.slane %v2276, 1
        %v2280 = vperm.slane %v2276, 2
        %v2316 = vunpack.c.l.b16 %v2242
        %v2317 = vunpack.c.h.b16 %v2242
        %v2318 = vunpack.c.l.b16 %v2243
        %v2319 = vunpack.c.l.b16 %v2244
        %v2320 = vunpack.c.h.b16 %v2244
        %v2321 = vunpack.c.l.b16 %v2245
        %v2322 = vunpack.c.l.b16 %v2246
        %v2323 = vunpack.c.h.b16 %v2246
        %v2324 = vunpack.c.l.b16 %v2247
        %v2325 = vunpack.c.l.b16 %v2248
        %v2326 = vunpack.c.h.b16 %v2248
        %v2327 = vunpack.c.l.b16 %v2249
        %v2328 = vunpack.c.l.b16 %v2250
        %v2329 = vunpack.c.h.b16 %v2250
        %v2330 = vunpack.c.l.b16 %v2251
        %v2331 = vunpack.c.l.b16 %v2252
        %v2332 = vunpack.c.h.b16 %v2252
        %v2333 = vunpack.c.l.b16 %v2253
        %v2334 = vunpack.c.l.b16 %v2254
        %v2335 = vunpack.c.h.b16 %v2254
        %v2336 = vunpack.c.l.b16 %v2255
        %v2337 = vunpack.c.l.b16 %v2256
        %v2338 = vunpack.c.h.b16 %v2256
        %v2339 = vunpack.c.l.b16 %v2257
        %v2340 = vunpack.c.l.b16 %v2258
        %v2341 = vunpack.c.h.b16 %v2258
        %v2342 = vunpack.c.l.b16 %v2259
        %v2343 = vunpack.c.l.b16 %v2260
        %v2344 = vunpack.c.h.b16 %v2260
        %v2345 = vunpack.c.l.b16 %v2261
        %v2346 = vunpack.c.l.b16 %v2262
        %v2347 = vunpack.c.h.b16 %v2262
        %v2348 = vunpack.c.l.b16 %v2263
        %v2349 = vunpack.c.l.b16 %v2264
        %v2350 = vunpack.c.h.b16 %v2264
        %v2351 = vunpack.c.l.b16 %v2265
        %v2352 = vunpack.c.l.b16 %v2266
        %v2353 = vunpack.c.h.b16 %v2266
        %v2354 = vunpack.c.l.b16 %v2267
        %v2355 = vunpack.c.l.b16 %v2268
        %v2356 = vunpack.c.h.b16 %v2268
        %v2357 = vunpack.c.l.b16 %v2269
        %v2358 = vunpack.c.l.b16 %v2270
        %v2359 = vunpack.c.h.b16 %v2270
        %v2360 = vunpack.c.l.b16 %v2271
        %v2361 = vunpack.c.l.b16 %v2272
        %v2362 = vunpack.c.h.b16 %v2272
        %v2363 = vunpack.c.l.b16 %v2273
        %v2364 = vpack.c.b16 %v2319, %v2316
        %v2365 = vpack.c.b16 %v2320, %v2317
        %v2366 = vpack.c.b16 %v2321, %v2318
        %v2367 = vpack.c.b16 %v2325, %v2322
        %v2368 = vpack.c.b16 %v2326, %v2323
        %v2369 = vpack.c.b16 %v2327, %v2324
        %v2370 = vpack.c.b16 %v2331, %v2328
        %v2371 = vpack.c.b16 %v2332, %v2329
        %v2372 = vpack.c.b16 %v2333, %v2330
        %v2373 = vpack.c.b16 %v2337, %v2334
        %v2374 = vpack.c.b16 %v2338, %v2335
        %v2375 = vpack.c.b16 %v2339, %v2336
        %v2376 = vpack.c.b16 %v2343, %v2340
        %v2377 = vpack.c.b16 %v2344, %v2341
        %v2378 = vpack.c.b16 %v2345, %v2342
        %v2379 = vpack.c.b16 %v2349, %v2346
        %v2380 = vpack.c.b16 %v2350, %v2347
        %v2381 = vpack.c.b16 %v2351, %v2348
        %v2382 = vpack.c.b16 %v2355, %v2352
        %v2383 = vpack.c.b16 %v2356, %v2353
        %v2384 = vpack.c.b16 %v2357, %v2354
        %v2385 = vpack.c.b16 %v2361, %v2358
        %v2386 = vpack.c.b16 %v2362, %v2359
        %v2387 = vpack.c.b16 %v2363, %v2360
        %2412 = vmatpush.bf16.msra.mxu0 %v2385
        %2413 = vmatpush.bf16.msra.mxu0 %v2382
        %2414 = vmatpush.bf16.msra.mxu0 %v2379
        %2415 = vmatpush.bf16.msra.mxu0 %v2376
        %2416 = vmatpush.bf16.msra.mxu0 %v2373
        %2417 = vmatpush.bf16.msra.mxu0 %v2370
        %2418 = vmatpush.bf16.msra.mxu0 %v2367
        %2419 = vmatpush.bf16.msra.mxu0 %v2364
        %2420 = vmatmul.bf16.gmra.mxu0 %v2274
        %v2421 = vpop.f32.mrf.mxu0
        %v2422 = vadd.f32 %v2278, %v2421
        %v2423 = vpop.f32.mrf.mxu0
        %v2424 = vadd.f32 %v2278, %v2423
        %2425 = vdwg.mxu0
        %2426 = vmatpush.bf16.msra.mxu0 %v2386
        %2427 = vmatpush.bf16.msra.mxu0 %v2383
        %2428 = vmatpush.bf16.msra.mxu0 %v2380
        %2429 = vmatpush.bf16.msra.mxu0 %v2377
        %2430 = vmatpush.bf16.msra.mxu0 %v2374
        %2431 = vmatpush.bf16.msra.mxu0 %v2371
        %2432 = vmatpush.bf16.msra.mxu0 %v2368
        %2433 = vmatpush.bf16.msra.mxu0 %v2365
        %2434 = vmatmul.bf16.gmra.mxu0 %v2274
        %v2435 = vpop.f32.mrf.mxu0
        %v2436 = vadd.f32 %v2279, %v2435
        %v2437 = vpop.f32.mrf.mxu0
        %v2438 = vadd.f32 %v2279, %v2437
        %2439 = vdwg.mxu0
        %2440 = vmatpush.bf16.msra.mxu0 %v2387
        %2441 = vmatpush.bf16.msra.mxu0 %v2384
        %2442 = vmatpush.bf16.msra.mxu0 %v2381
        %2443 = vmatpush.bf16.msra.mxu0 %v2378
        %2444 = vmatpush.bf16.msra.mxu0 %v2375
        %2445 = vmatpush.bf16.msra.mxu0 %v2372
        %2446 = vmatpush.bf16.msra.mxu0 %v2369
        %2447 = vmatpush.bf16.msra.mxu0 %v2366
        %2448 = vmatmul.bf16.gmra.mxu0 %v2274
        %v2449 = vpop.f32.mrf.mxu0
        %v2450 = vadd.f32 %v2280, %v2449
        %v2451 = vpop.f32.mrf.mxu0
        %v2452 = vadd.f32 %v2280, %v2451
        %2453 = vdwg.mxu0
        %v2454 = vmul.f32 %v2422, 0.17677669
        %v2455 = vmul.f32 %v2424, 0.17677669
        %v2456 = vpack.c.bf16 %v2455, %v2454
        %v2457 = vpack.c.bf16 %v2438, %v2436
        %v2459 = vsel %vm1081, %v2456, 0
        %v2462 = vsel %vm1081, %v2457, 0
        %2464 = vmatpush.bf16.xpose.msra.mxu0 0
        %2465 = vmatpush.bf16.xpose.msra.mxu0 0
        %2466 = vmatpush.bf16.xpose.msra.mxu0 0
        %2467 = vmatpush.bf16.xpose.msra.mxu0 0
        %2468 = vmatpush.bf16.xpose.msra.mxu0 0
        %2469 = vmatpush.bf16.xpose.msra.mxu0 0
        %2470 = vmatpush.bf16.xpose.msra.mxu0 0
        %2471 = vmatpush.bf16.xpose.msra.mxu0 %v2462
        %2472 = vmatmul.bf16.gmra.mxu0 %v2459
        %v2473 = vpop.f32.mrf.mxu0
        %v2474 = vadd.f32 0.0, %v2473
        %v2475 = vpop.f32.mrf.mxu0
        %v2476 = vadd.f32 0.0, %v2475
        %2477 = vdwg.mxu0
        %v2478 = vsel %vm805, %v2474, -1e+30
        %v2479 = vsel %vm806, %v2476, -1e+30
        %v2480 = vsel %vm1104, %v2478, -inf
        %2481 = vmax.xlane.f32.xlu0 %v2480
        %v2482 = vpop.xlane.xlu0 %2481
        %v2483 = vsel %vm1104, %v2479, -inf
        %2484 = vmax.xlane.f32.xlu0 %v2483
        %v2485 = vpop.xlane.xlu0 %2484
        %v2486 = vsub.f32 %v2478, %v2482
        %v2487 = vsub.f32 %v2479, %v2485
        %v2488 = vmul.f32 %v2486, 1.442695
        %v2489 = vpow.pop %v2488
        %v2490 = vmul.f32 %v2487, 1.442695
        %v2491 = vpow.pop %v2490
        %v2492 = vsel %vm1104, %v2489, 0.0
        %2493 = vadd.xlane.f32.xlu0 %v2492
        %v2494 = vpop.xlane.xlu0 %2493
        %v2495 = vsel %vm1104, %v2491, 0.0
        %2496 = vadd.xlane.f32.xlu0 %v2495
        %v2497 = vpop.xlane.xlu0 %2496
        %v2498 = vrcp.pop %v2494
        %v2499 = vrcp.pop %v2497
        %v2500 = vmul.f32 %v2489, %v2498
        %v2501 = vmul.f32 %v2491, %v2499
        %v2502 = vpack.c.bf16 %v2501, %v2500
        %v2503 = vpack.c.bf16 %v2452, %v2450
        %v2505 = vsel %vm1104, %v2502, 0
        %2507 = vmatpush.bf16.msra.mxu0 0
        %2508 = vmatpush.bf16.msra.mxu0 0
        %2509 = vmatpush.bf16.msra.mxu0 0
        %2510 = vmatpush.bf16.msra.mxu0 0
        %2511 = vmatpush.bf16.msra.mxu0 0
        %2512 = vmatpush.bf16.msra.mxu0 0
        %2513 = vmatpush.bf16.msra.mxu0 0
        %2514 = vmatpush.bf16.msra.mxu0 %v2503
        %2515 = vmatmul.bf16.gmra.mxu0 %v2505
        %v2516 = vpop.f32.mrf.mxu0
        %v2517 = vadd.f32 0.0, %v2516
        %v2518 = vpop.f32.mrf.mxu0
        %v2519 = vadd.f32 0.0, %v2518
        %2520 = vdwg.mxu0
        %2521 = vst.msk [vmem:[#allocation2] sm:$0xff] %vm1081, %v2517
        %2522 = vst.msk [vmem:[#allocation2 + $0x8] sm:$0xff] %vm1081, %v2519
        %2524 = vrot.lane.b32.xlu0 %v2456, 96
        %v2525 = vpop.permute.xlu0 %2524
        %2527 = vrot.lane.b32.xlu0 %v2457, 96
        %v2528 = vpop.permute.xlu0 %2527
        %v2530 = vsel %vm1081, %v2525, 0
        %v2533 = vsel %vm1081, %v2528, 0
        %2535 = vmatpush.bf16.xpose.msra.mxu0 0
        %2536 = vmatpush.bf16.xpose.msra.mxu0 0
        %2537 = vmatpush.bf16.xpose.msra.mxu0 0
        %2538 = vmatpush.bf16.xpose.msra.mxu0 0
        %2539 = vmatpush.bf16.xpose.msra.mxu0 0
        %2540 = vmatpush.bf16.xpose.msra.mxu0 0
        %2541 = vmatpush.bf16.xpose.msra.mxu0 0
        %2542 = vmatpush.bf16.xpose.msra.mxu0 %v2533
        %2543 = vmatmul.bf16.gmra.mxu0 %v2530
        %v2544 = vpop.f32.mrf.mxu0
        %v2545 = vadd.f32 0.0, %v2544
        %v2546 = vpop.f32.mrf.mxu0
        %v2547 = vadd.f32 0.0, %v2546
        %2548 = vdwg.mxu0
        %v2549 = vsel %vm805, %v2545, -1e+30
        %v2550 = vsel %vm806, %v2547, -1e+30
        %v2551 = vsel %vm1104, %v2549, -inf
        %2552 = vmax.xlane.f32.xlu0 %v2551
        %v2553 = vpop.xlane.xlu0 %2552
        %v2554 = vsel %vm1104, %v2550, -inf
        %2555 = vmax.xlane.f32.xlu0 %v2554
        %v2556 = vpop.xlane.xlu0 %2555
        %v2557 = vsub.f32 %v2549, %v2553
        %v2558 = vsub.f32 %v2550, %v2556
        %v2559 = vmul.f32 %v2557, 1.442695
        %v2560 = vpow.pop %v2559
        %v2561 = vmul.f32 %v2558, 1.442695
        %v2562 = vpow.pop %v2561
        %v2563 = vsel %vm1104, %v2560, 0.0
        %2564 = vadd.xlane.f32.xlu0 %v2563
        %v2565 = vpop.xlane.xlu0 %2564
        %v2566 = vsel %vm1104, %v2562, 0.0
        %2567 = vadd.xlane.f32.xlu0 %v2566
        %v2568 = vpop.xlane.xlu0 %2567
        %v2569 = vrcp.pop %v2565
        %v2570 = vrcp.pop %v2568
        %v2571 = vmul.f32 %v2560, %v2569
        %v2572 = vmul.f32 %v2562, %v2570
        %v2573 = vpack.c.bf16 %v2572, %v2571
        %2575 = vrot.lane.b32.xlu0 %v2503, 96
        %v2576 = vpop.permute.xlu0 %2575
        %v2579 = vsel %vm1104, %v2573, 0
        %2581 = vmatpush.bf16.msra.mxu0 0
        %2582 = vmatpush.bf16.msra.mxu0 0
        %2583 = vmatpush.bf16.msra.mxu0 0
        %2584 = vmatpush.bf16.msra.mxu0 0
        %2585 = vmatpush.bf16.msra.mxu0 0
        %2586 = vmatpush.bf16.msra.mxu0 0
        %2587 = vmatpush.bf16.msra.mxu0 0
        %2588 = vmatpush.bf16.msra.mxu0 %v2576
        %2589 = vmatmul.bf16.gmra.mxu0 %v2579
        %v2590 = vpop.f32.mrf.mxu0
        %v2591 = vadd.f32 0.0, %v2590
        %v2592 = vpop.f32.mrf.mxu0
        %v2593 = vadd.f32 0.0, %v2592
        %2594 = vdwg.mxu0
        %2597 = vrot.lane.b32.xlu0 %v2591, 32
        %v2598 = vpop.permute.xlu0 %2597
        %2599 = vrot.lane.b32.xlu0 %v2593, 32
        %v2600 = vpop.permute.xlu0 %2599
        %2603 = vst.msk [vmem:[#allocation2] sm:$0xff] %vm1228, %v2598
        %2604 = vst.msk [vmem:[#allocation2 + $0x8] sm:$0xff] %vm1228, %v2600
        %2605 = vrot.lane.b32.xlu0 %v2456, 64
        %v2606 = vpop.permute.xlu0 %2605
        %2607 = vrot.lane.b32.xlu0 %v2457, 64
        %v2608 = vpop.permute.xlu0 %2607
        %v2610 = vsel %vm1081, %v2606, 0
        %v2613 = vsel %vm1081, %v2608, 0
        %2615 = vmatpush.bf16.xpose.msra.mxu0 0
        %2616 = vmatpush.bf16.xpose.msra.mxu0 0
        %2617 = vmatpush.bf16.xpose.msra.mxu0 0
        %2618 = vmatpush.bf16.xpose.msra.mxu0 0
        %2619 = vmatpush.bf16.xpose.msra.mxu0 0
        %2620 = vmatpush.bf16.xpose.msra.mxu0 0
        %2621 = vmatpush.bf16.xpose.msra.mxu0 0
        %2622 = vmatpush.bf16.xpose.msra.mxu0 %v2613
        %2623 = vmatmul.bf16.gmra.mxu0 %v2610
        %v2624 = vpop.f32.mrf.mxu0
        %v2625 = vadd.f32 0.0, %v2624
        %v2626 = vpop.f32.mrf.mxu0
        %v2627 = vadd.f32 0.0, %v2626
        %2628 = vdwg.mxu0
        %v2629 = vsel %vm805, %v2625, -1e+30
        %v2630 = vsel %vm806, %v2627, -1e+30
        %v2631 = vsel %vm1104, %v2629, -inf
        %2632 = vmax.xlane.f32.xlu0 %v2631
        %v2633 = vpop.xlane.xlu0 %2632
        %v2634 = vsel %vm1104, %v2630, -inf
        %2635 = vmax.xlane.f32.xlu0 %v2634
        %v2636 = vpop.xlane.xlu0 %2635
        %v2637 = vsub.f32 %v2629, %v2633
        %v2638 = vsub.f32 %v2630, %v2636
        %v2639 = vmul.f32 %v2637, 1.442695
        %v2640 = vpow.pop %v2639
        %v2641 = vmul.f32 %v2638, 1.442695
        %v2642 = vpow.pop %v2641
        %v2643 = vsel %vm1104, %v2640, 0.0
        %2644 = vadd.xlane.f32.xlu0 %v2643
        %v2645 = vpop.xlane.xlu0 %2644
        %v2646 = vsel %vm1104, %v2642, 0.0
        %2647 = vadd.xlane.f32.xlu0 %v2646
        %v2648 = vpop.xlane.xlu0 %2647
        %v2649 = vrcp.pop %v2645
        %v2650 = vrcp.pop %v2648
        %v2651 = vmul.f32 %v2640, %v2649
        %v2652 = vmul.f32 %v2642, %v2650
        %v2653 = vpack.c.bf16 %v2652, %v2651
        %2654 = vrot.lane.b32.xlu0 %v2503, 64
        %v2655 = vpop.permute.xlu0 %2654
        %v2658 = vsel %vm1104, %v2653, 0
        %2660 = vmatpush.bf16.msra.mxu0 0
        %2661 = vmatpush.bf16.msra.mxu0 0
        %2662 = vmatpush.bf16.msra.mxu0 0
        %2663 = vmatpush.bf16.msra.mxu0 0
        %2664 = vmatpush.bf16.msra.mxu0 0
        %2665 = vmatpush.bf16.msra.mxu0 0
        %2666 = vmatpush.bf16.msra.mxu0 0
        %2667 = vmatpush.bf16.msra.mxu0 %v2655
        %2668 = vmatmul.bf16.gmra.mxu0 %v2658
        %v2669 = vpop.f32.mrf.mxu0
        %v2670 = vadd.f32 0.0, %v2669
        %v2671 = vpop.f32.mrf.mxu0
        %v2672 = vadd.f32 0.0, %v2671
        %2673 = vdwg.mxu0
        %2676 = vrot.lane.b32.xlu0 %v2670, 64
        %v2677 = vpop.permute.xlu0 %2676
        %2678 = vrot.lane.b32.xlu0 %v2672, 64
        %v2679 = vpop.permute.xlu0 %2678
        %2682 = vst.msk [vmem:[#allocation2] sm:$0xff] %vm1308, %v2677
        %2683 = vst.msk [vmem:[#allocation2 + $0x8] sm:$0xff] %vm1308, %v2679
        %2684 = vrot.lane.b32.xlu0 %v2456, 32
        %v2685 = vpop.permute.xlu0 %2684
        %2686 = vrot.lane.b32.xlu0 %v2457, 32
        %v2687 = vpop.permute.xlu0 %2686
        %v2689 = vsel %vm1081, %v2685, 0
        %v2692 = vsel %vm1081, %v2687, 0
        %2694 = vmatpush.bf16.xpose.msra.mxu0 0
        %2695 = vmatpush.bf16.xpose.msra.mxu0 0
        %2696 = vmatpush.bf16.xpose.msra.mxu0 0
        %2697 = vmatpush.bf16.xpose.msra.mxu0 0
        %2698 = vmatpush.bf16.xpose.msra.mxu0 0
        %2699 = vmatpush.bf16.xpose.msra.mxu0 0
        %2700 = vmatpush.bf16.xpose.msra.mxu0 0
        %2701 = vmatpush.bf16.xpose.msra.mxu0 %v2692
        %2702 = vmatmul.bf16.gmra.mxu0 %v2689
        %v2703 = vpop.f32.mrf.mxu0
        %v2704 = vadd.f32 0.0, %v2703
        %v2705 = vpop.f32.mrf.mxu0
        %v2706 = vadd.f32 0.0, %v2705
        %2707 = vdwg.mxu0
        %v2708 = vsel %vm805, %v2704, -1e+30
        %v2709 = vsel %vm806, %v2706, -1e+30
        %v2710 = vsel %vm1104, %v2708, -inf
        %2711 = vmax.xlane.f32.xlu0 %v2710
        %v2712 = vpop.xlane.xlu0 %2711
        %v2713 = vsel %vm1104, %v2709, -inf
        %2714 = vmax.xlane.f32.xlu0 %v2713
        %v2715 = vpop.xlane.xlu0 %2714
        %v2716 = vsub.f32 %v2708, %v2712
        %v2717 = vsub.f32 %v2709, %v2715
        %v2718 = vmul.f32 %v2716, 1.442695
        %v2719 = vpow.pop %v2718
        %v2720 = vmul.f32 %v2717, 1.442695
        %v2721 = vpow.pop %v2720
        %v2722 = vsel %vm1104, %v2719, 0.0
        %2723 = vadd.xlane.f32.xlu0 %v2722
        %v2724 = vpop.xlane.xlu0 %2723
        %v2725 = vsel %vm1104, %v2721, 0.0
        %2726 = vadd.xlane.f32.xlu0 %v2725
        %v2727 = vpop.xlane.xlu0 %2726
        %v2728 = vrcp.pop %v2724
        %v2729 = vrcp.pop %v2727
        %v2730 = vmul.f32 %v2719, %v2728
        %v2731 = vmul.f32 %v2721, %v2729
        %v2732 = vpack.c.bf16 %v2731, %v2730
        %2733 = vrot.lane.b32.xlu0 %v2503, 32
        %v2734 = vpop.permute.xlu0 %2733
        %v2737 = vsel %vm1104, %v2732, 0
        %2739 = vmatpush.bf16.msra.mxu0 0
        %2740 = vmatpush.bf16.msra.mxu0 0
        %2741 = vmatpush.bf16.msra.mxu0 0
        %2742 = vmatpush.bf16.msra.mxu0 0
        %2743 = vmatpush.bf16.msra.mxu0 0
        %2744 = vmatpush.bf16.msra.mxu0 0
        %2745 = vmatpush.bf16.msra.mxu0 0
        %2746 = vmatpush.bf16.msra.mxu0 %v2734
        %2747 = vmatmul.bf16.gmra.mxu0 %v2737
        %v2748 = vpop.f32.mrf.mxu0
        %v2749 = vadd.f32 0.0, %v2748
        %v2750 = vpop.f32.mrf.mxu0
        %v2751 = vadd.f32 0.0, %v2750
        %2752 = vdwg.mxu0
        %2755 = vrot.lane.b32.xlu0 %v2749, 96
        %v2756 = vpop.permute.xlu0 %2755
        %2757 = vrot.lane.b32.xlu0 %v2751, 96
        %v2758 = vpop.permute.xlu0 %2757
        %2761 = vst.msk [vmem:[#allocation2] sm:$0xff] %vm1388, %v2756
        %2762 = vst.msk [vmem:[#allocation2 + $0x8] sm:$0xff] %vm1388, %v2758
        %v2763 = vld [vmem:[#allocation2] sm:$0xff]
        %v2764 = vld [vmem:[#allocation2 + $0x8] sm:$0xff]
        %s2765 = scalar_lea.vmem [#allocation11], 64
        %v2766 = vld [vmem:[%s2765] sm:$0xf]
        %v2767 = vld [vmem:[%s2765 + $0x4] sm:$0xf]
        %v2768 = vld [vmem:[%s2765 + $0x8] sm:$0xf]
        %v2769 = vld [vmem:[%s2765 + $0xc] sm:$0xf]
        %v2770 = vld [vmem:[%s2765 + $0x10] sm:$0xf]
        %v2771 = vld [vmem:[%s2765 + $0x14] sm:$0xf]
        %v2772 = vld [vmem:[%s2765 + $0x18] sm:$0xf]
        %v2773 = vld [vmem:[%s2765 + $0x1c] sm:$0xf]
        %v2774 = vld [vmem:[%s2765 + $0x20] sm:$0xf]
        %v2775 = vld [vmem:[%s2765 + $0x24] sm:$0xf]
        %v2776 = vld [vmem:[%s2765 + $0x28] sm:$0xf]
        %v2777 = vld [vmem:[%s2765 + $0x2c] sm:$0xf]
        %v2778 = vld [vmem:[%s2765 + $0x30] sm:$0xf]
        %v2779 = vld [vmem:[%s2765 + $0x34] sm:$0xf]
        %v2780 = vld [vmem:[%s2765 + $0x38] sm:$0xf]
        %v2781 = vld [vmem:[%s2765 + $0x3c] sm:$0xf]
        %v2782 = vpack.c.bf16 %v2764, %v2763
        %v2799 = vunpack.c.l.b16 %v2766
        %v2800 = vunpack.c.l.b16 %v2767
        %v2801 = vunpack.c.l.b16 %v2768
        %v2802 = vunpack.c.l.b16 %v2769
        %v2803 = vunpack.c.l.b16 %v2770
        %v2804 = vunpack.c.l.b16 %v2771
        %v2805 = vunpack.c.l.b16 %v2772
        %v2806 = vunpack.c.l.b16 %v2773
        %v2807 = vunpack.c.l.b16 %v2774
        %v2808 = vunpack.c.l.b16 %v2775
        %v2809 = vunpack.c.l.b16 %v2776
        %v2810 = vunpack.c.l.b16 %v2777
        %v2811 = vunpack.c.l.b16 %v2778
        %v2812 = vunpack.c.l.b16 %v2779
        %v2813 = vunpack.c.l.b16 %v2780
        %v2814 = vunpack.c.l.b16 %v2781
        %v2815 = vpack.c.b16 %v2800, %v2799
        %v2816 = vpack.c.b16 %v2802, %v2801
        %v2817 = vpack.c.b16 %v2804, %v2803
        %v2818 = vpack.c.b16 %v2806, %v2805
        %v2819 = vpack.c.b16 %v2808, %v2807
        %v2820 = vpack.c.b16 %v2810, %v2809
        %v2821 = vpack.c.b16 %v2812, %v2811
        %v2822 = vpack.c.b16 %v2814, %v2813
        %2831 = vmatpush.bf16.msra.mxu0 %v2822
        %2832 = vmatpush.bf16.msra.mxu0 %v2821
        %2833 = vmatpush.bf16.msra.mxu0 %v2820
        %2834 = vmatpush.bf16.msra.mxu0 %v2819
        %2835 = vmatpush.bf16.msra.mxu0 %v2818
        %2836 = vmatpush.bf16.msra.mxu0 %v2817
        %2837 = vmatpush.bf16.msra.mxu0 %v2816
        %2838 = vmatpush.bf16.msra.mxu0 %v2815
        %2839 = vmatmul.bf16.gmra.mxu0 %v2782
        %v2840 = vpop.f32.mrf.mxu0
        %v2841 = vadd.f32 0.0, %v2840
        %v2842 = vpop.f32.mrf.mxu0
        %v2843 = vadd.f32 0.0, %v2842
        %2844 = vdwg.mxu0
        %v2845 = vadd.f32 %v2185, %v2841
        %v2846 = vadd.f32 %v2186, %v2843
        %s2847 = scalar_lea.vmem [#allocation12], 1
        %v2848 = vld [vmem:[%s2847] sm:$0x1]
        %v2850 = vperm.slane %v2848, 0
        %v2852 = vadd.f32 %v2845, %v2850
        %v2853 = vadd.f32 %v2846, %v2850
        %s2854 = scalar_lea.vmem [#allocation14], 1
        %v2855 = vld [vmem:[%s2854] sm:$0x1]
        %s2856 = scalar_lea.vmem %s9, 1
        %v2857 = vld [vmem:[%s2856] sm:$0x1]
        %2858 = vadd.xlane.f32.xlu0 %v2852
        %v2859 = vpop.xlane.xlu0 %2858
        %2860 = vadd.xlane.f32.xlu0 %v2853
        %v2861 = vpop.xlane.xlu0 %2860
        %v2862 = vmul.f32 %v2859, %v819
        %v2863 = vmul.f32 %v2861, %v819
        %v2864 = vsub.f32 %v2852, %v2862
        %v2865 = vsub.f32 %v2853, %v2863
        %v2866 = vmul.f32 %v2864, %v2864
        %v2867 = vmul.f32 %v2865, %v2865
        %2868 = vadd.xlane.f32.xlu0 %v2866
        %v2869 = vpop.xlane.xlu0 %2868
        %2870 = vadd.xlane.f32.xlu0 %v2867
        %v2871 = vpop.xlane.xlu0 %2870
        %v2872 = vmul.f32 %v2869, %v819
        %v2873 = vmul.f32 %v2871, %v819
        %v2874 = vadd.f32 %v2872, 1e-05
        %v2875 = vadd.f32 %v2873, 1e-05
        %v2876 = vrsqrt.pop %v2874
        %v2877 = vmul.f32 %v2876, %v2874
        %v2878 = vmul.f32 %v2877, %v2876
        %v2879 = vmul.f32 0.5, %v2878
        %v2880 = vsub.f32 1.5, %v2879
        %v2881 = vmul.f32 %v2876, %v2880
        %vm2882 = vweird.f32 %v2874
        %vm2883 = vweird.f32 %v2876
        %vm2884 = vmor %vm2882, %vm2883
        %v2885 = vsel %vm2884, %v2876, %v2881
        %v2886 = vrsqrt.pop %v2875
        %v2887 = vmul.f32 %v2886, %v2875
        %v2888 = vmul.f32 %v2887, %v2886
        %v2889 = vmul.f32 0.5, %v2888
        %v2890 = vsub.f32 1.5, %v2889
        %v2891 = vmul.f32 %v2886, %v2890
        %vm2892 = vweird.f32 %v2875
        %vm2893 = vweird.f32 %v2886
        %vm2894 = vmor %vm2892, %vm2893
        %v2895 = vsel %vm2894, %v2886, %v2891
        %v2896 = vmul.f32 %v2864, %v2885
        %v2897 = vmul.f32 %v2865, %v2895
        %v2899 = vperm.slane %v2855, 0
        %v2901 = vmul.f32 %v2896, %v2899
        %v2902 = vmul.f32 %v2897, %v2899
        %v2904 = vperm.slane %v2857, 0
        %v2906 = vadd.f32 %v2901, %v2904
        %v2907 = vadd.f32 %v2902, %v2904
        %s2908 = scalar_lea.vmem [#allocation15], 256
        %v2909 = vld [vmem:[%s2908] sm:$0xff]
        %v2910 = vld [vmem:[%s2908 + $0x8] sm:$0xff]
        %v2911 = vld [vmem:[%s2908 + $0x10] sm:$0xff]
        %v2912 = vld [vmem:[%s2908 + $0x18] sm:$0xff]
        %v2913 = vld [vmem:[%s2908 + $0x20] sm:$0xff]
        %v2914 = vld [vmem:[%s2908 + $0x28] sm:$0xff]
        %v2915 = vld [vmem:[%s2908 + $0x30] sm:$0xff]
        %v2916 = vld [vmem:[%s2908 + $0x38] sm:$0xff]
        %v2917 = vld [vmem:[%s2908 + $0x40] sm:$0xff]
        %v2918 = vld [vmem:[%s2908 + $0x48] sm:$0xff]
        %v2919 = vld [vmem:[%s2908 + $0x50] sm:$0xff]
        %v2920 = vld [vmem:[%s2908 + $0x58] sm:$0xff]
        %v2921 = vld [vmem:[%s2908 + $0x60] sm:$0xff]
        %v2922 = vld [vmem:[%s2908 + $0x68] sm:$0xff]
        %v2923 = vld [vmem:[%s2908 + $0x70] sm:$0xff]
        %v2924 = vld [vmem:[%s2908 + $0x78] sm:$0xff]
        %v2925 = vld [vmem:[%s2908 + $0x80] sm:$0xff]
        %v2926 = vld [vmem:[%s2908 + $0x88] sm:$0xff]
        %v2927 = vld [vmem:[%s2908 + $0x90] sm:$0xff]
        %v2928 = vld [vmem:[%s2908 + $0x98] sm:$0xff]
        %v2929 = vld [vmem:[%s2908 + $0xa0] sm:$0xff]
        %v2930 = vld [vmem:[%s2908 + $0xa8] sm:$0xff]
        %v2931 = vld [vmem:[%s2908 + $0xb0] sm:$0xff]
        %v2932 = vld [vmem:[%s2908 + $0xb8] sm:$0xff]
        %v2933 = vld [vmem:[%s2908 + $0xc0] sm:$0xff]
        %v2934 = vld [vmem:[%s2908 + $0xc8] sm:$0xff]
        %v2935 = vld [vmem:[%s2908 + $0xd0] sm:$0xff]
        %v2936 = vld [vmem:[%s2908 + $0xd8] sm:$0xff]
        %v2937 = vld [vmem:[%s2908 + $0xe0] sm:$0xff]
        %v2938 = vld [vmem:[%s2908 + $0xe8] sm:$0xff]
        %v2939 = vld [vmem:[%s2908 + $0xf0] sm:$0xff]
        %v2940 = vld [vmem:[%s2908 + $0xf8] sm:$0xff]
        %v2941 = vpack.c.bf16 %v2907, %v2906
        %s2942 = scalar_lea.vmem %s11, 4
        %v2943 = vld [vmem:[%s2942] sm:$0xf]
        %v2945 = vperm.slane %v2943, 0
        %v2946 = vperm.slane %v2943, 1
        %v2947 = vperm.slane %v2943, 2
        %v2948 = vperm.slane %v2943, 3
        %v2985 = vunpack.c.l.b16 %v2909
        %v2986 = vunpack.c.h.b16 %v2909
        %v2987 = vunpack.c.l.b16 %v2910
        %v2988 = vunpack.c.h.b16 %v2910
        %v2989 = vunpack.c.l.b16 %v2911
        %v2990 = vunpack.c.h.b16 %v2911
        %v2991 = vunpack.c.l.b16 %v2912
        %v2992 = vunpack.c.h.b16 %v2912
        %v2993 = vunpack.c.l.b16 %v2913
        %v2994 = vunpack.c.h.b16 %v2913
        %v2995 = vunpack.c.l.b16 %v2914
        %v2996 = vunpack.c.h.b16 %v2914
        %v2997 = vunpack.c.l.b16 %v2915
        %v2998 = vunpack.c.h.b16 %v2915
        %v2999 = vunpack.c.l.b16 %v2916
        %v3000 = vunpack.c.h.b16 %v2916
        %v3001 = vunpack.c.l.b16 %v2917
        %v3002 = vunpack.c.h.b16 %v2917
        %v3003 = vunpack.c.l.b16 %v2918
        %v3004 = vunpack.c.h.b16 %v2918
        %v3005 = vunpack.c.l.b16 %v2919
        %v3006 = vunpack.c.h.b16 %v2919
        %v3007 = vunpack.c.l.b16 %v2920
        %v3008 = vunpack.c.h.b16 %v2920
        %v3009 = vunpack.c.l.b16 %v2921
        %v3010 = vunpack.c.h.b16 %v2921
        %v3011 = vunpack.c.l.b16 %v2922
        %v3012 = vunpack.c.h.b16 %v2922
        %v3013 = vunpack.c.l.b16 %v2923
        %v3014 = vunpack.c.h.b16 %v2923
        %v3015 = vunpack.c.l.b16 %v2924
        %v3016 = vunpack.c.h.b16 %v2924
        %v3017 = vunpack.c.l.b16 %v2925
        %v3018 = vunpack.c.h.b16 %v2925
        %v3019 = vunpack.c.l.b16 %v2926
        %v3020 = vunpack.c.h.b16 %v2926
        %v3021 = vunpack.c.l.b16 %v2927
        %v3022 = vunpack.c.h.b16 %v2927
        %v3023 = vunpack.c.l.b16 %v2928
        %v3024 = vunpack.c.h.b16 %v2928
        %v3025 = vunpack.c.l.b16 %v2929
        %v3026 = vunpack.c.h.b16 %v2929
        %v3027 = vunpack.c.l.b16 %v2930
        %v3028 = vunpack.c.h.b16 %v2930
        %v3029 = vunpack.c.l.b16 %v2931
        %v3030 = vunpack.c.h.b16 %v2931
        %v3031 = vunpack.c.l.b16 %v2932
        %v3032 = vunpack.c.h.b16 %v2932
        %v3033 = vunpack.c.l.b16 %v2933
        %v3034 = vunpack.c.h.b16 %v2933
        %v3035 = vunpack.c.l.b16 %v2934
        %v3036 = vunpack.c.h.b16 %v2934
        %v3037 = vunpack.c.l.b16 %v2935
        %v3038 = vunpack.c.h.b16 %v2935
        %v3039 = vunpack.c.l.b16 %v2936
        %v3040 = vunpack.c.h.b16 %v2936
        %v3041 = vunpack.c.l.b16 %v2937
        %v3042 = vunpack.c.h.b16 %v2937
        %v3043 = vunpack.c.l.b16 %v2938
        %v3044 = vunpack.c.h.b16 %v2938
        %v3045 = vunpack.c.l.b16 %v2939
        %v3046 = vunpack.c.h.b16 %v2939
        %v3047 = vunpack.c.l.b16 %v2940
        %v3048 = vunpack.c.h.b16 %v2940
        %v3049 = vpack.c.b16 %v2989, %v2985
        %v3050 = vpack.c.b16 %v2990, %v2986
        %v3051 = vpack.c.b16 %v2991, %v2987
        %v3052 = vpack.c.b16 %v2992, %v2988
        %v3053 = vpack.c.b16 %v2997, %v2993
        %v3054 = vpack.c.b16 %v2998, %v2994
        %v3055 = vpack.c.b16 %v2999, %v2995
        %v3056 = vpack.c.b16 %v3000, %v2996
        %v3057 = vpack.c.b16 %v3005, %v3001
        %v3058 = vpack.c.b16 %v3006, %v3002
        %v3059 = vpack.c.b16 %v3007, %v3003
        %v3060 = vpack.c.b16 %v3008, %v3004
        %v3061 = vpack.c.b16 %v3013, %v3009
        %v3062 = vpack.c.b16 %v3014, %v3010
        %v3063 = vpack.c.b16 %v3015, %v3011
        %v3064 = vpack.c.b16 %v3016, %v3012
        %v3065 = vpack.c.b16 %v3021, %v3017
        %v3066 = vpack.c.b16 %v3022, %v3018
        %v3067 = vpack.c.b16 %v3023, %v3019
        %v3068 = vpack.c.b16 %v3024, %v3020
        %v3069 = vpack.c.b16 %v3029, %v3025
        %v3070 = vpack.c.b16 %v3030, %v3026
        %v3071 = vpack.c.b16 %v3031, %v3027
        %v3072 = vpack.c.b16 %v3032, %v3028
        %v3073 = vpack.c.b16 %v3037, %v3033
        %v3074 = vpack.c.b16 %v3038, %v3034
        %v3075 = vpack.c.b16 %v3039, %v3035
        %v3076 = vpack.c.b16 %v3040, %v3036
        %v3077 = vpack.c.b16 %v3045, %v3041
        %v3078 = vpack.c.b16 %v3046, %v3042
        %v3079 = vpack.c.b16 %v3047, %v3043
        %v3080 = vpack.c.b16 %v3048, %v3044
        %3113 = vmatpush.bf16.msra.mxu0 %v3077
        %3114 = vmatpush.bf16.msra.mxu0 %v3073
        %3115 = vmatpush.bf16.msra.mxu0 %v3069
        %3116 = vmatpush.bf16.msra.mxu0 %v3065
        %3117 = vmatpush.bf16.msra.mxu0 %v3061
        %3118 = vmatpush.bf16.msra.mxu0 %v3057
        %3119 = vmatpush.bf16.msra.mxu0 %v3053
        %3120 = vmatpush.bf16.msra.mxu0 %v3049
        %3121 = vmatmul.bf16.gmra.mxu0 %v2941
        %v3122 = vpop.f32.mrf.mxu0
        %v3123 = vadd.f32 %v2945, %v3122
        %v3124 = vpop.f32.mrf.mxu0
        %v3125 = vadd.f32 %v2945, %v3124
        %3126 = vdwg.mxu0
        %3127 = vmatpush.bf16.msra.mxu0 %v3078
        %3128 = vmatpush.bf16.msra.mxu0 %v3074
        %3129 = vmatpush.bf16.msra.mxu0 %v3070
        %3130 = vmatpush.bf16.msra.mxu0 %v3066
        %3131 = vmatpush.bf16.msra.mxu0 %v3062
        %3132 = vmatpush.bf16.msra.mxu0 %v3058
        %3133 = vmatpush.bf16.msra.mxu0 %v3054
        %3134 = vmatpush.bf16.msra.mxu0 %v3050
        %3135 = vmatmul.bf16.gmra.mxu0 %v2941
        %v3136 = vpop.f32.mrf.mxu0
        %v3137 = vadd.f32 %v2946, %v3136
        %v3138 = vpop.f32.mrf.mxu0
        %v3139 = vadd.f32 %v2946, %v3138
        %3140 = vdwg.mxu0
        %3141 = vmatpush.bf16.msra.mxu0 %v3079
        %3142 = vmatpush.bf16.msra.mxu0 %v3075
        %3143 = vmatpush.bf16.msra.mxu0 %v3071
        %3144 = vmatpush.bf16.msra.mxu0 %v3067
        %3145 = vmatpush.bf16.msra.mxu0 %v3063
        %3146 = vmatpush.bf16.msra.mxu0 %v3059
        %3147 = vmatpush.bf16.msra.mxu0 %v3055
        %3148 = vmatpush.bf16.msra.mxu0 %v3051
        %3149 = vmatmul.bf16.gmra.mxu0 %v2941
        %v3150 = vpop.f32.mrf.mxu0
        %v3151 = vadd.f32 %v2947, %v3150
        %v3152 = vpop.f32.mrf.mxu0
        %v3153 = vadd.f32 %v2947, %v3152
        %3154 = vdwg.mxu0
        %3155 = vmatpush.bf16.msra.mxu0 %v3080
        %3156 = vmatpush.bf16.msra.mxu0 %v3076
        %3157 = vmatpush.bf16.msra.mxu0 %v3072
        %3158 = vmatpush.bf16.msra.mxu0 %v3068
        %3159 = vmatpush.bf16.msra.mxu0 %v3064
        %3160 = vmatpush.bf16.msra.mxu0 %v3060
        %3161 = vmatpush.bf16.msra.mxu0 %v3056
        %3162 = vmatpush.bf16.msra.mxu0 %v3052
        %3163 = vmatmul.bf16.gmra.mxu0 %v2941
        %v3164 = vpop.f32.mrf.mxu0
        %v3165 = vadd.f32 %v2948, %v3164
        %v3166 = vpop.f32.mrf.mxu0
        %v3167 = vadd.f32 %v2948, %v3166
        %3168 = vdwg.mxu0
        %v3169 = vmul.f32 %v3123, %v3123
        %v3170 = vmul.f32 %v3137, %v3137
        %v3171 = vmul.f32 %v3151, %v3151
        %v3172 = vmul.f32 %v3165, %v3165
        %v3173 = vmul.f32 %v3125, %v3125
        %v3174 = vmul.f32 %v3139, %v3139
        %v3175 = vmul.f32 %v3153, %v3153
        %v3176 = vmul.f32 %v3167, %v3167
        %v3177 = vmul.f32 %v3123, %v3169
        %v3178 = vmul.f32 %v3137, %v3170
        %v3179 = vmul.f32 %v3151, %v3171
        %v3180 = vmul.f32 %v3165, %v3172
        %v3181 = vmul.f32 %v3125, %v3173
        %v3182 = vmul.f32 %v3139, %v3174
        %v3183 = vmul.f32 %v3153, %v3175
        %v3184 = vmul.f32 %v3167, %v3176
        %v3185 = vmul.f32 %v3177, 0.044715
        %v3186 = vmul.f32 %v3178, 0.044715
        %v3187 = vmul.f32 %v3179, 0.044715
        %v3188 = vmul.f32 %v3180, 0.044715
        %v3189 = vmul.f32 %v3181, 0.044715
        %v3190 = vmul.f32 %v3182, 0.044715
        %v3191 = vmul.f32 %v3183, 0.044715
        %v3192 = vmul.f32 %v3184, 0.044715
        %v3193 = vadd.f32 %v3123, %v3185
        %v3194 = vadd.f32 %v3137, %v3186
        %v3195 = vadd.f32 %v3151, %v3187
        %v3196 = vadd.f32 %v3165, %v3188
        %v3197 = vadd.f32 %v3125, %v3189
        %v3198 = vadd.f32 %v3139, %v3190
        %v3199 = vadd.f32 %v3153, %v3191
        %v3200 = vadd.f32 %v3167, %v3192
        %v3201 = vmul.f32 %v3193, 0.7978846
        %v3202 = vmul.f32 %v3194, 0.7978846
        %v3203 = vmul.f32 %v3195, 0.7978846
        %v3204 = vmul.f32 %v3196, 0.7978846
        %v3205 = vmul.f32 %v3197, 0.7978846
        %v3206 = vmul.f32 %v3198, 0.7978846
        %v3207 = vmul.f32 %v3199, 0.7978846
        %v3208 = vmul.f32 %v3200, 0.7978846
        %v3209 = vtanh.pop %v3201
        %v3210 = vtanh.pop %v3202
        %v3211 = vtanh.pop %v3203
        %v3212 = vtanh.pop %v3204
        %v3213 = vtanh.pop %v3205
        %v3214 = vtanh.pop %v3206
        %v3215 = vtanh.pop %v3207
        %v3216 = vtanh.pop %v3208
        %v3217 = vadd.f32 %v3209, 1.0
        %v3218 = vadd.f32 %v3210, 1.0
        %v3219 = vadd.f32 %v3211, 1.0
        %v3220 = vadd.f32 %v3212, 1.0
        %v3221 = vadd.f32 %v3213, 1.0
        %v3222 = vadd.f32 %v3214, 1.0
        %v3223 = vadd.f32 %v3215, 1.0
        %v3224 = vadd.f32 %v3216, 1.0
        %v3225 = vmul.f32 %v3217, 0.5
        %v3226 = vmul.f32 %v3218, 0.5
        %v3227 = vmul.f32 %v3219, 0.5
        %v3228 = vmul.f32 %v3220, 0.5
        %v3229 = vmul.f32 %v3221, 0.5
        %v3230 = vmul.f32 %v3222, 0.5
        %v3231 = vmul.f32 %v3223, 0.5
        %v3232 = vmul.f32 %v3224, 0.5
        %v3233 = vmul.f32 %v3123, %v3225
        %v3234 = vmul.f32 %v3137, %v3226
        %v3235 = vmul.f32 %v3151, %v3227
        %v3236 = vmul.f32 %v3165, %v3228
        %v3237 = vmul.f32 %v3125, %v3229
        %v3238 = vmul.f32 %v3139, %v3230
        %v3239 = vmul.f32 %v3153, %v3231
        %v3240 = vmul.f32 %v3167, %v3232
        %s3241 = scalar_lea.vmem [#allocation17], 256
        %v3242 = vld [vmem:[%s3241] sm:$0xf]
        %v3243 = vld [vmem:[%s3241 + $0x4] sm:$0xf]
        %v3244 = vld [vmem:[%s3241 + $0x8] sm:$0xf]
        %v3245 = vld [vmem:[%s3241 + $0xc] sm:$0xf]
        %v3246 = vld [vmem:[%s3241 + $0x10] sm:$0xf]
        %v3247 = vld [vmem:[%s3241 + $0x14] sm:$0xf]
        %v3248 = vld [vmem:[%s3241 + $0x18] sm:$0xf]
        %v3249 = vld [vmem:[%s3241 + $0x1c] sm:$0xf]
        %v3250 = vld [vmem:[%s3241 + $0x20] sm:$0xf]
        %v3251 = vld [vmem:[%s3241 + $0x24] sm:$0xf]
        %v3252 = vld [vmem:[%s3241 + $0x28] sm:$0xf]
        %v3253 = vld [vmem:[%s3241 + $0x2c] sm:$0xf]
        %v3254 = vld [vmem:[%s3241 + $0x30] sm:$0xf]
        %v3255 = vld [vmem:[%s3241 + $0x34] sm:$0xf]
        %v3256 = vld [vmem:[%s3241 + $0x38] sm:$0xf]
        %v3257 = vld [vmem:[%s3241 + $0x3c] sm:$0xf]
        %v3258 = vld [vmem:[%s3241 + $0x40] sm:$0xf]
        %v3259 = vld [vmem:[%s3241 + $0x44] sm:$0xf]
        %v3260 = vld [vmem:[%s3241 + $0x48] sm:$0xf]
        %v3261 = vld [vmem:[%s3241 + $0x4c] sm:$0xf]
        %v3262 = vld [vmem:[%s3241 + $0x50] sm:$0xf]
        %v3263 = vld [vmem:[%s3241 + $0x54] sm:$0xf]
        %v3264 = vld [vmem:[%s3241 + $0x58] sm:$0xf]
        %v3265 = vld [vmem:[%s3241 + $0x5c] sm:$0xf]
        %v3266 = vld [vmem:[%s3241 + $0x60] sm:$0xf]
        %v3267 = vld [vmem:[%s3241 + $0x64] sm:$0xf]
        %v3268 = vld [vmem:[%s3241 + $0x68] sm:$0xf]
        %v3269 = vld [vmem:[%s3241 + $0x6c] sm:$0xf]
        %v3270 = vld [vmem:[%s3241 + $0x70] sm:$0xf]
        %v3271 = vld [vmem:[%s3241 + $0x74] sm:$0xf]
        %v3272 = vld [vmem:[%s3241 + $0x78] sm:$0xf]
        %v3273 = vld [vmem:[%s3241 + $0x7c] sm:$0xf]
        %v3274 = vld [vmem:[%s3241 + $0x80] sm:$0xf]
        %v3275 = vld [vmem:[%s3241 + $0x84] sm:$0xf]
        %v3276 = vld [vmem:[%s3241 + $0x88] sm:$0xf]
        %v3277 = vld [vmem:[%s3241 + $0x8c] sm:$0xf]
        %v3278 = vld [vmem:[%s3241 + $0x90] sm:$0xf]
        %v3279 = vld [vmem:[%s3241 + $0x94] sm:$0xf]
        %v3280 = vld [vmem:[%s3241 + $0x98] sm:$0xf]
        %v3281 = vld [vmem:[%s3241 + $0x9c] sm:$0xf]
        %v3282 = vld [vmem:[%s3241 + $0xa0] sm:$0xf]
        %v3283 = vld [vmem:[%s3241 + $0xa4] sm:$0xf]
        %v3284 = vld [vmem:[%s3241 + $0xa8] sm:$0xf]
        %v3285 = vld [vmem:[%s3241 + $0xac] sm:$0xf]
        %v3286 = vld [vmem:[%s3241 + $0xb0] sm:$0xf]
        %v3287 = vld [vmem:[%s3241 + $0xb4] sm:$0xf]
        %v3288 = vld [vmem:[%s3241 + $0xb8] sm:$0xf]
        %v3289 = vld [vmem:[%s3241 + $0xbc] sm:$0xf]
        %v3290 = vld [vmem:[%s3241 + $0xc0] sm:$0xf]
        %v3291 = vld [vmem:[%s3241 + $0xc4] sm:$0xf]
        %v3292 = vld [vmem:[%s3241 + $0xc8] sm:$0xf]
        %v3293 = vld [vmem:[%s3241 + $0xcc] sm:$0xf]
        %v3294 = vld [vmem:[%s3241 + $0xd0] sm:$0xf]
        %v3295 = vld [vmem:[%s3241 + $0xd4] sm:$0xf]
        %v3296 = vld [vmem:[%s3241 + $0xd8] sm:$0xf]
        %v3297 = vld [vmem:[%s3241 + $0xdc] sm:$0xf]
        %v3298 = vld [vmem:[%s3241 + $0xe0] sm:$0xf]
        %v3299 = vld [vmem:[%s3241 + $0xe4] sm:$0xf]
        %v3300 = vld [vmem:[%s3241 + $0xe8] sm:$0xf]
        %v3301 = vld [vmem:[%s3241 + $0xec] sm:$0xf]
        %v3302 = vld [vmem:[%s3241 + $0xf0] sm:$0xf]
        %v3303 = vld [vmem:[%s3241 + $0xf4] sm:$0xf]
        %v3304 = vld [vmem:[%s3241 + $0xf8] sm:$0xf]
        %v3305 = vld [vmem:[%s3241 + $0xfc] sm:$0xf]
        %v3306 = vpack.c.bf16 %v3237, %v3233
        %v3307 = vpack.c.bf16 %v3238, %v3234
        %v3308 = vpack.c.bf16 %v3239, %v3235
        %v3309 = vpack.c.bf16 %v3240, %v3236
        %v3374 = vunpack.c.l.b16 %v3242
        %v3375 = vunpack.c.l.b16 %v3243
        %v3376 = vunpack.c.l.b16 %v3244
        %v3377 = vunpack.c.l.b16 %v3245
        %v3378 = vunpack.c.l.b16 %v3246
        %v3379 = vunpack.c.l.b16 %v3247
        %v3380 = vunpack.c.l.b16 %v3248
        %v3381 = vunpack.c.l.b16 %v3249
        %v3382 = vunpack.c.l.b16 %v3250
        %v3383 = vunpack.c.l.b16 %v3251
        %v3384 = vunpack.c.l.b16 %v3252
        %v3385 = vunpack.c.l.b16 %v3253
        %v3386 = vunpack.c.l.b16 %v3254
        %v3387 = vunpack.c.l.b16 %v3255
        %v3388 = vunpack.c.l.b16 %v3256
        %v3389 = vunpack.c.l.b16 %v3257
        %v3390 = vunpack.c.l.b16 %v3258
        %v3391 = vunpack.c.l.b16 %v3259
        %v3392 = vunpack.c.l.b16 %v3260
        %v3393 = vunpack.c.l.b16 %v3261
        %v3394 = vunpack.c.l.b16 %v3262
        %v3395 = vunpack.c.l.b16 %v3263
        %v3396 = vunpack.c.l.b16 %v3264
        %v3397 = vunpack.c.l.b16 %v3265
        %v3398 = vunpack.c.l.b16 %v3266
        %v3399 = vunpack.c.l.b16 %v3267
        %v3400 = vunpack.c.l.b16 %v3268
        %v3401 = vunpack.c.l.b16 %v3269
        %v3402 = vunpack.c.l.b16 %v3270
        %v3403 = vunpack.c.l.b16 %v3271
        %v3404 = vunpack.c.l.b16 %v3272
        %v3405 = vunpack.c.l.b16 %v3273
        %v3406 = vunpack.c.l.b16 %v3274
        %v3407 = vunpack.c.l.b16 %v3275
        %v3408 = vunpack.c.l.b16 %v3276
        %v3409 = vunpack.c.l.b16 %v3277
        %v3410 = vunpack.c.l.b16 %v3278
        %v3411 = vunpack.c.l.b16 %v3279
        %v3412 = vunpack.c.l.b16 %v3280
        %v3413 = vunpack.c.l.b16 %v3281
        %v3414 = vunpack.c.l.b16 %v3282
        %v3415 = vunpack.c.l.b16 %v3283
        %v3416 = vunpack.c.l.b16 %v3284
        %v3417 = vunpack.c.l.b16 %v3285
        %v3418 = vunpack.c.l.b16 %v3286
        %v3419 = vunpack.c.l.b16 %v3287
        %v3420 = vunpack.c.l.b16 %v3288
        %v3421 = vunpack.c.l.b16 %v3289
        %v3422 = vunpack.c.l.b16 %v3290
        %v3423 = vunpack.c.l.b16 %v3291
        %v3424 = vunpack.c.l.b16 %v3292
        %v3425 = vunpack.c.l.b16 %v3293
        %v3426 = vunpack.c.l.b16 %v3294
        %v3427 = vunpack.c.l.b16 %v3295
        %v3428 = vunpack.c.l.b16 %v3296
        %v3429 = vunpack.c.l.b16 %v3297
        %v3430 = vunpack.c.l.b16 %v3298
        %v3431 = vunpack.c.l.b16 %v3299
        %v3432 = vunpack.c.l.b16 %v3300
        %v3433 = vunpack.c.l.b16 %v3301
        %v3434 = vunpack.c.l.b16 %v3302
        %v3435 = vunpack.c.l.b16 %v3303
        %v3436 = vunpack.c.l.b16 %v3304
        %v3437 = vunpack.c.l.b16 %v3305
        %v3438 = vpack.c.b16 %v3375, %v3374
        %v3439 = vpack.c.b16 %v3377, %v3376
        %v3440 = vpack.c.b16 %v3379, %v3378
        %v3441 = vpack.c.b16 %v3381, %v3380
        %v3442 = vpack.c.b16 %v3383, %v3382
        %v3443 = vpack.c.b16 %v3385, %v3384
        %v3444 = vpack.c.b16 %v3387, %v3386
        %v3445 = vpack.c.b16 %v3389, %v3388
        %v3446 = vpack.c.b16 %v3391, %v3390
        %v3447 = vpack.c.b16 %v3393, %v3392
        %v3448 = vpack.c.b16 %v3395, %v3394
        %v3449 = vpack.c.b16 %v3397, %v3396
        %v3450 = vpack.c.b16 %v3399, %v3398
        %v3451 = vpack.c.b16 %v3401, %v3400
        %v3452 = vpack.c.b16 %v3403, %v3402
        %v3453 = vpack.c.b16 %v3405, %v3404
        %v3454 = vpack.c.b16 %v3407, %v3406
        %v3455 = vpack.c.b16 %v3409, %v3408
        %v3456 = vpack.c.b16 %v3411, %v3410
        %v3457 = vpack.c.b16 %v3413, %v3412
        %v3458 = vpack.c.b16 %v3415, %v3414
        %v3459 = vpack.c.b16 %v3417, %v3416
        %v3460 = vpack.c.b16 %v3419, %v3418
        %v3461 = vpack.c.b16 %v3421, %v3420
        %v3462 = vpack.c.b16 %v3423, %v3422
        %v3463 = vpack.c.b16 %v3425, %v3424
        %v3464 = vpack.c.b16 %v3427, %v3426
        %v3465 = vpack.c.b16 %v3429, %v3428
        %v3466 = vpack.c.b16 %v3431, %v3430
        %v3467 = vpack.c.b16 %v3433, %v3432
        %v3468 = vpack.c.b16 %v3435, %v3434
        %v3469 = vpack.c.b16 %v3437, %v3436
        %3502 = vmatpush.bf16.msra.mxu0 %v3445
        %3503 = vmatpush.bf16.msra.mxu0 %v3444
        %3504 = vmatpush.bf16.msra.mxu0 %v3443
        %3505 = vmatpush.bf16.msra.mxu0 %v3442
        %3506 = vmatpush.bf16.msra.mxu0 %v3441
        %3507 = vmatpush.bf16.msra.mxu0 %v3440
        %3508 = vmatpush.bf16.msra.mxu0 %v3439
        %3509 = vmatpush.bf16.msra.mxu0 %v3438
        %3510 = vmatmul.bf16.gmra.mxu0 %v3306
        %v3511 = vpop.f32.mrf.mxu0
        %v3512 = vadd.f32 0.0, %v3511
        %v3513 = vpop.f32.mrf.mxu0
        %v3514 = vadd.f32 0.0, %v3513
        %3515 = vdwg.mxu0
        %3516 = vmatpush.bf16.msra.mxu0 %v3453
        %3517 = vmatpush.bf16.msra.mxu0 %v3452
        %3518 = vmatpush.bf16.msra.mxu0 %v3451
        %3519 = vmatpush.bf16.msra.mxu0 %v3450
        %3520 = vmatpush.bf16.msra.mxu0 %v3449
        %3521 = vmatpush.bf16.msra.mxu0 %v3448
        %3522 = vmatpush.bf16.msra.mxu0 %v3447
        %3523 = vmatpush.bf16.msra.mxu0 %v3446
        %3524 = vmatmul.bf16.gmra.mxu0 %v3307
        %v3525 = vpop.f32.mrf.mxu0
        %v3526 = vadd.f32 %v3512, %v3525
        %v3527 = vpop.f32.mrf.mxu0
        %v3528 = vadd.f32 %v3514, %v3527
        %3529 = vdwg.mxu0
        %3530 = vmatpush.bf16.msra.mxu0 %v3461
        %3531 = vmatpush.bf16.msra.mxu0 %v3460
        %3532 = vmatpush.bf16.msra.mxu0 %v3459
        %3533 = vmatpush.bf16.msra.mxu0 %v3458
        %3534 = vmatpush.bf16.msra.mxu0 %v3457
        %3535 = vmatpush.bf16.msra.mxu0 %v3456
        %3536 = vmatpush.bf16.msra.mxu0 %v3455
        %3537 = vmatpush.bf16.msra.mxu0 %v3454
        %3538 = vmatmul.bf16.gmra.mxu0 %v3308
        %v3539 = vpop.f32.mrf.mxu0
        %v3540 = vadd.f32 %v3526, %v3539
        %v3541 = vpop.f32.mrf.mxu0
        %v3542 = vadd.f32 %v3528, %v3541
        %3543 = vdwg.mxu0
        %3544 = vmatpush.bf16.msra.mxu0 %v3469
        %3545 = vmatpush.bf16.msra.mxu0 %v3468
        %3546 = vmatpush.bf16.msra.mxu0 %v3467
        %3547 = vmatpush.bf16.msra.mxu0 %v3466
        %3548 = vmatpush.bf16.msra.mxu0 %v3465
        %3549 = vmatpush.bf16.msra.mxu0 %v3464
        %3550 = vmatpush.bf16.msra.mxu0 %v3463
        %3551 = vmatpush.bf16.msra.mxu0 %v3462
        %3552 = vmatmul.bf16.gmra.mxu0 %v3309
        %v3553 = vpop.f32.mrf.mxu0
        %v3554 = vadd.f32 %v3540, %v3553
        %v3555 = vpop.f32.mrf.mxu0
        %v3556 = vadd.f32 %v3542, %v3555
        %3557 = vdwg.mxu0
        %v3558 = vadd.f32 %v2852, %v3554
        %v3559 = vadd.f32 %v2853, %v3556
        %s3560 = scalar_lea.vmem %s13, 1
        %v3561 = vld [vmem:[%s3560] sm:$0x1]
        %v3563 = vperm.slane %v3561, 0
        %v3565 = vadd.f32 %v3558, %v3563
        %v3566 = vadd.f32 %v3559, %v3563
        %v3567 = vld [vmem:[%s14] sm:$0x1]
        %v3568 = vld [vmem:[%s15] sm:$0x1]
        %3569 = vadd.xlane.f32.xlu0 %v3565
        %v3570 = vpop.xlane.xlu0 %3569
        %3571 = vadd.xlane.f32.xlu0 %v3566
        %v3572 = vpop.xlane.xlu0 %3571
        %v3573 = vmul.f32 %v3570, %v819
        %v3574 = vmul.f32 %v3572, %v819
        %v3575 = vsub.f32 %v3565, %v3573
        %v3576 = vsub.f32 %v3566, %v3574
        %v3577 = vmul.f32 %v3575, %v3575
        %v3578 = vmul.f32 %v3576, %v3576
        %3579 = vadd.xlane.f32.xlu0 %v3577
        %v3580 = vpop.xlane.xlu0 %3579
        %3581 = vadd.xlane.f32.xlu0 %v3578
        %v3582 = vpop.xlane.xlu0 %3581
        %v3583 = vmul.f32 %v3580, %v819
        %v3584 = vmul.f32 %v3582, %v819
        %v3585 = vadd.f32 %v3583, 1e-05
        %v3586 = vadd.f32 %v3584, 1e-05
        %v3587 = vrsqrt.pop %v3585
        %v3588 = vmul.f32 %v3587, %v3585
        %v3589 = vmul.f32 %v3588, %v3587
        %v3590 = vmul.f32 0.5, %v3589
        %v3591 = vsub.f32 1.5, %v3590
        %v3592 = vmul.f32 %v3587, %v3591
        %vm3593 = vweird.f32 %v3585
        %vm3594 = vweird.f32 %v3587
        %vm3595 = vmor %vm3593, %vm3594
        %v3596 = vsel %vm3595, %v3587, %v3592
        %v3597 = vrsqrt.pop %v3586
        %v3598 = vmul.f32 %v3597, %v3586
        %v3599 = vmul.f32 %v3598, %v3597
        %v3600 = vmul.f32 0.5, %v3599
        %v3601 = vsub.f32 1.5, %v3600
        %v3602 = vmul.f32 %v3597, %v3601
        %vm3603 = vweird.f32 %v3586
        %vm3604 = vweird.f32 %v3597
        %vm3605 = vmor %vm3603, %vm3604
        %v3606 = vsel %vm3605, %v3597, %v3602
        %v3607 = vmul.f32 %v3575, %v3596
        %v3608 = vmul.f32 %v3576, %v3606
        %v3610 = vperm.slane %v3567, 0
        %v3612 = vmul.f32 %v3607, %v3610
        %v3613 = vmul.f32 %v3608, %v3610
        %v3615 = vperm.slane %v3568, 0
        %v3617 = vadd.f32 %v3612, %v3615
        %v3618 = vadd.f32 %v3613, %v3615
        %v3619 = vld [vmem:[#allocation18] sm:$0xff]
        %v3620 = vld [vmem:[#allocation18 + $0x8] sm:$0xff]
        %v3621 = vld [vmem:[#allocation18 + $0x10] sm:$0xff]
        %v3622 = vld [vmem:[#allocation18 + $0x18] sm:$0xff]
        %v3623 = vld [vmem:[#allocation18 + $0x20] sm:$0xff]
        %v3624 = vld [vmem:[#allocation18 + $0x28] sm:$0xff]
        %v3625 = vld [vmem:[#allocation18 + $0x30] sm:$0xff]
        %v3626 = vld [vmem:[#allocation18 + $0x38] sm:$0xff]
        %v3627 = vld [vmem:[#allocation18 + $0x40] sm:$0xff]
        %v3628 = vld [vmem:[#allocation18 + $0x48] sm:$0xff]
        %v3629 = vld [vmem:[#allocation18 + $0x50] sm:$0xff]
        %v3630 = vld [vmem:[#allocation18 + $0x58] sm:$0xff]
        %v3631 = vld [vmem:[#allocation18 + $0x60] sm:$0xff]
        %v3632 = vld [vmem:[#allocation18 + $0x68] sm:$0xff]
        %v3633 = vld [vmem:[#allocation18 + $0x70] sm:$0xff]
        %v3634 = vld [vmem:[#allocation18 + $0x78] sm:$0xff]
        %v3635 = vpack.c.bf16 %v3618, %v3617
        %v3636 = vld [vmem:[%s17] sm:$0x3]
        %v3638 = vperm.slane %v3636, 0
        %v3639 = vperm.slane %v3636, 1
        %v3658 = vunpack.c.l.b16 %v3619
        %v3659 = vunpack.c.h.b16 %v3619
        %v3660 = vunpack.c.l.b16 %v3620
        %v3661 = vunpack.c.h.b16 %v3620
        %v3662 = vunpack.c.l.b16 %v3621
        %v3663 = vunpack.c.h.b16 %v3621
        %v3664 = vunpack.c.l.b16 %v3622
        %v3665 = vunpack.c.h.b16 %v3622
        %v3666 = vunpack.c.l.b16 %v3623
        %v3667 = vunpack.c.h.b16 %v3623
        %v3668 = vunpack.c.l.b16 %v3624
        %v3669 = vunpack.c.h.b16 %v3624
        %v3670 = vunpack.c.l.b16 %v3625
        %v3671 = vunpack.c.h.b16 %v3625
        %v3672 = vunpack.c.l.b16 %v3626
        %v3673 = vunpack.c.h.b16 %v3626
        %v3674 = vunpack.c.l.b16 %v3627
        %v3675 = vunpack.c.h.b16 %v3627
        %v3676 = vunpack.c.l.b16 %v3628
        %v3677 = vunpack.c.h.b16 %v3628
        %v3678 = vunpack.c.l.b16 %v3629
        %v3679 = vunpack.c.h.b16 %v3629
        %v3680 = vunpack.c.l.b16 %v3630
        %v3681 = vunpack.c.h.b16 %v3630
        %v3682 = vunpack.c.l.b16 %v3631
        %v3683 = vunpack.c.h.b16 %v3631
        %v3684 = vunpack.c.l.b16 %v3632
        %v3685 = vunpack.c.h.b16 %v3632
        %v3686 = vunpack.c.l.b16 %v3633
        %v3687 = vunpack.c.h.b16 %v3633
        %v3688 = vunpack.c.l.b16 %v3634
        %v3689 = vunpack.c.h.b16 %v3634
        %v3690 = vpack.c.b16 %v3660, %v3658
        %v3691 = vpack.c.b16 %v3661, %v3659
        %v3692 = vpack.c.b16 %v3664, %v3662
        %v3693 = vpack.c.b16 %v3665, %v3663
        %v3694 = vpack.c.b16 %v3668, %v3666
        %v3695 = vpack.c.b16 %v3669, %v3667
        %v3696 = vpack.c.b16 %v3672, %v3670
        %v3697 = vpack.c.b16 %v3673, %v3671
        %v3698 = vpack.c.b16 %v3676, %v3674
        %v3699 = vpack.c.b16 %v3677, %v3675
        %v3700 = vpack.c.b16 %v3680, %v3678
        %v3701 = vpack.c.b16 %v3681, %v3679
        %v3702 = vpack.c.b16 %v3684, %v3682
        %v3703 = vpack.c.b16 %v3685, %v3683
        %v3704 = vpack.c.b16 %v3688, %v3686
        %v3705 = vpack.c.b16 %v3689, %v3687
        %3722 = vmatpush.bf16.msra.mxu0 %v3704
        %3723 = vmatpush.bf16.msra.mxu0 %v3702
        %3724 = vmatpush.bf16.msra.mxu0 %v3700
        %3725 = vmatpush.bf16.msra.mxu0 %v3698
        %3726 = vmatpush.bf16.msra.mxu0 %v3696
        %3727 = vmatpush.bf16.msra.mxu0 %v3694
        %3728 = vmatpush.bf16.msra.mxu0 %v3692
        %3729 = vmatpush.bf16.msra.mxu0 %v3690
        %3730 = vmatmul.bf16.gmra.mxu0 %v3635
        %v3731 = vpop.f32.mrf.mxu0
        %v3732 = vadd.f32 %v3638, %v3731
        %v3733 = vpop.f32.mrf.mxu0
        %v3734 = vadd.f32 %v3638, %v3733
        %3735 = vdwg.mxu0
        %3736 = vmatpush.bf16.msra.mxu0 %v3705
        %3737 = vmatpush.bf16.msra.mxu0 %v3703
        %3738 = vmatpush.bf16.msra.mxu0 %v3701
        %3739 = vmatpush.bf16.msra.mxu0 %v3699
        %3740 = vmatpush.bf16.msra.mxu0 %v3697
        %3741 = vmatpush.bf16.msra.mxu0 %v3695
        %3742 = vmatpush.bf16.msra.mxu0 %v3693
        %3743 = vmatpush.bf16.msra.mxu0 %v3691
        %3744 = vmatmul.bf16.gmra.mxu0 %v3635
        %v3745 = vpop.f32.mrf.mxu0
        %v3746 = vadd.f32 %v3639, %v3745
        %v3747 = vpop.f32.mrf.mxu0
        %v3748 = vadd.f32 %v3639, %v3747
        %3749 = vdwg.mxu0
        %3750 = vst [vmem:[%s780] sm:$0xff] %v3732
        %3751 = vst [vmem:[%s780 + $0x8] sm:$0xff] %v3746
        %3752 = vst [vmem:[%s780 + $0x10] sm:$0xff] %v3734
        %3753 = vst [vmem:[%s780 + $0x18] sm:$0xff] %v3748
        %v3754 = vld [vmem:[%s796] sm:$0xff]
        %v3755 = vld [vmem:[%s796 + $0x8] sm:$0xff]
        %v3756 = vmax.f32 %v3732, %v3746
        %3757 = vmax.xlane.f32.xlu0 %v3756
        %v3758 = vpop.xlane.xlu0 %3757
        %v3759 = vmax.f32 %v3734, %v3748
        %3760 = vmax.xlane.f32.xlu0 %v3759
        %v3761 = vpop.xlane.xlu0 %3760
        %v3762 = vsub.f32 %v3732, %v3758
        %v3763 = vsub.f32 %v3746, %v3758
        %v3764 = vsub.f32 %v3734, %v3761
        %v3765 = vsub.f32 %v3748, %v3761
        %v3766 = vmul.f32 %v3762, 1.442695
        %v3767 = vpow.pop %v3766
        %v3768 = vmul.f32 %v3763, 1.442695
        %v3769 = vpow.pop %v3768
        %v3770 = vmul.f32 %v3764, 1.442695
        %v3771 = vpow.pop %v3770
        %v3772 = vmul.f32 %v3765, 1.442695
        %v3773 = vpow.pop %v3772
        %v3774 = vadd.f32 %v3767, %v3769
        %3775 = vadd.xlane.f32.xlu0 %v3774
        %v3776 = vpop.xlane.xlu0 %3775
        %v3777 = vadd.f32 %v3771, %v3773
        %3778 = vadd.xlane.f32.xlu0 %v3777
        %v3779 = vpop.xlane.xlu0 %3778
        %v3780 = vlog2.pop %v3776
        %v3781 = vmul.f32 %v3780, 0.6931472
        %v3782 = vlog2.pop %v3779
        %v3783 = vmul.f32 %v3782, 0.6931472
        %v3784 = vadd.f32 %v3781, %v3758
        %v3785 = vadd.f32 %v3783, %v3761
        %v3786 = vadd.s32 %v804, 128
        %3787 = vset.pattern.permute.xlu0 0
        %3788 = vperm.xlu0 %3787, %v3754
        %v3789 = vpop.permute.xlu0 %3788
        %3790 = vset.pattern.permute.xlu0 0
        %3791 = vperm.xlu0 %3790, %v3755
        %v3792 = vpop.permute.xlu0 %3791
        %vm3793 = vcmp.eq.s32.totalorder %v804, %v3789
        %vm3794 = vcmp.eq.s32.totalorder %v3786, %v3789
        %vm3795 = vcmp.eq.s32.totalorder %v804, %v3792
        %vm3796 = vcmp.eq.s32.totalorder %v3786, %v3792
        %v3797 = vsel %vm3793, 1, 0
        %v3798 = vsel %vm3794, 1, 0
        %v3799 = vsel %vm3795, 1, 0
        %v3800 = vsel %vm3796, 1, 0
        %v3801 = vcvt.s32.f32 %v3797
        %v3802 = vcvt.s32.f32 %v3798
        %v3803 = vcvt.s32.f32 %v3799
        %v3804 = vcvt.s32.f32 %v3800
        %v3805 = vmul.f32 %v3732, %v3801
        %v3806 = vmul.f32 %v3746, %v3802
        %v3807 = vmul.f32 %v3734, %v3803
        %v3808 = vmul.f32 %v3748, %v3804
        %v3809 = vadd.f32 %v3805, %v3806
        %3810 = vadd.xlane.f32.xlu0 %v3809
        %v3811 = vpop.xlane.xlu0 %3810
        %v3812 = vadd.f32 %v3807, %v3808
        %3813 = vadd.xlane.f32.xlu0 %v3812
        %v3814 = vpop.xlane.xlu0 %3813
        %vm3815 = vcmp.ne.s32.totalorder %v3754, 4294967196
        %vm3816 = vcmp.ne.s32.totalorder %v3755, 4294967196
        %v3817 = vsel %vm3815, 1, 0
        %v3818 = vsel %vm3816, 1, 0
        %v3819 = vcvt.s32.f32 %v3817
        %v3820 = vcvt.s32.f32 %v3818
        %v3821 = vsub.f32 %v3784, %v3811
        %v3822 = vsub.f32 %v3785, %v3814
        %v3823 = vmul.f32 %v3821, %v3819
        %v3824 = vmul.f32 %v3822, %v3820
        %vm3825 = vcmp.eq.f32.partialorder %v3732, %v3758
        %vm3826 = vcmp.eq.f32.partialorder %v3746, %v3758
        %vm3827 = vcmp.eq.f32.partialorder %v3734, %v3761
        %vm3828 = vcmp.eq.f32.partialorder %v3748, %v3761
        %v3829 = vsel %vm3825, %v804, 256
        %v3830 = vsel %vm3826, %v3786, 256
        %v3831 = vsel %vm3827, %v804, 256
        %v3832 = vsel %vm3828, %v3786, 256
        %vm3833 = vcmp.lt.s32.totalorder %v3829, %v3830
        %v3834 = vsel %vm3833, %v3829, %v3830
        %v3835 = vand.u32 %v3834, 65535
        %v3836 = vshra.s32 %v3834, 16
        %v3837 = vcvt.s32.f32 %v3835
        %v3838 = vcvt.s32.f32 %v3836
        %3839 = vmin.xlane.f32.xlu0 %v3838
        %v3840 = vpop.xlane.xlu0 %3839
        %vm3841 = vcmp.eq.f32.partialorder %v3838, %v3840
        %v3842 = vsel %vm3841, %v3837, inf
        %3843 = vmin.xlane.f32.xlu0 %v3842
        %v3844 = vpop.xlane.xlu0 %3843
        %v3845 = vcvt.f32.s32 %v3844
        %v3846 = vcvt.f32.s32 %v3840
        %v3847 = vshll.u32 %v3846, 16
        %v3848 = vadd.s32 %v3847, %v3845
        %vm3849 = vcmp.lt.s32.totalorder %v3831, %v3832
        %v3850 = vsel %vm3849, %v3831, %v3832
        %v3851 = vand.u32 %v3850, 65535
        %v3852 = vshra.s32 %v3850, 16
        %v3853 = vcvt.s32.f32 %v3851
        %v3854 = vcvt.s32.f32 %v3852
        %3855 = vmin.xlane.f32.xlu0 %v3854
        %v3856 = vpop.xlane.xlu0 %3855
        %vm3857 = vcmp.eq.f32.partialorder %v3854, %v3856
        %v3858 = vsel %vm3857, %v3853, inf
        %3859 = vmin.xlane.f32.xlu0 %v3858
        %v3860 = vpop.xlane.xlu0 %3859
        %v3861 = vcvt.f32.s32 %v3860
        %v3862 = vcvt.f32.s32 %v3856
        %v3863 = vshll.u32 %v3862, 16
        %v3864 = vadd.s32 %v3863, %v3861
        %vm3865 = vcmp.eq.s32.totalorder %v3848, %v3754
        %vm3866 = vcmp.eq.s32.totalorder %v3864, %v3755
        %v3867 = vsel %vm3865, 1, 0
        %v3868 = vsel %vm3866, 1, 0
        %v3869 = vcvt.s32.f32 %v3867
        %v3870 = vcvt.s32.f32 %v3868
        %v3871 = vmul.f32 %v3869, %v3819
        %v3872 = vmul.f32 %v3870, %v3820
        %vm3873 = vcmp.eq.s32.totalorder %v804, 0
        %vm3874 = vcmask 7168
        %v3875 = vsel %vm3874, %v3823, 0.0
        %v3876 = vsel %vm3874, %v3824, 0.0
        %v3877 = vadd.f32 %v3875, %v3876
        %3878 = vadd.xlane.f32.xlu0 %v3877
        %v3879 = vpop.xlane.xlu0 %3878
        %v3880 = vrot.slane %v3879, 4
        %v3881 = vadd.f32 %v3879, %v3880
        %v3882 = vrot.slane %v3881, 2
        %v3883 = vadd.f32 %v3881, %v3882
        %v3884 = vrot.slane %v3883, 1
        %v3885 = vadd.f32 %v3883, %v3884
        %s3886 = vtos %v3885
        %v3887 = vstv %s3886
        %v3888 = vsel %vm3873, %v3887, 0.0
        %vm3889 = vcmp.eq.s32.totalorder %v804, 1
        %v3890 = vsel %vm3874, %v3871, 0.0
        %v3891 = vsel %vm3874, %v3872, 0.0
        %v3892 = vadd.f32 %v3890, %v3891
        %3893 = vadd.xlane.f32.xlu0 %v3892
        %v3894 = vpop.xlane.xlu0 %3893
        %v3895 = vrot.slane %v3894, 4
        %v3896 = vadd.f32 %v3894, %v3895
        %v3897 = vrot.slane %v3896, 2
        %v3898 = vadd.f32 %v3896, %v3897
        %v3899 = vrot.slane %v3898, 1
        %v3900 = vadd.f32 %v3898, %v3899
        %s3901 = vtos %v3900
        %v3902 = vstv %s3901
        %v3903 = vsel %vm3889, %v3902, 0.0
        %v3904 = vadd.f32 %v3888, %v3903
        %vm3905 = vcmp.eq.s32.totalorder %v804, 2
        %v3906 = vsel %vm3874, %v3819, 0.0
        %v3907 = vsel %vm3874, %v3820, 0.0
        %v3908 = vadd.f32 %v3906, %v3907
        %3909 = vadd.xlane.f32.xlu0 %v3908
        %v3910 = vpop.xlane.xlu0 %3909
        %v3911 = vrot.slane %v3910, 4
        %v3912 = vadd.f32 %v3910, %v3911
        %v3913 = vrot.slane %v3912, 2
        %v3914 = vadd.f32 %v3912, %v3913
        %v3915 = vrot.slane %v3914, 1
        %v3916 = vadd.f32 %v3914, %v3915
        %s3917 = vtos %v3916
        %v3918 = vstv %s3917
        %v3919 = vsel %vm3905, %v3918, 0.0
        %v3920 = vadd.f32 %v3904, %v3919
        %3921 = vst [vmem:[%s786] sm:$0x1] %v3920
        %s3922 = sand.u32 %s439, 1
        %s3923 = scalar_lea.sflag [#allocation5], %s3922
        %s3924 = sand.u32 %s439, 1
        %s3925 = smul.addr %s3924, 32
        %s3926 = scalar_lea.vmem [#allocation20], %s3925
        %s3927 = sand.u32 %s465, 1
        %s3928 = scalar_lea.sflag [#allocation22], %s3927
        %s3929 = sand.u32 %s465, 1
        %s3930 = scalar_lea.vmem [#allocation21], %s3929
        // Predicated region
        $region133: #{tpu_custom_call.1} parent=91 // pred_check
          %p3931 = pneg %p449
        $region134: #{tpu_custom_call.1} parent=91 // pred_check_branch
          %3933 = sbr.rel (%p3931) target = $region136
        $region135: #{tpu_custom_call.1} parent=91 // pred_region
          %3935 = vsyncadd %s3923, 0
          %s3936 = smul.addr %s43, 4
          %s3937 = smul.addr %s3936, 8
          %s3938 = scalar_lea.hbm %s18, %s3937
          %s3939 = sshll.u32 %s3926, 4
          %s3940 = int_to_ptr.vmem [resolvable:$true] %s3939
          %s3941 = sshll.u32 %s3938, 4
          %s3942 = int_to_ptr.hbm [resolvable:$true] %s3941
          %3947 = dma.vmem_to_hbm [thread:$0]  %s3940, 512, %s3942, %s3923, 256, 256, 16
        $region136: #{tpu_custom_call.1} parent=91 // pred_fallthru
          _
        // Predicated region
        $region137: #{tpu_custom_call.1} parent=91 // pred_check
          %p3948 = pneg %p475
        $region138: #{tpu_custom_call.1} parent=91 // pred_check_branch
          %3950 = sbr.rel (%p3948) target = $region140
        $region139: #{tpu_custom_call.1} parent=91 // pred_region
          %3952 = vsyncadd %s3928, 0
          %s3953 = scalar_lea.hbm %s19, %s43
          %s3955 = sshll.u32 %s3930, 4
          %s3956 = int_to_ptr.vmem [resolvable:$true] %s3955
          %s3957 = sshll.u32 %s3953, 4
          %s3958 = int_to_ptr.hbm [resolvable:$true] %s3957
          %3960 = dma.vmem_to_hbm [thread:$0]  %s3956, 16, %s3958, %s3928
        $region140: #{tpu_custom_call.1} parent=91 // pred_fallthru
          _
      $region92: #{tpu_custom_call.1} parent=5 // pred_fallthru
        _
      %p3961 = scmp.le.s32.totalorder 2, %s38
      // Predicated region
      $region141: #{tpu_custom_call.1} parent=5 // pred_check
        %p3962 = pneg %p3961
      $region142: #{tpu_custom_call.1} parent=5 // pred_check_branch
        %3964 = sbr.rel (%p3962) target = $region144
      $region143: #{tpu_custom_call.1} parent=5 // pred_region
        %s3965 = ssub.s32 %s38, 2
        // Predicated region
        $region145: #{tpu_custom_call.1} parent=143 // pred_check
          %p3966 = pneg %p455
        $region146: #{tpu_custom_call.1} parent=143 // pred_check_branch
          %3968 = sbr.rel (%p3966) target = $region148
        $region147: #{tpu_custom_call.1} parent=143 // pred_region
          %s3969 = sand.u32 %s440, 1
          %s3970 = scalar_lea.sflag [#allocation5], %s3969
          %s3971 = sand.u32 %s440, 1
          %s3972 = smul.addr %s3971, 32
          %s3973 = scalar_lea.vmem [#allocation20], %s3972
          %3975 = dma.done %s3970, 512
        $region148: #{tpu_custom_call.1} parent=143 // pred_fallthru
          _
        // Predicated region
        $region149: #{tpu_custom_call.1} parent=143 // pred_check
          %p3976 = pneg %p481
        $region150: #{tpu_custom_call.1} parent=143 // pred_check_branch
          %3978 = sbr.rel (%p3976) target = $region152
        $region151: #{tpu_custom_call.1} parent=143 // pred_region
          %s3979 = sand.u32 %s466, 1
          %s3980 = scalar_lea.sflag [#allocation22], %s3979
          %s3981 = sand.u32 %s466, 1
          %s3982 = scalar_lea.vmem [#allocation21], %s3981
          %3984 = dma.done %s3980, 16
        $region152: #{tpu_custom_call.1} parent=143 // pred_fallthru
          _
      $region144: #{tpu_custom_call.1} parent=5 // pred_fallthru
        _
    $region6: #{tpu_custom_call.1} parent=1 // loop_footer
      %s42 = sadd.s32 1, %s38
    $region7: #{tpu_custom_call.1} parent=1 // loop_footer_branch
      %37 = sbr.rel target = $region3
    $region8: #{tpu_custom_call.1} parent=1 // loop_exit
      _
    %3985 = vsyncpa [#allocation4], 1
    %s3986 = scalar_lea.sflag [#allocation4], 1
    %3987 = vsyncpa %s3986, 1
    %3988 = vsyncpa [#allocation7], 1
    %3989 = vsyncpa [#allocation10], 1
    %3990 = vsyncpa [#allocation13], 1
    %3991 = vsyncpa [#allocation16], 1
    %3992 = vsyncpa [#allocation19], 1
    %3993 = vsyncpa [#allocation5], 1
    %s3994 = scalar_lea.sflag [#allocation5], 1
    %3995 = vsyncpa %s3994, 1
    %3996 = vsyncpa [#allocation22], 1
    %s3997 = scalar_lea.sflag [#allocation22], 1
    %3998 = vsyncpa %s3997, 1

</llo_original>
